<compile_context>
chip_gen: v5e
topology: v5e:2x2
jax: 0.10.0
libtpu: 0.0.40
codegen_flags: <defaults>
</compile_context>

<pallas_src>
import math

import jax
import jax.numpy as jnp
from jax import lax
from jax.experimental import pallas as pl
from jax.experimental.pallas import tpu as pltpu


# ----------------------------------------------------------------------------
# Helpers: tiling choices
# ----------------------------------------------------------------------------
def _row_block(n, target=512):
    """Largest multiple-of-8 divisor of n that is <= target (else n itself)."""
    if n <= target:
        return n
    for rb in range(target - (target % 8), 0, -8):
        if n % rb == 0:
            return rb
    return n


def _time_chunk(t, target=16):
    """Largest divisor of t that is <= target (steps per grid block)."""
    for ch in range(min(t, target), 0, -1):
        if t % ch == 0:
            return ch
    return 1


# ----------------------------------------------------------------------------
# Grouped linear kernels:  out[g] = a @ Wa[g] (+ b @ Wb[g]) + bias[g]
# grid = (G groups, row blocks) -- both axes "parallel".
# ----------------------------------------------------------------------------
def _proj1_kernel(a_ref, w_ref, bias_ref, o_ref):
    o_ref[0] = (
        jnp.dot(a_ref[...], w_ref[0], preferred_element_type=jnp.float32)
        + bias_ref[0]
    ).astype(o_ref.dtype)


def _proj2_kernel(a_ref, b_ref, wa_ref, wb_ref, bias_ref, o_ref):
    o_ref[0] = (
        jnp.dot(a_ref[...], wa_ref[0], preferred_element_type=jnp.float32)
        + jnp.dot(b_ref[...], wb_ref[0], preferred_element_type=jnp.float32)
        + bias_ref[0]
    ).astype(o_ref.dtype)


def grouped_linear(a, wa, bias, *, b=None, wb=None):
    """a: (N, Da); wa: (G, Da, Dout); bias: (G, 1, Dout); optional b/(G, Db, Dout).

    Returns (G, N, Dout) = a @ wa[g] (+ b @ wb[g]) + bias[g].
    """
    n, da = a.shape
    g, _, dout = wa.shape
    rb = _row_block(n)
    grid = (g, n // rb)

    if b is None:
        kernel = _proj1_kernel
        in_specs = [
            pl.BlockSpec((rb, da), lambda gi, r: (r, 0)),
            pl.BlockSpec((1, da, dout), lambda gi, r: (gi, 0, 0)),
            pl.BlockSpec((1, 1, dout), lambda gi, r: (gi, 0, 0)),
        ]
        args = (a, wa, bias)
    else:
        db = b.shape[1]
        kernel = _proj2_kernel
        in_specs = [
            pl.BlockSpec((rb, da), lambda gi, r: (r, 0)),
            pl.BlockSpec((rb, db), lambda gi, r: (r, 0)),
            pl.BlockSpec((1, da, dout), lambda gi, r: (gi, 0, 0)),
            pl.BlockSpec((1, db, dout), lambda gi, r: (gi, 0, 0)),
            pl.BlockSpec((1, 1, dout), lambda gi, r: (gi, 0, 0)),
        ]
        args = (a, b, wa, wb, bias)

    return pl.pallas_call(
        kernel,
        out_shape=jax.ShapeDtypeStruct((g, n, dout), a.dtype),
        grid_spec=pltpu.PrefetchScalarGridSpec(
            num_scalar_prefetch=0,
            grid=grid,
            in_specs=in_specs,
            out_specs=pl.BlockSpec((1, rb, dout), lambda gi, r: (gi, r, 0)),
        ),
        compiler_params=pltpu.CompilerParams(
            dimension_semantics=("parallel", "parallel")),
    )(*args)


# ----------------------------------------------------------------------------
# Bidirectional recurrent kernel.
# grid = (time chunks,)  ("arbitrary": the recurrence is sequential).
# Both directions are computed inside the same block so their independent
# dependency chains overlap (hides MXU latency of the tiny h @ W_hh matmuls).
# Input gates gx already contain x @ W_ih^T + b_ih + b_hh.
# ----------------------------------------------------------------------------
def _bilstm_rec_kernel(gxf_ref, gxb_ref, whh_ref, outf_ref, outb_ref,
                       hf_scr, cf_scr, hb_scr, cb_scr):
    c = pl.program_id(0)          # chunk counter

    @pl.when(c == 0)
    def _():
        hf_scr[...] = jnp.zeros_like(hf_scr)
        cf_scr[...] = jnp.zeros_like(cf_scr)
        hb_scr[...] = jnp.zeros_like(hb_scr)
        cb_scr[...] = jnp.zeros_like(cb_scr)

    ch = outf_ref.shape[0]
    hdim = hf_scr.shape[-1]
    w_f = whh_ref[0]              # (H, 4H) -- stays resident, fetched once
    w_b = whh_ref[1]

    def cell(gates, c_prev):
        i = jax.nn.sigmoid(gates[:, 0 * hdim:1 * hdim])
        f = jax.nn.sigmoid(gates[:, 1 * hdim:2 * hdim])
        g = jnp.tanh(gates[:, 2 * hdim:3 * hdim])
        o = jax.nn.sigmoid(gates[:, 3 * hdim:4 * hdim])
        c_new = f * c_prev + i * g
        return o * jnp.tanh(c_new), c_new

    # Static trip count -> fully static indexing; the two directions are
    # independent chains the scheduler can interleave within each step.
    for s in range(ch):
        sb = ch - 1 - s           # backward walks the chunk in reverse
        gf = gxf_ref[0, s] + jnp.dot(hf_scr[...], w_f,
                                     preferred_element_type=jnp.float32)
        gb = gxb_ref[0, sb] + jnp.dot(hb_scr[...], w_b,
                                      preferred_element_type=jnp.float32)
        h_f, c_f = cell(gf, cf_scr[...])
        h_b, c_b = cell(gb, cb_scr[...])
        hf_scr[...] = h_f
        cf_scr[...] = c_f
        hb_scr[...] = h_b
        cb_scr[...] = c_b
        outf_ref[s] = h_f.astype(outf_ref.dtype)
        outb_ref[sb] = h_b.astype(outb_ref.dtype)


def bilstm_recurrence(gx, whh_stack):
    """gx: (2, T, B, 4H) precomputed input gates; whh_stack: (2, H, 4H).

    Returns (out_fwd, out_bwd), each (T, B, H), in natural time order
    (matching PyTorch's bidirectional output layout).
    """
    _, t, bsz, h4 = gx.shape
    h = h4 // 4
    ch = _time_chunk(t)
    nc = t // ch

    out_f, out_b = pl.pallas_call(
        _bilstm_rec_kernel,
        out_shape=(jax.ShapeDtypeStruct((t, bsz, h), gx.dtype),
                   jax.ShapeDtypeStruct((t, bsz, h), gx.dtype)),
        grid_spec=pltpu.PrefetchScalarGridSpec(
            num_scalar_prefetch=0,
            grid=(nc,),
            in_specs=[
                # forward gates: chunk c of direction 0
                pl.BlockSpec((1, ch, bsz, h4), lambda c: (0, c, 0, 0)),
                # backward gates: chunk nc-1-c of direction 1 (DMA reversal)
                pl.BlockSpec((1, ch, bsz, h4), lambda c: (1, nc - 1 - c, 0, 0)),
                # both recurrent weight matrices, constant across the grid
                pl.BlockSpec((2, h, h4), lambda c: (0, 0, 0)),
            ],
            out_specs=[
                pl.BlockSpec((ch, bsz, h), lambda c: (c, 0, 0)),
                pl.BlockSpec((ch, bsz, h), lambda c: (nc - 1 - c, 0, 0)),
            ],
            scratch_shapes=[pltpu.VMEM((bsz, h), jnp.float32)] * 4,
        ),
        compiler_params=pltpu.CompilerParams(
            dimension_semantics=("arbitrary",)),
    )(gx, gx, whh_stack)
    return out_f, out_b


# ----------------------------------------------------------------------------
# BiLSTM module: parameter prep (transposed / bias-fused / padded, done once)
# plus layer orchestration in plain JAX.
# ----------------------------------------------------------------------------
class BiLSTMPallas:
    def __init__(self, num_layers, in_dims, hidden_dims, out_dims, key):
        self.num_layers = num_layers
        self.hidden_dims = hidden_dims
        self.out_dims = out_dims
        h = hidden_dims
        k = 1.0 / math.sqrt(h)

        self.layers = []
        self.raw_lstm = []          # kept only for the pure-JAX reference check
        for layer in range(num_layers):
            din = in_dims if layer == 0 else 2 * h
            raw_dirs = []
            for _ in range(2):      # forward, backward
                key, k1, k2, k3, k4 = jax.random.split(key, 5)
                w_ih = jax.random.uniform(k1, (4 * h, din), jnp.float32, -k, k)
                w_hh = jax.random.uniform(k2, (4 * h, h), jnp.float32, -k, k)
                b_ih = jax.random.uniform(k3, (4 * h,), jnp.float32, -k, k)
                b_hh = jax.random.uniform(k4, (4 * h,), jnp.float32, -k, k)
                raw_dirs.append((w_ih, w_hh, b_ih, b_hh))
            self.raw_lstm.append(raw_dirs)

            bias = jnp.stack([(d[2] + d[3]).reshape(1, 4 * h) for d in raw_dirs])
            whh_t = jnp.stack([d[1].T for d in raw_dirs])               # (2,H,4H)
            if layer == 0:
                wx = jnp.stack([d[0].T for d in raw_dirs])              # (2,Din,4H)
                self.layers.append(dict(kind="first", wx=wx, whh=whh_t, bias=bias))
            else:
                wa = jnp.stack([d[0][:, :h].T for d in raw_dirs])       # (2,H,4H)
                wb = jnp.stack([d[0][:, h:].T for d in raw_dirs])       # (2,H,4H)
                self.layers.append(dict(kind="deep", wa=wa, wb=wb,
                                        whh=whh_t, bias=bias))

        kp = 1.0 / math.sqrt(2 * h)
        key, k1, k2 = jax.random.split(key, 3)
        pw = jax.random.uniform(k1, (out_dims, 2 * h), jnp.float32, -kp, kp)
        pb = jax.random.uniform(k2, (out_dims,), jnp.float32, -kp, kp)
        self.raw_proj = (pw, pb)

        # Pad projection output to a full 128-lane width for lane-dense stores.
        dp = max(128, ((out_dims + 127) // 128) * 128)
        self.proj_dp = dp
        pwa = jnp.zeros((h, dp), jnp.float32).at[:, :out_dims].set(pw[:, :h].T)
        pwb = jnp.zeros((h, dp), jnp.float32).at[:, :out_dims].set(pw[:, h:].T)
        pbp = jnp.zeros((dp,), jnp.float32).at[:out_dims].set(pb)
        self.proj_wa = pwa[None]                # (1, H, DP)
        self.proj_wb = pwb[None]                # (1, H, DP)
        self.proj_bias = pbp.reshape(1, 1, dp)  # (1, 1, DP)

    def __call__(self, feat):
        t, bsz, _ = feat.shape
        h = self.hidden_dims
        n = t * bsz

        h_f = h_b = None
        for params in self.layers:
            if params["kind"] == "first":
                gx = grouped_linear(feat.reshape(n, -1), params["wx"],
                                    params["bias"])                       # (2,N,4H)
            else:
                gx = grouped_linear(h_f, params["wa"], params["bias"],
                                    b=h_b, wb=params["wb"])               # (2,N,4H)
            out_f, out_b = bilstm_recurrence(gx.reshape(2, t, bsz, 4 * h),
                                             params["whh"])               # (T,B,H)x2
            h_f = out_f.reshape(n, h)
            h_b = out_b.reshape(n, h)

        out = grouped_linear(h_f, self.proj_wa, self.proj_bias,
                             b=h_b, wb=self.proj_wb)                      # (1,N,DP)
        return out[0, :, :self.out_dims].reshape(t, bsz, self.out_dims)


# ----------------------------------------------------------------------------
# Pure-JAX reference (mirrors PyTorch nn.LSTM(bidirectional=True) + Linear)
# ----------------------------------------------------------------------------
def _mm(a, b):
    return jnp.dot(a, b, precision=lax.Precision.HIGHEST)


def reference_forward(raw_lstm, raw_proj, feat, hidden_dims):
    x = feat
    t, bsz, _ = feat.shape
    h = hidden_dims
    for layer in raw_lstm:
        outs = []
        for d, (w_ih, w_hh, b_ih, b_hh) in enumerate(layer):
            hc = jnp.zeros((bsz, h), jnp.float32)
            cc = jnp.zeros((bsz, h), jnp.float32)
            seq = x if d == 0 else x[::-1]
            hs = []
            for ts in range(t):
                g = _mm(seq[ts], w_ih.T) + b_ih + _mm(hc, w_hh.T) + b_hh
                i, f, gg, o = jnp.split(g, 4, axis=-1)
                i, f, o = jax.nn.sigmoid(i), jax.nn.sigmoid(f), jax.nn.sigmoid(o)
                gg = jnp.tanh(gg)
                cc = f * cc + i * gg
                hc = o * jnp.tanh(cc)
                hs.append(hc)
            hs = jnp.stack(hs)
            if d == 1:
                hs = hs[::-1]
            outs.append(hs)
        x = jnp.concatenate(outs, axis=-1)
    pw, pb = raw_proj
    return _mm(x, pw.T) + pb


if __name__ == "__main__":
    num_layers, in_dims, hidden_dims, out_dims = 2, 16, 32, 8
    T, B = 8, 2

    key = jax.random.PRNGKey(0)
    k_params, k_x = jax.random.split(key)

    model = BiLSTMPallas(num_layers, in_dims, hidden_dims, out_dims, k_params)
    feat = jax.random.normal(k_x, (T, B, in_dims), jnp.float32)

    forward = jax.jit(model.__call__)
    out = forward(feat)
    jax.block_until_ready(out)
    assert out.shape == (T, B, out_dims), out.shape
    assert out.dtype == jnp.float32

    ref = reference_forward(model.raw_lstm, model.raw_proj, feat, hidden_dims)
    max_err = float(jnp.max(jnp.abs(out - ref)))
    assert jnp.allclose(out, ref, atol=2e-3, rtol=2e-3), max_err

    print("KERNEL_OK")
</pallas_src>

<mosaic_0001>
module attributes {stable_mosaic.version = 11 : i64} {
  func.func @_proj2_kernel(%arg0: i32, %arg1: i32, %arg2: memref<16x32xf32, #tpu.memory_space<vmem>>, %arg3: memref<16x32xf32, #tpu.memory_space<vmem>>, %arg4: memref<1x32x128xf32, #tpu.memory_space<vmem>>, %arg5: memref<1x32x128xf32, #tpu.memory_space<vmem>>, %arg6: memref<1x1x128xf32, #tpu.memory_space<vmem>>, %arg7: memref<1x16x128xf32, #tpu.memory_space<vmem>>) attributes {dimension_semantics = [#tpu.dimension_semantics<parallel>, #tpu.dimension_semantics<parallel>], iteration_bounds = array<i64: 2, 1>, scalar_prefetch = 0 : i64, scratch_operands = 0 : i64, tpu.core_type = #tpu.core_type<tc>, window_params = [{transform_indices = @transform_0, window_bounds = array<i64: 16, 32>}, {transform_indices = @transform_1, window_bounds = array<i64: 16, 32>}, {transform_indices = @transform_2, window_bounds = array<i64: 1, 32, 128>}, {transform_indices = @transform_3, window_bounds = array<i64: 1, 32, 128>}, {transform_indices = @transform_4, window_bounds = array<i64: 1, 1, 128>}, {transform_indices = @transform_5, window_bounds = array<i64: 1, 16, 128>}]} {
    %c0 = arith.constant 0 : index
    %c0_0 = arith.constant 0 : index
    %0 = vector.load %arg2[%c0, %c0_0] : memref<16x32xf32, #tpu.memory_space<vmem>>, vector<16x32xf32>
    %c0_1 = arith.constant 0 : index
    %c0_2 = arith.constant 0 : index
    %c0_3 = arith.constant 0 : index
    %1 = vector.load %arg4[%c0_1, %c0_2, %c0_3] : memref<1x32x128xf32, #tpu.memory_space<vmem>>, vector<1x32x128xf32>
    %2 = vector.shape_cast %1 : vector<1x32x128xf32> to vector<32x128xf32>
    %cst = arith.constant dense<0.000000e+00> : vector<16x128xf32>
    %3 = tpu.matmul %0, %2, %cst {dimension_numbers = #tpu.dot_dimension_numbers<[1], [0], [0], [1], [0, 0, 1, 1], [], []>} : vector<16x32xf32>, vector<32x128xf32>, vector<16x128xf32> -> vector<16x128xf32>
    %c0_4 = arith.constant 0 : index
    %c0_5 = arith.constant 0 : index
    %4 = vector.load %arg3[%c0_4, %c0_5] : memref<16x32xf32, #tpu.memory_space<vmem>>, vector<16x32xf32>
    %c0_6 = arith.constant 0 : index
    %c0_7 = arith.constant 0 : index
    %c0_8 = arith.constant 0 : index
    %5 = vector.load %arg5[%c0_6, %c0_7, %c0_8] : memref<1x32x128xf32, #tpu.memory_space<vmem>>, vector<1x32x128xf32>
    %6 = vector.shape_cast %5 : vector<1x32x128xf32> to vector<32x128xf32>
    %cst_9 = arith.constant dense<0.000000e+00> : vector<16x128xf32>
    %7 = tpu.matmul %4, %6, %cst_9 {dimension_numbers = #tpu.dot_dimension_numbers<[1], [0], [0], [1], [0, 0, 1, 1], [], []>} : vector<16x32xf32>, vector<32x128xf32>, vector<16x128xf32> -> vector<16x128xf32>
    %8 = arith.addf %3, %7 : vector<16x128xf32>
    %c0_10 = arith.constant 0 : index
    %c0_11 = arith.constant 0 : index
    %c0_12 = arith.constant 0 : index
    %9 = vector.load %arg6[%c0_10, %c0_11, %c0_12] : memref<1x1x128xf32, #tpu.memory_space<vmem>>, vector<1x1x128xf32>
    %10 = vector.shape_cast %9 : vector<1x1x128xf32> to vector<1x128xf32>
    %11 = vector.broadcast %10 : vector<1x128xf32> to vector<16x128xf32>
    %12 = arith.addf %8, %11 : vector<16x128xf32>
    %c0_13 = arith.constant 0 : index
    %c0_14 = arith.constant 0 : index
    %c0_15 = arith.constant 0 : index
    %13 = vector.load %arg7[%c0_13, %c0_14, %c0_15] : memref<1x16x128xf32, #tpu.memory_space<vmem>>, vector<1x16x128xf32>
    %14 = vector.shape_cast %13 : vector<1x16x128xf32> to vector<16x128xf32>
    %15 = vector.shape_cast %12 : vector<16x128xf32> to vector<1x16x128xf32>
    tpu.vector_store %arg7[%c0_13, %c0_14, %c0_15], %15 {strides = array<i32>} : memref<1x16x128xf32, #tpu.memory_space<vmem>>, vector<1x16x128xf32>,
    return
  }
  func.func @transform_0(%arg0: i32, %arg1: i32) -> (i32, i32) {
    %c0_i32 = arith.constant 0 : i32
    %c0_i32_0 = arith.constant 0 : i32
    return %arg1, %c0_i32 : i32, i32
  }
  func.func @transform_1(%arg0: i32, %arg1: i32) -> (i32, i32) {
    %c0_i32 = arith.constant 0 : i32
    %c0_i32_0 = arith.constant 0 : i32
    return %arg1, %c0_i32 : i32, i32
  }
  func.func @transform_2(%arg0: i32, %arg1: i32) -> (i32, i32, i32) {
    %c0_i32 = arith.constant 0 : i32
    %c0_i32_0 = arith.constant 0 : i32
    %c0_i32_1 = arith.constant 0 : i32
    return %arg0, %c0_i32, %c0_i32_0 : i32, i32, i32
  }
  func.func @transform_3(%arg0: i32, %arg1: i32) -> (i32, i32, i32) {
    %c0_i32 = arith.constant 0 : i32
    %c0_i32_0 = arith.constant 0 : i32
    %c0_i32_1 = arith.constant 0 : i32
    return %arg0, %c0_i32, %c0_i32_0 : i32, i32, i32
  }
  func.func @transform_4(%arg0: i32, %arg1: i32) -> (i32, i32, i32) {
    %c0_i32 = arith.constant 0 : i32
    %c0_i32_0 = arith.constant 0 : i32
    %c0_i32_1 = arith.constant 0 : i32
    return %arg0, %c0_i32, %c0_i32_0 : i32, i32, i32
  }
  func.func @transform_5(%arg0: i32, %arg1: i32) -> (i32, i32, i32) {
    %c0_i32 = arith.constant 0 : i32
    %c0_i32_0 = arith.constant 0 : i32
    return %arg0, %arg1, %c0_i32 : i32, i32, i32
  }
}

module attributes {stable_mosaic.version = 11 : i64} {
  func.func @_proj2_kernel(%arg0: i32, %arg1: i32, %arg2: memref<16x32xf32, #tpu.memory_space<vmem>>, %arg3: memref<16x32xf32, #tpu.memory_space<vmem>>, %arg4: memref<1x32x128xf32, #tpu.memory_space<vmem>>, %arg5: memref<1x32x128xf32, #tpu.memory_space<vmem>>, %arg6: memref<1x1x128xf32, #tpu.memory_space<vmem>>, %arg7: memref<1x16x128xf32, #tpu.memory_space<vmem>>) attributes {dimension_semantics = [#tpu.dimension_semantics<parallel>, #tpu.dimension_semantics<parallel>], iteration_bounds = array<i64: 1, 1>, scalar_prefetch = 0 : i64, scratch_operands = 0 : i64, tpu.core_type = #tpu.core_type<tc>, window_params = [{transform_indices = @transform_0, window_bounds = array<i64: 16, 32>}, {transform_indices = @transform_1, window_bounds = array<i64: 16, 32>}, {transform_indices = @transform_2, window_bounds = array<i64: 1, 32, 128>}, {transform_indices = @transform_3, window_bounds = array<i64: 1, 32, 128>}, {transform_indices = @transform_4, window_bounds = array<i64: 1, 1, 128>}, {transform_indices = @transform_5, window_bounds = array<i64: 1, 16, 128>}]} {
    %c0 = arith.constant 0 : index
    %c0_0 = arith.constant 0 : index
    %0 = vector.load %arg2[%c0, %c0_0] : memref<16x32xf32, #tpu.memory_space<vmem>>, vector<16x32xf32>
    %c0_1 = arith.constant 0 : index
    %c0_2 = arith.constant 0 : index
    %c0_3 = arith.constant 0 : index
    %1 = vector.load %arg4[%c0_1, %c0_2, %c0_3] : memref<1x32x128xf32, #tpu.memory_space<vmem>>, vector<1x32x128xf32>
    %2 = vector.shape_cast %1 : vector<1x32x128xf32> to vector<32x128xf32>
    %cst = arith.constant dense<0.000000e+00> : vector<16x128xf32>
    %3 = tpu.matmul %0, %2, %cst {dimension_numbers = #tpu.dot_dimension_numbers<[1], [0], [0], [1], [0, 0, 1, 1], [], []>} : vector<16x32xf32>, vector<32x128xf32>, vector<16x128xf32> -> vector<16x128xf32>
    %c0_4 = arith.constant 0 : index
    %c0_5 = arith.constant 0 : index
    %4 = vector.load %arg3[%c0_4, %c0_5] : memref<16x32xf32, #tpu.memory_space<vmem>>, vector<16x32xf32>
    %c0_6 = arith.constant 0 : index
    %c0_7 = arith.constant 0 : index
    %c0_8 = arith.constant 0 : index
    %5 = vector.load %arg5[%c0_6, %c0_7, %c0_8] : memref<1x32x128xf32, #tpu.memory_space<vmem>>, vector<1x32x128xf32>
    %6 = vector.shape_cast %5 : vector<1x32x128xf32> to vector<32x128xf32>
    %cst_9 = arith.constant dense<0.000000e+00> : vector<16x128xf32>
    %7 = tpu.matmul %4, %6, %cst_9 {dimension_numbers = #tpu.dot_dimension_numbers<[1], [0], [0], [1], [0, 0, 1, 1], [], []>} : vector<16x32xf32>, vector<32x128xf32>, vector<16x128xf32> -> vector<16x128xf32>
    %8 = arith.addf %3, %7 : vector<16x128xf32>
    %c0_10 = arith.constant 0 : index
    %c0_11 = arith.constant 0 : index
    %c0_12 = arith.constant 0 : index
    %9 = vector.load %arg6[%c0_10, %c0_11, %c0_12] : memref<1x1x128xf32, #tpu.memory_space<vmem>>, vector<1x1x128xf32>
    %10 = vector.shape_cast %9 : vector<1x1x128xf32> to vector<1x128xf32>
    %11 = vector.broadcast %10 : vector<1x128xf32> to vector<16x128xf32>
    %12 = arith.addf %8, %11 : vector<16x128xf32>
    %c0_13 = arith.constant 0 : index
    %c0_14 = arith.constant 0 : index
    %c0_15 = arith.constant 0 : index
    %13 = vector.load %arg7[%c0_13, %c0_14, %c0_15] : memref<1x16x128xf32, #tpu.memory_space<vmem>>, vector<1x16x128xf32>
    %14 = vector.shape_cast %13 : vector<1x16x128xf32> to vector<16x128xf32>
    %15 = vector.shape_cast %12 : vector<16x128xf32> to vector<1x16x128xf32>
    tpu.vector_store %arg7[%c0_13, %c0_14, %c0_15], %15 {strides = array<i32>} : memref<1x16x128xf32, #tpu.memory_space<vmem>>, vector<1x16x128xf32>,
    return
  }
  func.func @transform_0(%arg0: i32, %arg1: i32) -> (i32, i32) {
    %c0_i32 = arith.constant 0 : i32
    %c0_i32_0 = arith.constant 0 : i32
    return %arg1, %c0_i32 : i32, i32
  }
  func.func @transform_1(%arg0: i32, %arg1: i32) -> (i32, i32) {
    %c0_i32 = arith.constant 0 : i32
    %c0_i32_0 = arith.constant 0 : i32
    return %arg1, %c0_i32 : i32, i32
  }
  func.func @transform_2(%arg0: i32, %arg1: i32) -> (i32, i32, i32) {
    %c0_i32 = arith.constant 0 : i32
    %c0_i32_0 = arith.constant 0 : i32
    %c0_i32_1 = arith.constant 0 : i32
    return %arg0, %c0_i32, %c0_i32_0 : i32, i32, i32
  }
  func.func @transform_3(%arg0: i32, %arg1: i32) -> (i32, i32, i32) {
    %c0_i32 = arith.constant 0 : i32
    %c0_i32_0 = arith.constant 0 : i32
    %c0_i32_1 = arith.constant 0 : i32
    return %arg0, %c0_i32, %c0_i32_0 : i32, i32, i32
  }
  func.func @transform_4(%arg0: i32, %arg1: i32) -> (i32, i32, i32) {
    %c0_i32 = arith.constant 0 : i32
    %c0_i32_0 = arith.constant 0 : i32
    %c0_i32_1 = arith.constant 0 : i32
    return %arg0, %c0_i32, %c0_i32_0 : i32, i32, i32
  }
  func.func @transform_5(%arg0: i32, %arg1: i32) -> (i32, i32, i32) {
    %c0_i32 = arith.constant 0 : i32
    %c0_i32_0 = arith.constant 0 : i32
    return %arg0, %arg1, %c0_i32 : i32, i32, i32
  }
}

module attributes {stable_mosaic.version = 11 : i64} {
  func.func @_proj1_kernel(%arg0: i32, %arg1: i32, %arg2: memref<16x16xf32, #tpu.memory_space<vmem>>, %arg3: memref<1x16x128xf32, #tpu.memory_space<vmem>>, %arg4: memref<1x1x128xf32, #tpu.memory_space<vmem>>, %arg5: memref<1x16x128xf32, #tpu.memory_space<vmem>>) attributes {dimension_semantics = [#tpu.dimension_semantics<parallel>, #tpu.dimension_semantics<parallel>], iteration_bounds = array<i64: 2, 1>, scalar_prefetch = 0 : i64, scratch_operands = 0 : i64, tpu.core_type = #tpu.core_type<tc>, window_params = [{transform_indices = @transform_0, window_bounds = array<i64: 16, 16>}, {transform_indices = @transform_1, window_bounds = array<i64: 1, 16, 128>}, {transform_indices = @transform_2, window_bounds = array<i64: 1, 1, 128>}, {transform_indices = @transform_3, window_bounds = array<i64: 1, 16, 128>}]} {
    %c0 = arith.constant 0 : index
    %c0_0 = arith.constant 0 : index
    %0 = vector.load %arg2[%c0, %c0_0] : memref<16x16xf32, #tpu.memory_space<vmem>>, vector<16x16xf32>
    %c0_1 = arith.constant 0 : index
    %c0_2 = arith.constant 0 : index
    %c0_3 = arith.constant 0 : index
    %1 = vector.load %arg3[%c0_1, %c0_2, %c0_3] : memref<1x16x128xf32, #tpu.memory_space<vmem>>, vector<1x16x128xf32>
    %2 = vector.shape_cast %1 : vector<1x16x128xf32> to vector<16x128xf32>
    %cst = arith.constant dense<0.000000e+00> : vector<16x128xf32>
    %3 = tpu.matmul %0, %2, %cst {dimension_numbers = #tpu.dot_dimension_numbers<[1], [0], [0], [1], [0, 0, 1, 1], [], []>} : vector<16x16xf32>, vector<16x128xf32>, vector<16x128xf32> -> vector<16x128xf32>
    %c0_4 = arith.constant 0 : index
    %c0_5 = arith.constant 0 : index
    %c0_6 = arith.constant 0 : index
    %4 = vector.load %arg4[%c0_4, %c0_5, %c0_6] : memref<1x1x128xf32, #tpu.memory_space<vmem>>, vector<1x1x128xf32>
    %5 = vector.shape_cast %4 : vector<1x1x128xf32> to vector<1x128xf32>
    %6 = vector.broadcast %5 : vector<1x128xf32> to vector<16x128xf32>
    %7 = arith.addf %3, %6 : vector<16x128xf32>
    %c0_7 = arith.constant 0 : index
    %c0_8 = arith.constant 0 : index
    %c0_9 = arith.constant 0 : index
    %8 = vector.load %arg5[%c0_7, %c0_8, %c0_9] : memref<1x16x128xf32, #tpu.memory_space<vmem>>, vector<1x16x128xf32>
    %9 = vector.shape_cast %8 : vector<1x16x128xf32> to vector<16x128xf32>
    %10 = vector.shape_cast %7 : vector<16x128xf32> to vector<1x16x128xf32>
    tpu.vector_store %arg5[%c0_7, %c0_8, %c0_9], %10 {strides = array<i32>} : memref<1x16x128xf32, #tpu.memory_space<vmem>>, vector<1x16x128xf32>,
    return
  }
  func.func @transform_0(%arg0: i32, %arg1: i32) -> (i32, i32) {
    %c0_i32 = arith.constant 0 : i32
    %c0_i32_0 = arith.constant 0 : i32
    return %arg1, %c0_i32 : i32, i32
  }
  func.func @transform_1(%arg0: i32, %arg1: i32) -> (i32, i32, i32) {
    %c0_i32 = arith.constant 0 : i32
    %c0_i32_0 = arith.constant 0 : i32
    %c0_i32_1 = arith.constant 0 : i32
    return %arg0, %c0_i32, %c0_i32_0 : i32, i32, i32
  }
  func.func @transform_2(%arg0: i32, %arg1: i32) -> (i32, i32, i32) {
    %c0_i32 = arith.constant 0 : i32
    %c0_i32_0 = arith.constant 0 : i32
    %c0_i32_1 = arith.constant 0 : i32
    return %arg0, %c0_i32, %c0_i32_0 : i32, i32, i32
  }
  func.func @transform_3(%arg0: i32, %arg1: i32) -> (i32, i32, i32) {
    %c0_i32 = arith.constant 0 : i32
    %c0_i32_0 = arith.constant 0 : i32
    return %arg0, %arg1, %c0_i32 : i32, i32, i32
  }
}

module attributes {stable_mosaic.version = 11 : i64} {
  func.func @_bilstm_rec_kernel(%arg0: i32, %arg1: memref<1x8x2x128xf32, #tpu.memory_space<vmem>>, %arg2: memref<1x8x2x128xf32, #tpu.memory_space<vmem>>, %arg3: memref<2x32x128xf32, #tpu.memory_space<vmem>>, %arg4: memref<8x2x32xf32, #tpu.memory_space<vmem>>, %arg5: memref<8x2x32xf32, #tpu.memory_space<vmem>>, %arg6: memref<2x32xf32, #tpu.memory_space<vmem>>, %arg7: memref<2x32xf32, #tpu.memory_space<vmem>>, %arg8: memref<2x32xf32, #tpu.memory_space<vmem>>, %arg9: memref<2x32xf32, #tpu.memory_space<vmem>>) attributes {dimension_semantics = [#tpu.dimension_semantics<arbitrary>], iteration_bounds = array<i64: 1>, scalar_prefetch = 0 : i64, scratch_operands = 4 : i64, tpu.core_type = #tpu.core_type<tc>, window_params = [{transform_indices = @transform_0, window_bounds = array<i64: 1, 8, 2, 128>}, {transform_indices = @transform_1, window_bounds = array<i64: 1, 8, 2, 128>}, {pipeline_mode = #tpu.pipeline_mode<synchronous>, transform_indices = @transform_2, window_bounds = array<i64: 2, 32, 128>}, {transform_indices = @transform_3, window_bounds = array<i64: 8, 2, 32>}, {transform_indices = @transform_4, window_bounds = array<i64: 8, 2, 32>}]} {
    %c0_i32 = arith.constant 0 : i32
    %0 = arith.cmpi eq, %arg0, %c0_i32 : i32
    %1 = arith.extui %0 : i1 to i32
    %c0_i32_0 = arith.constant 0 : i32
    %2 = arith.cmpi ne, %1, %c0_i32_0 : i32
    scf.if %2 {
      %cst_302 = arith.constant 0.000000e+00 : f32
      %583 = vector.broadcast %cst_302 : f32 to vector<2x32xf32>
      %c0_303 = arith.constant 0 : index
      %c0_304 = arith.constant 0 : index
      %584 = vector.load %arg6[%c0_303, %c0_304] : memref<2x32xf32, #tpu.memory_space<vmem>>, vector<2x32xf32>
      tpu.vector_store %arg6[%c0_303, %c0_304], %583 {strides = array<i32>} : memref<2x32xf32, #tpu.memory_space<vmem>>, vector<2x32xf32>,
      %cst_305 = arith.constant 0.000000e+00 : f32
      %585 = vector.broadcast %cst_305 : f32 to vector<2x32xf32>
      %c0_306 = arith.constant 0 : index
      %c0_307 = arith.constant 0 : index
      %586 = vector.load %arg7[%c0_306, %c0_307] : memref<2x32xf32, #tpu.memory_space<vmem>>, vector<2x32xf32>
      tpu.vector_store %arg7[%c0_306, %c0_307], %585 {strides = array<i32>} : memref<2x32xf32, #tpu.memory_space<vmem>>, vector<2x32xf32>,
      %cst_308 = arith.constant 0.000000e+00 : f32
      %587 = vector.broadcast %cst_308 : f32 to vector<2x32xf32>
      %c0_309 = arith.constant 0 : index
      %c0_310 = arith.constant 0 : index
      %588 = vector.load %arg8[%c0_309, %c0_310] : memref<2x32xf32, #tpu.memory_space<vmem>>, vector<2x32xf32>
      tpu.vector_store %arg8[%c0_309, %c0_310], %587 {strides = array<i32>} : memref<2x32xf32, #tpu.memory_space<vmem>>, vector<2x32xf32>,
      %cst_311 = arith.constant 0.000000e+00 : f32
      %589 = vector.broadcast %cst_311 : f32 to vector<2x32xf32>
      %c0_312 = arith.constant 0 : index
      %c0_313 = arith.constant 0 : index
      %590 = vector.load %arg9[%c0_312, %c0_313] : memref<2x32xf32, #tpu.memory_space<vmem>>, vector<2x32xf32>
      tpu.vector_store %arg9[%c0_312, %c0_313], %589 {strides = array<i32>} : memref<2x32xf32, #tpu.memory_space<vmem>>, vector<2x32xf32>,
    } else {
    }
    %c0 = arith.constant 0 : index
    %c0_1 = arith.constant 0 : index
    %c0_2 = arith.constant 0 : index
    %3 = vector.load %arg3[%c0, %c0_1, %c0_2] : memref<2x32x128xf32, #tpu.memory_space<vmem>>, vector<1x32x128xf32>
    %4 = vector.shape_cast %3 : vector<1x32x128xf32> to vector<32x128xf32>
    %c1 = arith.constant 1 : index
    %c0_3 = arith.constant 0 : index
    %c0_4 = arith.constant 0 : index
    %5 = vector.load %arg3[%c1, %c0_3, %c0_4] : memref<2x32x128xf32, #tpu.memory_space<vmem>>, vector<1x32x128xf32>
    %6 = vector.shape_cast %5 : vector<1x32x128xf32> to vector<32x128xf32>
    %c0_5 = arith.constant 0 : index
    %c0_6 = arith.constant 0 : index
    %c0_7 = arith.constant 0 : index
    %c0_8 = arith.constant 0 : index
    %7 = vector.load %arg1[%c0_5, %c0_6, %c0_7, %c0_8] : memref<1x8x2x128xf32, #tpu.memory_space<vmem>>, vector<1x1x2x128xf32>
    %8 = vector.shape_cast %7 : vector<1x1x2x128xf32> to vector<2x128xf32>
    %c0_9 = arith.constant 0 : index
    %c0_10 = arith.constant 0 : index
    %9 = vector.load %arg6[%c0_9, %c0_10] : memref<2x32xf32, #tpu.memory_space<vmem>>, vector<2x32xf32>
    %cst = arith.constant dense<0.000000e+00> : vector<2x128xf32>
    %10 = tpu.matmul %9, %4, %cst {dimension_numbers = #tpu.dot_dimension_numbers<[1], [0], [0], [1], [0, 0, 1, 1], [], []>} : vector<2x32xf32>, vector<32x128xf32>, vector<2x128xf32> -> vector<2x128xf32>
    %11 = arith.addf %8, %10 : vector<2x128xf32>
    %c0_11 = arith.constant 0 : index
    %c7 = arith.constant 7 : index
    %c0_12 = arith.constant 0 : index
    %c0_13 = arith.constant 0 : index
    %12 = vector.load %arg2[%c0_11, %c7, %c0_12, %c0_13] : memref<1x8x2x128xf32, #tpu.memory_space<vmem>>, vector<1x1x2x128xf32>
    %13 = vector.shape_cast %12 : vector<1x1x2x128xf32> to vector<2x128xf32>
    %c0_14 = arith.constant 0 : index
    %c0_15 = arith.constant 0 : index
    %14 = vector.load %arg8[%c0_14, %c0_15] : memref<2x32xf32, #tpu.memory_space<vmem>>, vector<2x32xf32>
    %cst_16 = arith.constant dense<0.000000e+00> : vector<2x128xf32>
    %15 = tpu.matmul %14, %6, %cst_16 {dimension_numbers = #tpu.dot_dimension_numbers<[1], [0], [0], [1], [0, 0, 1, 1], [], []>} : vector<2x32xf32>, vector<32x128xf32>, vector<2x128xf32> -> vector<2x128xf32>
    %16 = arith.addf %13, %15 : vector<2x128xf32>
    %c0_17 = arith.constant 0 : index
    %c0_18 = arith.constant 0 : index
    %17 = vector.load %arg7[%c0_17, %c0_18] : memref<2x32xf32, #tpu.memory_space<vmem>>, vector<2x32xf32>
    %18 = vector.extract_strided_slice %11 {offsets = [0, 0], sizes = [2, 32], strides = [1, 1]} : vector<2x128xf32> to vector<2x32xf32>
    %19 = arith.negf %18 : vector<2x32xf32>
    %20 = math.exp %19 : vector<2x32xf32>
    %cst_19 = arith.constant 1.000000e+00 : f32
    %21 = vector.broadcast %cst_19 : f32 to vector<2x32xf32>
    %22 = arith.addf %21, %20 : vector<2x32xf32>
    %23 = arith.divf %21, %22 : vector<2x32xf32>
    %24 = vector.extract_strided_slice %11 {offsets = [0, 32], sizes = [2, 32], strides = [1, 1]} : vector<2x128xf32> to vector<2x32xf32>
    %25 = arith.negf %24 : vector<2x32xf32>
    %26 = math.exp %25 : vector<2x32xf32>
    %cst_20 = arith.constant 1.000000e+00 : f32
    %27 = vector.broadcast %cst_20 : f32 to vector<2x32xf32>
    %28 = arith.addf %27, %26 : vector<2x32xf32>
    %29 = arith.divf %27, %28 : vector<2x32xf32>
    %30 = vector.extract_strided_slice %11 {offsets = [0, 64], sizes = [2, 32], strides = [1, 1]} : vector<2x128xf32> to vector<2x32xf32>
    %31 = math.tanh %30 : vector<2x32xf32>
    %32 = vector.extract_strided_slice %11 {offsets = [0, 96], sizes = [2, 32], strides = [1, 1]} : vector<2x128xf32> to vector<2x32xf32>
    %33 = arith.negf %32 : vector<2x32xf32>
    %34 = math.exp %33 : vector<2x32xf32>
    %cst_21 = arith.constant 1.000000e+00 : f32
    %35 = vector.broadcast %cst_21 : f32 to vector<2x32xf32>
    %36 = arith.addf %35, %34 : vector<2x32xf32>
    %37 = arith.divf %35, %36 : vector<2x32xf32>
    %38 = arith.mulf %29, %17 : vector<2x32xf32>
    %39 = arith.mulf %23, %31 : vector<2x32xf32>
    %40 = arith.addf %38, %39 : vector<2x32xf32>
    %41 = math.tanh %40 : vector<2x32xf32>
    %42 = arith.mulf %37, %41 : vector<2x32xf32>
    %c0_22 = arith.constant 0 : index
    %c0_23 = arith.constant 0 : index
    %43 = vector.load %arg9[%c0_22, %c0_23] : memref<2x32xf32, #tpu.memory_space<vmem>>, vector<2x32xf32>
    %44 = vector.extract_strided_slice %16 {offsets = [0, 0], sizes = [2, 32], strides = [1, 1]} : vector<2x128xf32> to vector<2x32xf32>
    %45 = arith.negf %44 : vector<2x32xf32>
    %46 = math.exp %45 : vector<2x32xf32>
    %cst_24 = arith.constant 1.000000e+00 : f32
    %47 = vector.broadcast %cst_24 : f32 to vector<2x32xf32>
    %48 = arith.addf %47, %46 : vector<2x32xf32>
    %49 = arith.divf %47, %48 : vector<2x32xf32>
    %50 = vector.extract_strided_slice %16 {offsets = [0, 32], sizes = [2, 32], strides = [1, 1]} : vector<2x128xf32> to vector<2x32xf32>
    %51 = arith.negf %50 : vector<2x32xf32>
    %52 = math.exp %51 : vector<2x32xf32>
    %cst_25 = arith.constant 1.000000e+00 : f32
    %53 = vector.broadcast %cst_25 : f32 to vector<2x32xf32>
    %54 = arith.addf %53, %52 : vector<2x32xf32>
    %55 = arith.divf %53, %54 : vector<2x32xf32>
    %56 = vector.extract_strided_slice %16 {offsets = [0, 64], sizes = [2, 32], strides = [1, 1]} : vector<2x128xf32> to vector<2x32xf32>
    %57 = math.tanh %56 : vector<2x32xf32>
    %58 = vector.extract_strided_slice %16 {offsets = [0, 96], sizes = [2, 32], strides = [1, 1]} : vector<2x128xf32> to vector<2x32xf32>
    %59 = arith.negf %58 : vector<2x32xf32>
    %60 = math.exp %59 : vector<2x32xf32>
    %cst_26 = arith.constant 1.000000e+00 : f32
    %61 = vector.broadcast %cst_26 : f32 to vector<2x32xf32>
    %62 = arith.addf %61, %60 : vector<2x32xf32>
    %63 = arith.divf %61, %62 : vector<2x32xf32>
    %64 = arith.mulf %55, %43 : vector<2x32xf32>
    %65 = arith.mulf %49, %57 : vector<2x32xf32>
    %66 = arith.addf %64, %65 : vector<2x32xf32>
    %67 = math.tanh %66 : vector<2x32xf32>
    %68 = arith.mulf %63, %67 : vector<2x32xf32>
    %c0_27 = arith.constant 0 : index
    %c0_28 = arith.constant 0 : index
    %69 = vector.load %arg6[%c0_27, %c0_28] : memref<2x32xf32, #tpu.memory_space<vmem>>, vector<2x32xf32>
    tpu.vector_store %arg6[%c0_27, %c0_28], %42 {strides = array<i32>} : memref<2x32xf32, #tpu.memory_space<vmem>>, vector<2x32xf32>,
    %c0_29 = arith.constant 0 : index
    %c0_30 = arith.constant 0 : index
    %70 = vector.load %arg7[%c0_29, %c0_30] : memref<2x32xf32, #tpu.memory_space<vmem>>, vector<2x32xf32>
    tpu.vector_store %arg7[%c0_29, %c0_30], %40 {strides = array<i32>} : memref<2x32xf32, #tpu.memory_space<vmem>>, vector<2x32xf32>,
    %c0_31 = arith.constant 0 : index
    %c0_32 = arith.constant 0 : index
    %71 = vector.load %arg8[%c0_31, %c0_32] : memref<2x32xf32, #tpu.memory_space<vmem>>, vector<2x32xf32>
    tpu.vector_store %arg8[%c0_31, %c0_32], %68 {strides = array<i32>} : memref<2x32xf32, #tpu.memory_space<vmem>>, vector<2x32xf32>,
    %c0_33 = arith.constant 0 : index
    %c0_34 = arith.constant 0 : index
    %72 = vector.load %arg9[%c0_33, %c0_34] : memref<2x32xf32, #tpu.memory_space<vmem>>, vector<2x32xf32>
    tpu.vector_store %arg9[%c0_33, %c0_34], %66 {strides = array<i32>} : memref<2x32xf32, #tpu.memory_space<vmem>>, vector<2x32xf32>,
    %c0_35 = arith.constant 0 : index
    %c0_36 = arith.constant 0 : index
    %c0_37 = arith.constant 0 : index
    %73 = vector.load %arg4[%c0_35, %c0_36, %c0_37] : memref<8x2x32xf32, #tpu.memory_space<vmem>>, vector<1x2x32xf32>
    %74 = vector.shape_cast %73 : vector<1x2x32xf32> to vector<2x32xf32>
    %75 = vector.shape_cast %42 : vector<2x32xf32> to vector<1x2x32xf32>
    tpu.vector_store %arg4[%c0_35, %c0_36, %c0_37], %75 {strides = array<i32>} : memref<8x2x32xf32, #tpu.memory_space<vmem>>, vector<1x2x32xf32>,
    %c7_38 = arith.constant 7 : index
    %c0_39 = arith.constant 0 : index
    %c0_40 = arith.constant 0 : index
    %76 = vector.load %arg5[%c7_38, %c0_39, %c0_40] : memref<8x2x32xf32, #tpu.memory_space<vmem>>, vector<1x2x32xf32>
    %77 = vector.shape_cast %76 : vector<1x2x32xf32> to vector<2x32xf32>
    %78 = vector.shape_cast %68 : vector<2x32xf32> to vector<1x2x32xf32>
    tpu.vector_store %arg5[%c7_38, %c0_39, %c0_40], %78 {strides = array<i32>} : memref<8x2x32xf32, #tpu.memory_space<vmem>>, vector<1x2x32xf32>,
    %c0_41 = arith.constant 0 : index
    %c1_42 = arith.constant 1 : index
    %c0_43 = arith.constant 0 : index
    %c0_44 = arith.constant 0 : index
    %79 = vector.load %arg1[%c0_41, %c1_42, %c0_43, %c0_44] : memref<1x8x2x128xf32, #tpu.memory_space<vmem>>, vector<1x1x2x128xf32>
    %80 = vector.shape_cast %79 : vector<1x1x2x128xf32> to vector<2x128xf32>
    %c0_45 = arith.constant 0 : index
    %c0_46 = arith.constant 0 : index
    %81 = vector.load %arg6[%c0_45, %c0_46] : memref<2x32xf32, #tpu.memory_space<vmem>>, vector<2x32xf32>
    %cst_47 = arith.constant dense<0.000000e+00> : vector<2x128xf32>
    %82 = tpu.matmul %81, %4, %cst_47 {dimension_numbers = #tpu.dot_dimension_numbers<[1], [0], [0], [1], [0, 0, 1, 1], [], []>} : vector<2x32xf32>, vector<32x128xf32>, vector<2x128xf32> -> vector<2x128xf32>
    %83 = arith.addf %80, %82 : vector<2x128xf32>
    %c0_48 = arith.constant 0 : index
    %c6 = arith.constant 6 : index
    %c0_49 = arith.constant 0 : index
    %c0_50 = arith.constant 0 : index
    %84 = vector.load %arg2[%c0_48, %c6, %c0_49, %c0_50] : memref<1x8x2x128xf32, #tpu.memory_space<vmem>>, vector<1x1x2x128xf32>
    %85 = vector.shape_cast %84 : vector<1x1x2x128xf32> to vector<2x128xf32>
    %c0_51 = arith.constant 0 : index
    %c0_52 = arith.constant 0 : index
    %86 = vector.load %arg8[%c0_51, %c0_52] : memref<2x32xf32, #tpu.memory_space<vmem>>, vector<2x32xf32>
    %cst_53 = arith.constant dense<0.000000e+00> : vector<2x128xf32>
    %87 = tpu.matmul %86, %6, %cst_53 {dimension_numbers = #tpu.dot_dimension_numbers<[1], [0], [0], [1], [0, 0, 1, 1], [], []>} : vector<2x32xf32>, vector<32x128xf32>, vector<2x128xf32> -> vector<2x128xf32>
    %88 = arith.addf %85, %87 : vector<2x128xf32>
    %c0_54 = arith.constant 0 : index
    %c0_55 = arith.constant 0 : index
    %89 = vector.load %arg7[%c0_54, %c0_55] : memref<2x32xf32, #tpu.memory_space<vmem>>, vector<2x32xf32>
    %90 = vector.extract_strided_slice %83 {offsets = [0, 0], sizes = [2, 32], strides = [1, 1]} : vector<2x128xf32> to vector<2x32xf32>
    %91 = arith.negf %90 : vector<2x32xf32>
    %92 = math.exp %91 : vector<2x32xf32>
    %cst_56 = arith.constant 1.000000e+00 : f32
    %93 = vector.broadcast %cst_56 : f32 to vector<2x32xf32>
    %94 = arith.addf %93, %92 : vector<2x32xf32>
    %95 = arith.divf %93, %94 : vector<2x32xf32>
    %96 = vector.extract_strided_slice %83 {offsets = [0, 32], sizes = [2, 32], strides = [1, 1]} : vector<2x128xf32> to vector<2x32xf32>
    %97 = arith.negf %96 : vector<2x32xf32>
    %98 = math.exp %97 : vector<2x32xf32>
    %cst_57 = arith.constant 1.000000e+00 : f32
    %99 = vector.broadcast %cst_57 : f32 to vector<2x32xf32>
    %100 = arith.addf %99, %98 : vector<2x32xf32>
    %101 = arith.divf %99, %100 : vector<2x32xf32>
    %102 = vector.extract_strided_slice %83 {offsets = [0, 64], sizes = [2, 32], strides = [1, 1]} : vector<2x128xf32> to vector<2x32xf32>
    %103 = math.tanh %102 : vector<2x32xf32>
    %104 = vector.extract_strided_slice %83 {offsets = [0, 96], sizes = [2, 32], strides = [1, 1]} : vector<2x128xf32> to vector<2x32xf32>
    %105 = arith.negf %104 : vector<2x32xf32>
    %106 = math.exp %105 : vector<2x32xf32>
    %cst_58 = arith.constant 1.000000e+00 : f32
    %107 = vector.broadcast %cst_58 : f32 to vector<2x32xf32>
    %108 = arith.addf %107, %106 : vector<2x32xf32>
    %109 = arith.divf %107, %108 : vector<2x32xf32>
    %110 = arith.mulf %101, %89 : vector<2x32xf32>
    %111 = arith.mulf %95, %103 : vector<2x32xf32>
    %112 = arith.addf %110, %111 : vector<2x32xf32>
    %113 = math.tanh %112 : vector<2x32xf32>
    %114 = arith.mulf %109, %113 : vector<2x32xf32>
    %c0_59 = arith.constant 0 : index
    %c0_60 = arith.constant 0 : index
    %115 = vector.load %arg9[%c0_59, %c0_60] : memref<2x32xf32, #tpu.memory_space<vmem>>, vector<2x32xf32>
    %116 = vector.extract_strided_slice %88 {offsets = [0, 0], sizes = [2, 32], strides = [1, 1]} : vector<2x128xf32> to vector<2x32xf32>
    %117 = arith.negf %116 : vector<2x32xf32>
    %118 = math.exp %117 : vector<2x32xf32>
    %cst_61 = arith.constant 1.000000e+00 : f32
    %119 = vector.broadcast %cst_61 : f32 to vector<2x32xf32>
    %120 = arith.addf %119, %118 : vector<2x32xf32>
    %121 = arith.divf %119, %120 : vector<2x32xf32>
    %122 = vector.extract_strided_slice %88 {offsets = [0, 32], sizes = [2, 32], strides = [1, 1]} : vector<2x128xf32> to vector<2x32xf32>
    %123 = arith.negf %122 : vector<2x32xf32>
    %124 = math.exp %123 : vector<2x32xf32>
    %cst_62 = arith.constant 1.000000e+00 : f32
    %125 = vector.broadcast %cst_62 : f32 to vector<2x32xf32>
    %126 = arith.addf %125, %124 : vector<2x32xf32>
    %127 = arith.divf %125, %126 : vector<2x32xf32>
    %128 = vector.extract_strided_slice %88 {offsets = [0, 64], sizes = [2, 32], strides = [1, 1]} : vector<2x128xf32> to vector<2x32xf32>
    %129 = math.tanh %128 : vector<2x32xf32>
    %130 = vector.extract_strided_slice %88 {offsets = [0, 96], sizes = [2, 32], strides = [1, 1]} : vector<2x128xf32> to vector<2x32xf32>
    %131 = arith.negf %130 : vector<2x32xf32>
    %132 = math.exp %131 : vector<2x32xf32>
    %cst_63 = arith.constant 1.000000e+00 : f32
    %133 = vector.broadcast %cst_63 : f32 to vector<2x32xf32>
    %134 = arith.addf %133, %132 : vector<2x32xf32>
    %135 = arith.divf %133, %134 : vector<2x32xf32>
    %136 = arith.mulf %127, %115 : vector<2x32xf32>
    %137 = arith.mulf %121, %129 : vector<2x32xf32>
    %138 = arith.addf %136, %137 : vector<2x32xf32>
    %139 = math.tanh %138 : vector<2x32xf32>
    %140 = arith.mulf %135, %139 : vector<2x32xf32>
    %c0_64 = arith.constant 0 : index
    %c0_65 = arith.constant 0 : index
    %141 = vector.load %arg6[%c0_64, %c0_65] : memref<2x32xf32, #tpu.memory_space<vmem>>, vector<2x32xf32>
    tpu.vector_store %arg6[%c0_64, %c0_65], %114 {strides = array<i32>} : memref<2x32xf32, #tpu.memory_space<vmem>>, vector<2x32xf32>,
    %c0_66 = arith.constant 0 : index
    %c0_67 = arith.constant 0 : index
    %142 = vector.load %arg7[%c0_66, %c0_67] : memref<2x32xf32, #tpu.memory_space<vmem>>, vector<2x32xf32>
    tpu.vector_store %arg7[%c0_66, %c0_67], %112 {strides = array<i32>} : memref<2x32xf32, #tpu.memory_space<vmem>>, vector<2x32xf32>,
    %c0_68 = arith.constant 0 : index
    %c0_69 = arith.constant 0 : index
    %143 = vector.load %arg8[%c0_68, %c0_69] : memref<2x32xf32, #tpu.memory_space<vmem>>, vector<2x32xf32>
    tpu.vector_store %arg8[%c0_68, %c0_69], %140 {strides = array<i32>} : memref<2x32xf32, #tpu.memory_space<vmem>>, vector<2x32xf32>,
    %c0_70 = arith.constant 0 : index
    %c0_71 = arith.constant 0 : index
    %144 = vector.load %arg9[%c0_70, %c0_71] : memref<2x32xf32, #tpu.memory_space<vmem>>, vector<2x32xf32>
    tpu.vector_store %arg9[%c0_70, %c0_71], %138 {strides = array<i32>} : memref<2x32xf32, #tpu.memory_space<vmem>>, vector<2x32xf32>,
    %c1_72 = arith.constant 1 : index
    %c0_73 = arith.constant 0 : index
    %c0_74 = arith.constant 0 : index
    %145 = vector.load %arg4[%c1_72, %c0_73, %c0_74] : memref<8x2x32xf32, #tpu.memory_space<vmem>>, vector<1x2x32xf32>
    %146 = vector.shape_cast %145 : vector<1x2x32xf32> to vector<2x32xf32>
    %147 = vector.shape_cast %114 : vector<2x32xf32> to vector<1x2x32xf32>
    tpu.vector_store %arg4[%c1_72, %c0_73, %c0_74], %147 {strides = array<i32>} : memref<8x2x32xf32, #tpu.memory_space<vmem>>, vector<1x2x32xf32>,
    %c6_75 = arith.constant 6 : index
    %c0_76 = arith.constant 0 : index
    %c0_77 = arith.constant 0 : index
    %148 = vector.load %arg5[%c6_75, %c0_76, %c0_77] : memref<8x2x32xf32, #tpu.memory_space<vmem>>, vector<1x2x32xf32>
    %149 = vector.shape_cast %148 : vector<1x2x32xf32> to vector<2x32xf32>
    %150 = vector.shape_cast %140 : vector<2x32xf32> to vector<1x2x32xf32>
    tpu.vector_store %arg5[%c6_75, %c0_76, %c0_77], %150 {strides = array<i32>} : memref<8x2x32xf32, #tpu.memory_space<vmem>>, vector<1x2x32xf32>,
    %c0_78 = arith.constant 0 : index
    %c2 = arith.constant 2 : index
    %c0_79 = arith.constant 0 : index
    %c0_80 = arith.constant 0 : index
    %151 = vector.load %arg1[%c0_78, %c2, %c0_79, %c0_80] : memref<1x8x2x128xf32, #tpu.memory_space<vmem>>, vector<1x1x2x128xf32>
    %152 = vector.shape_cast %151 : vector<1x1x2x128xf32> to vector<2x128xf32>
    %c0_81 = arith.constant 0 : index
    %c0_82 = arith.constant 0 : index
    %153 = vector.load %arg6[%c0_81, %c0_82] : memref<2x32xf32, #tpu.memory_space<vmem>>, vector<2x32xf32>
    %cst_83 = arith.constant dense<0.000000e+00> : vector<2x128xf32>
    %154 = tpu.matmul %153, %4, %cst_83 {dimension_numbers = #tpu.dot_dimension_numbers<[1], [0], [0], [1], [0, 0, 1, 1], [], []>} : vector<2x32xf32>, vector<32x128xf32>, vector<2x128xf32> -> vector<2x128xf32>
    %155 = arith.addf %152, %154 : vector<2x128xf32>
    %c0_84 = arith.constant 0 : index
    %c5 = arith.constant 5 : index
    %c0_85 = arith.constant 0 : index
    %c0_86 = arith.constant 0 : index
    %156 = vector.load %arg2[%c0_84, %c5, %c0_85, %c0_86] : memref<1x8x2x128xf32, #tpu.memory_space<vmem>>, vector<1x1x2x128xf32>
    %157 = vector.shape_cast %156 : vector<1x1x2x128xf32> to vector<2x128xf32>
    %c0_87 = arith.constant 0 : index
    %c0_88 = arith.constant 0 : index
    %158 = vector.load %arg8[%c0_87, %c0_88] : memref<2x32xf32, #tpu.memory_space<vmem>>, vector<2x32xf32>
    %cst_89 = arith.constant dense<0.000000e+00> : vector<2x128xf32>
    %159 = tpu.matmul %158, %6, %cst_89 {dimension_numbers = #tpu.dot_dimension_numbers<[1], [0], [0], [1], [0, 0, 1, 1], [], []>} : vector<2x32xf32>, vector<32x128xf32>, vector<2x128xf32> -> vector<2x128xf32>
    %160 = arith.addf %157, %159 : vector<2x128xf32>
    %c0_90 = arith.constant 0 : index
    %c0_91 = arith.constant 0 : index
    %161 = vector.load %arg7[%c0_90, %c0_91] : memref<2x32xf32, #tpu.memory_space<vmem>>, vector<2x32xf32>
    %162 = vector.extract_strided_slice %155 {offsets = [0, 0], sizes = [2, 32], strides = [1, 1]} : vector<2x128xf32> to vector<2x32xf32>
    %163 = arith.negf %162 : vector<2x32xf32>
    %164 = math.exp %163 : vector<2x32xf32>
    %cst_92 = arith.constant 1.000000e+00 : f32
    %165 = vector.broadcast %cst_92 : f32 to vector<2x32xf32>
    %166 = arith.addf %165, %164 : vector<2x32xf32>
    %167 = arith.divf %165, %166 : vector<2x32xf32>
    %168 = vector.extract_strided_slice %155 {offsets = [0, 32], sizes = [2, 32], strides = [1, 1]} : vector<2x128xf32> to vector<2x32xf32>
    %169 = arith.negf %168 : vector<2x32xf32>
    %170 = math.exp %169 : vector<2x32xf32>
    %cst_93 = arith.constant 1.000000e+00 : f32
    %171 = vector.broadcast %cst_93 : f32 to vector<2x32xf32>
    %172 = arith.addf %171, %170 : vector<2x32xf32>
    %173 = arith.divf %171, %172 : vector<2x32xf32>
    %174 = vector.extract_strided_slice %155 {offsets = [0, 64], sizes = [2, 32], strides = [1, 1]} : vector<2x128xf32> to vector<2x32xf32>
    %175 = math.tanh %174 : vector<2x32xf32>
    %176 = vector.extract_strided_slice %155 {offsets = [0, 96], sizes = [2, 32], strides = [1, 1]} : vector<2x128xf32> to vector<2x32xf32>
    %177 = arith.negf %176 : vector<2x32xf32>
    %178 = math.exp %177 : vector<2x32xf32>
    %cst_94 = arith.constant 1.000000e+00 : f32
    %179 = vector.broadcast %cst_94 : f32 to vector<2x32xf32>
    %180 = arith.addf %179, %178 : vector<2x32xf32>
    %181 = arith.divf %179, %180 : vector<2x32xf32>
    %182 = arith.mulf %173, %161 : vector<2x32xf32>
    %183 = arith.mulf %167, %175 : vector<2x32xf32>
    %184 = arith.addf %182, %183 : vector<2x32xf32>
    %185 = math.tanh %184 : vector<2x32xf32>
    %186 = arith.mulf %181, %185 : vector<2x32xf32>
    %c0_95 = arith.constant 0 : index
    %c0_96 = arith.constant 0 : index
    %187 = vector.load %arg9[%c0_95, %c0_96] : memref<2x32xf32, #tpu.memory_space<vmem>>, vector<2x32xf32>
    %188 = vector.extract_strided_slice %160 {offsets = [0, 0], sizes = [2, 32], strides = [1, 1]} : vector<2x128xf32> to vector<2x32xf32>
    %189 = arith.negf %188 : vector<2x32xf32>
    %190 = math.exp %189 : vector<2x32xf32>
    %cst_97 = arith.constant 1.000000e+00 : f32
    %191 = vector.broadcast %cst_97 : f32 to vector<2x32xf32>
    %192 = arith.addf %191, %190 : vector<2x32xf32>
    %193 = arith.divf %191, %192 : vector<2x32xf32>
    %194 = vector.extract_strided_slice %160 {offsets = [0, 32], sizes = [2, 32], strides = [1, 1]} : vector<2x128xf32> to vector<2x32xf32>
    %195 = arith.negf %194 : vector<2x32xf32>
    %196 = math.exp %195 : vector<2x32xf32>
    %cst_98 = arith.constant 1.000000e+00 : f32
    %197 = vector.broadcast %cst_98 : f32 to vector<2x32xf32>
    %198 = arith.addf %197, %196 : vector<2x32xf32>
    %199 = arith.divf %197, %198 : vector<2x32xf32>
    %200 = vector.extract_strided_slice %160 {offsets = [0, 64], sizes = [2, 32], strides = [1, 1]} : vector<2x128xf32> to vector<2x32xf32>
    %201 = math.tanh %200 : vector<2x32xf32>
    %202 = vector.extract_strided_slice %160 {offsets = [0, 96], sizes = [2, 32], strides = [1, 1]} : vector<2x128xf32> to vector<2x32xf32>
    %203 = arith.negf %202 : vector<2x32xf32>
    %204 = math.exp %203 : vector<2x32xf32>
    %cst_99 = arith.constant 1.000000e+00 : f32
    %205 = vector.broadcast %cst_99 : f32 to vector<2x32xf32>
    %206 = arith.addf %205, %204 : vector<2x32xf32>
    %207 = arith.divf %205, %206 : vector<2x32xf32>
    %208 = arith.mulf %199, %187 : vector<2x32xf32>
    %209 = arith.mulf %193, %201 : vector<2x32xf32>
    %210 = arith.addf %208, %209 : vector<2x32xf32>
    %211 = math.tanh %210 : vector<2x32xf32>
    %212 = arith.mulf %207, %211 : vector<2x32xf32>
    %c0_100 = arith.constant 0 : index
    %c0_101 = arith.constant 0 : index
    %213 = vector.load %arg6[%c0_100, %c0_101] : memref<2x32xf32, #tpu.memory_space<vmem>>, vector<2x32xf32>
    tpu.vector_store %arg6[%c0_100, %c0_101], %186 {strides = array<i32>} : memref<2x32xf32, #tpu.memory_space<vmem>>, vector<2x32xf32>,
    %c0_102 = arith.constant 0 : index
    %c0_103 = arith.constant 0 : index
    %214 = vector.load %arg7[%c0_102, %c0_103] : memref<2x32xf32, #tpu.memory_space<vmem>>, vector<2x32xf32>
    tpu.vector_store %arg7[%c0_102, %c0_103], %184 {strides = array<i32>} : memref<2x32xf32, #tpu.memory_space<vmem>>, vector<2x32xf32>,
    %c0_104 = arith.constant 0 : index
    %c0_105 = arith.constant 0 : index
    %215 = vector.load %arg8[%c0_104, %c0_105] : memref<2x32xf32, #tpu.memory_space<vmem>>, vector<2x32xf32>
    tpu.vector_store %arg8[%c0_104, %c0_105], %212 {strides = array<i32>} : memref<2x32xf32, #tpu.memory_space<vmem>>, vector<2x32xf32>,
    %c0_106 = arith.constant 0 : index
    %c0_107 = arith.constant 0 : index
    %216 = vector.load %arg9[%c0_106, %c0_107] : memref<2x32xf32, #tpu.memory_space<vmem>>, vector<2x32xf32>
    tpu.vector_store %arg9[%c0_106, %c0_107], %210 {strides = array<i32>} : memref<2x32xf32, #tpu.memory_space<vmem>>, vector<2x32xf32>,
    %c2_108 = arith.constant 2 : index
    %c0_109 = arith.constant 0 : index
    %c0_110 = arith.constant 0 : index
    %217 = vector.load %arg4[%c2_108, %c0_109, %c0_110] : memref<8x2x32xf32, #tpu.memory_space<vmem>>, vector<1x2x32xf32>
    %218 = vector.shape_cast %217 : vector<1x2x32xf32> to vector<2x32xf32>
    %219 = vector.shape_cast %186 : vector<2x32xf32> to vector<1x2x32xf32>
    tpu.vector_store %arg4[%c2_108, %c0_109, %c0_110], %219 {strides = array<i32>} : memref<8x2x32xf32, #tpu.memory_space<vmem>>, vector<1x2x32xf32>,
    %c5_111 = arith.constant 5 : index
    %c0_112 = arith.constant 0 : index
    %c0_113 = arith.constant 0 : index
    %220 = vector.load %arg5[%c5_111, %c0_112, %c0_113] : memref<8x2x32xf32, #tpu.memory_space<vmem>>, vector<1x2x32xf32>
    %221 = vector.shape_cast %220 : vector<1x2x32xf32> to vector<2x32xf32>
    %222 = vector.shape_cast %212 : vector<2x32xf32> to vector<1x2x32xf32>
    tpu.vector_store %arg5[%c5_111, %c0_112, %c0_113], %222 {strides = array<i32>} : memref<8x2x32xf32, #tpu.memory_space<vmem>>, vector<1x2x32xf32>,
    %c0_114 = arith.constant 0 : index
    %c3 = arith.constant 3 : index
    %c0_115 = arith.constant 0 : index
    %c0_116 = arith.constant 0 : index
    %223 = vector.load %arg1[%c0_114, %c3, %c0_115, %c0_116] : memref<1x8x2x128xf32, #tpu.memory_space<vmem>>, vector<1x1x2x128xf32>
    %224 = vector.shape_cast %223 : vector<1x1x2x128xf32> to vector<2x128xf32>
    %c0_117 = arith.constant 0 : index
    %c0_118 = arith.constant 0 : index
    %225 = vector.load %arg6[%c0_117, %c0_118] : memref<2x32xf32, #tpu.memory_space<vmem>>, vector<2x32xf32>
    %cst_119 = arith.constant dense<0.000000e+00> : vector<2x128xf32>
    %226 = tpu.matmul %225, %4, %cst_119 {dimension_numbers = #tpu.dot_dimension_numbers<[1], [0], [0], [1], [0, 0, 1, 1], [], []>} : vector<2x32xf32>, vector<32x128xf32>, vector<2x128xf32> -> vector<2x128xf32>
    %227 = arith.addf %224, %226 : vector<2x128xf32>
    %c0_120 = arith.constant 0 : index
    %c4 = arith.constant 4 : index
    %c0_121 = arith.constant 0 : index
    %c0_122 = arith.constant 0 : index
    %228 = vector.load %arg2[%c0_120, %c4, %c0_121, %c0_122] : memref<1x8x2x128xf32, #tpu.memory_space<vmem>>, vector<1x1x2x128xf32>
    %229 = vector.shape_cast %228 : vector<1x1x2x128xf32> to vector<2x128xf32>
    %c0_123 = arith.constant 0 : index
    %c0_124 = arith.constant 0 : index
    %230 = vector.load %arg8[%c0_123, %c0_124] : memref<2x32xf32, #tpu.memory_space<vmem>>, vector<2x32xf32>
    %cst_125 = arith.constant dense<0.000000e+00> : vector<2x128xf32>
    %231 = tpu.matmul %230, %6, %cst_125 {dimension_numbers = #tpu.dot_dimension_numbers<[1], [0], [0], [1], [0, 0, 1, 1], [], []>} : vector<2x32xf32>, vector<32x128xf32>, vector<2x128xf32> -> vector<2x128xf32>
    %232 = arith.addf %229, %231 : vector<2x128xf32>
    %c0_126 = arith.constant 0 : index
    %c0_127 = arith.constant 0 : index
    %233 = vector.load %arg7[%c0_126, %c0_127] : memref<2x32xf32, #tpu.memory_space<vmem>>, vector<2x32xf32>
    %234 = vector.extract_strided_slice %227 {offsets = [0, 0], sizes = [2, 32], strides = [1, 1]} : vector<2x128xf32> to vector<2x32xf32>
    %235 = arith.negf %234 : vector<2x32xf32>
    %236 = math.exp %235 : vector<2x32xf32>
    %cst_128 = arith.constant 1.000000e+00 : f32
    %237 = vector.broadcast %cst_128 : f32 to vector<2x32xf32>
    %238 = arith.addf %237, %236 : vector<2x32xf32>
    %239 = arith.divf %237, %238 : vector<2x32xf32>
    %240 = vector.extract_strided_slice %227 {offsets = [0, 32], sizes = [2, 32], strides = [1, 1]} : vector<2x128xf32> to vector<2x32xf32>
    %241 = arith.negf %240 : vector<2x32xf32>
    %242 = math.exp %241 : vector<2x32xf32>
    %cst_129 = arith.constant 1.000000e+00 : f32
    %243 = vector.broadcast %cst_129 : f32 to vector<2x32xf32>
    %244 = arith.addf %243, %242 : vector<2x32xf32>
    %245 = arith.divf %243, %244 : vector<2x32xf32>
    %246 = vector.extract_strided_slice %227 {offsets = [0, 64], sizes = [2, 32], strides = [1, 1]} : vector<2x128xf32> to vector<2x32xf32>
    %247 = math.tanh %246 : vector<2x32xf32>
    %248 = vector.extract_strided_slice %227 {offsets = [0, 96], sizes = [2, 32], strides = [1, 1]} : vector<2x128xf32> to vector<2x32xf32>
    %249 = arith.negf %248 : vector<2x32xf32>
    %250 = math.exp %249 : vector<2x32xf32>
    %cst_130 = arith.constant 1.000000e+00 : f32
    %251 = vector.broadcast %cst_130 : f32 to vector<2x32xf32>
    %252 = arith.addf %251, %250 : vector<2x32xf32>
    %253 = arith.divf %251, %252 : vector<2x32xf32>
    %254 = arith.mulf %245, %233 : vector<2x32xf32>
    %255 = arith.mulf %239, %247 : vector<2x32xf32>
    %256 = arith.addf %254, %255 : vector<2x32xf32>
    %257 = math.tanh %256 : vector<2x32xf32>
    %258 = arith.mulf %253, %257 : vector<2x32xf32>
    %c0_131 = arith.constant 0 : index
    %c0_132 = arith.constant 0 : index
    %259 = vector.load %arg9[%c0_131, %c0_132] : memref<2x32xf32, #tpu.memory_space<vmem>>, vector<2x32xf32>
    %260 = vector.extract_strided_slice %232 {offsets = [0, 0], sizes = [2, 32], strides = [1, 1]} : vector<2x128xf32> to vector<2x32xf32>
    %261 = arith.negf %260 : vector<2x32xf32>
    %262 = math.exp %261 : vector<2x32xf32>
    %cst_133 = arith.constant 1.000000e+00 : f32
    %263 = vector.broadcast %cst_133 : f32 to vector<2x32xf32>
    %264 = arith.addf %263, %262 : vector<2x32xf32>
    %265 = arith.divf %263, %264 : vector<2x32xf32>
    %266 = vector.extract_strided_slice %232 {offsets = [0, 32], sizes = [2, 32], strides = [1, 1]} : vector<2x128xf32> to vector<2x32xf32>
    %267 = arith.negf %266 : vector<2x32xf32>
    %268 = math.exp %267 : vector<2x32xf32>
    %cst_134 = arith.constant 1.000000e+00 : f32
    %269 = vector.broadcast %cst_134 : f32 to vector<2x32xf32>
    %270 = arith.addf %269, %268 : vector<2x32xf32>
    %271 = arith.divf %269, %270 : vector<2x32xf32>
    %272 = vector.extract_strided_slice %232 {offsets = [0, 64], sizes = [2, 32], strides = [1, 1]} : vector<2x128xf32> to vector<2x32xf32>
    %273 = math.tanh %272 : vector<2x32xf32>
    %274 = vector.extract_strided_slice %232 {offsets = [0, 96], sizes = [2, 32], strides = [1, 1]} : vector<2x128xf32> to vector<2x32xf32>
    %275 = arith.negf %274 : vector<2x32xf32>
    %276 = math.exp %275 : vector<2x32xf32>
    %cst_135 = arith.constant 1.000000e+00 : f32
    %277 = vector.broadcast %cst_135 : f32 to vector<2x32xf32>
    %278 = arith.addf %277, %276 : vector<2x32xf32>
    %279 = arith.divf %277, %278 : vector<2x32xf32>
    %280 = arith.mulf %271, %259 : vector<2x32xf32>
    %281 = arith.mulf %265, %273 : vector<2x32xf32>
    %282 = arith.addf %280, %281 : vector<2x32xf32>
    %283 = math.tanh %282 : vector<2x32xf32>
    %284 = arith.mulf %279, %283 : vector<2x32xf32>
    %c0_136 = arith.constant 0 : index
    %c0_137 = arith.constant 0 : index
    %285 = vector.load %arg6[%c0_136, %c0_137] : memref<2x32xf32, #tpu.memory_space<vmem>>, vector<2x32xf32>
    tpu.vector_store %arg6[%c0_136, %c0_137], %258 {strides = array<i32>} : memref<2x32xf32, #tpu.memory_space<vmem>>, vector<2x32xf32>,
    %c0_138 = arith.constant 0 : index
    %c0_139 = arith.constant 0 : index
    %286 = vector.load %arg7[%c0_138, %c0_139] : memref<2x32xf32, #tpu.memory_space<vmem>>, vector<2x32xf32>
    tpu.vector_store %arg7[%c0_138, %c0_139], %256 {strides = array<i32>} : memref<2x32xf32, #tpu.memory_space<vmem>>, vector<2x32xf32>,
    %c0_140 = arith.constant 0 : index
    %c0_141 = arith.constant 0 : index
    %287 = vector.load %arg8[%c0_140, %c0_141] : memref<2x32xf32, #tpu.memory_space<vmem>>, vector<2x32xf32>
    tpu.vector_store %arg8[%c0_140, %c0_141], %284 {strides = array<i32>} : memref<2x32xf32, #tpu.memory_space<vmem>>, vector<2x32xf32>,
    %c0_142 = arith.constant 0 : index
    %c0_143 = arith.constant 0 : index
    %288 = vector.load %arg9[%c0_142, %c0_143] : memref<2x32xf32, #tpu.memory_space<vmem>>, vector<2x32xf32>
    tpu.vector_store %arg9[%c0_142, %c0_143], %282 {strides = array<i32>} : memref<2x32xf32, #tpu.memory_space<vmem>>, vector<2x32xf32>,
    %c3_144 = arith.constant 3 : index
    %c0_145 = arith.constant 0 : index
    %c0_146 = arith.constant 0 : index
    %289 = vector.load %arg4[%c3_144, %c0_145, %c0_146] : memref<8x2x32xf32, #tpu.memory_space<vmem>>, vector<1x2x32xf32>
    %290 = vector.shape_cast %289 : vector<1x2x32xf32> to vector<2x32xf32>
    %291 = vector.shape_cast %258 : vector<2x32xf32> to vector<1x2x32xf32>
    tpu.vector_store %arg4[%c3_144, %c0_145, %c0_146], %291 {strides = array<i32>} : memref<8x2x32xf32, #tpu.memory_space<vmem>>, vector<1x2x32xf32>,
    %c4_147 = arith.constant 4 : index
    %c0_148 = arith.constant 0 : index
    %c0_149 = arith.constant 0 : index
    %292 = vector.load %arg5[%c4_147, %c0_148, %c0_149] : memref<8x2x32xf32, #tpu.memory_space<vmem>>, vector<1x2x32xf32>
    %293 = vector.shape_cast %292 : vector<1x2x32xf32> to vector<2x32xf32>
    %294 = vector.shape_cast %284 : vector<2x32xf32> to vector<1x2x32xf32>
    tpu.vector_store %arg5[%c4_147, %c0_148, %c0_149], %294 {strides = array<i32>} : memref<8x2x32xf32, #tpu.memory_space<vmem>>, vector<1x2x32xf32>,
    %c0_150 = arith.constant 0 : index
    %c4_151 = arith.constant 4 : index
    %c0_152 = arith.constant 0 : index
    %c0_153 = arith.constant 0 : index
    %295 = vector.load %arg1[%c0_150, %c4_151, %c0_152, %c0_153] : memref<1x8x2x128xf32, #tpu.memory_space<vmem>>, vector<1x1x2x128xf32>
    %296 = vector.shape_cast %295 : vector<1x1x2x128xf32> to vector<2x128xf32>
    %c0_154 = arith.constant 0 : index
    %c0_155 = arith.constant 0 : index
    %297 = vector.load %arg6[%c0_154, %c0_155] : memref<2x32xf32, #tpu.memory_space<vmem>>, vector<2x32xf32>
    %cst_156 = arith.constant dense<0.000000e+00> : vector<2x128xf32>
    %298 = tpu.matmul %297, %4, %cst_156 {dimension_numbers = #tpu.dot_dimension_numbers<[1], [0], [0], [1], [0, 0, 1, 1], [], []>} : vector<2x32xf32>, vector<32x128xf32>, vector<2x128xf32> -> vector<2x128xf32>
    %299 = arith.addf %296, %298 : vector<2x128xf32>
    %c0_157 = arith.constant 0 : index
    %c3_158 = arith.constant 3 : index
    %c0_159 = arith.constant 0 : index
    %c0_160 = arith.constant 0 : index
    %300 = vector.load %arg2[%c0_157, %c3_158, %c0_159, %c0_160] : memref<1x8x2x128xf32, #tpu.memory_space<vmem>>, vector<1x1x2x128xf32>
    %301 = vector.shape_cast %300 : vector<1x1x2x128xf32> to vector<2x128xf32>
    %c0_161 = arith.constant 0 : index
    %c0_162 = arith.constant 0 : index
    %302 = vector.load %arg8[%c0_161, %c0_162] : memref<2x32xf32, #tpu.memory_space<vmem>>, vector<2x32xf32>
    %cst_163 = arith.constant dense<0.000000e+00> : vector<2x128xf32>
    %303 = tpu.matmul %302, %6, %cst_163 {dimension_numbers = #tpu.dot_dimension_numbers<[1], [0], [0], [1], [0, 0, 1, 1], [], []>} : vector<2x32xf32>, vector<32x128xf32>, vector<2x128xf32> -> vector<2x128xf32>
    %304 = arith.addf %301, %303 : vector<2x128xf32>
    %c0_164 = arith.constant 0 : index
    %c0_165 = arith.constant 0 : index
    %305 = vector.load %arg7[%c0_164, %c0_165] : memref<2x32xf32, #tpu.memory_space<vmem>>, vector<2x32xf32>
    %306 = vector.extract_strided_slice %299 {offsets = [0, 0], sizes = [2, 32], strides = [1, 1]} : vector<2x128xf32> to vector<2x32xf32>
    %307 = arith.negf %306 : vector<2x32xf32>
    %308 = math.exp %307 : vector<2x32xf32>
    %cst_166 = arith.constant 1.000000e+00 : f32
    %309 = vector.broadcast %cst_166 : f32 to vector<2x32xf32>
    %310 = arith.addf %309, %308 : vector<2x32xf32>
    %311 = arith.divf %309, %310 : vector<2x32xf32>
    %312 = vector.extract_strided_slice %299 {offsets = [0, 32], sizes = [2, 32], strides = [1, 1]} : vector<2x128xf32> to vector<2x32xf32>
    %313 = arith.negf %312 : vector<2x32xf32>
    %314 = math.exp %313 : vector<2x32xf32>
    %cst_167 = arith.constant 1.000000e+00 : f32
    %315 = vector.broadcast %cst_167 : f32 to vector<2x32xf32>
    %316 = arith.addf %315, %314 : vector<2x32xf32>
    %317 = arith.divf %315, %316 : vector<2x32xf32>
    %318 = vector.extract_strided_slice %299 {offsets = [0, 64], sizes = [2, 32], strides = [1, 1]} : vector<2x128xf32> to vector<2x32xf32>
    %319 = math.tanh %318 : vector<2x32xf32>
    %320 = vector.extract_strided_slice %299 {offsets = [0, 96], sizes = [2, 32], strides = [1, 1]} : vector<2x128xf32> to vector<2x32xf32>
    %321 = arith.negf %320 : vector<2x32xf32>
    %322 = math.exp %321 : vector<2x32xf32>
    %cst_168 = arith.constant 1.000000e+00 : f32
    %323 = vector.broadcast %cst_168 : f32 to vector<2x32xf32>
    %324 = arith.addf %323, %322 : vector<2x32xf32>
    %325 = arith.divf %323, %324 : vector<2x32xf32>
    %326 = arith.mulf %317, %305 : vector<2x32xf32>
    %327 = arith.mulf %311, %319 : vector<2x32xf32>
    %328 = arith.addf %326, %327 : vector<2x32xf32>
    %329 = math.tanh %328 : vector<2x32xf32>
    %330 = arith.mulf %325, %329 : vector<2x32xf32>
    %c0_169 = arith.constant 0 : index
    %c0_170 = arith.constant 0 : index
    %331 = vector.load %arg9[%c0_169, %c0_170] : memref<2x32xf32, #tpu.memory_space<vmem>>, vector<2x32xf32>
    %332 = vector.extract_strided_slice %304 {offsets = [0, 0], sizes = [2, 32], strides = [1, 1]} : vector<2x128xf32> to vector<2x32xf32>
    %333 = arith.negf %332 : vector<2x32xf32>
    %334 = math.exp %333 : vector<2x32xf32>
    %cst_171 = arith.constant 1.000000e+00 : f32
    %335 = vector.broadcast %cst_171 : f32 to vector<2x32xf32>
    %336 = arith.addf %335, %334 : vector<2x32xf32>
    %337 = arith.divf %335, %336 : vector<2x32xf32>
    %338 = vector.extract_strided_slice %304 {offsets = [0, 32], sizes = [2, 32], strides = [1, 1]} : vector<2x128xf32> to vector<2x32xf32>
    %339 = arith.negf %338 : vector<2x32xf32>
    %340 = math.exp %339 : vector<2x32xf32>
    %cst_172 = arith.constant 1.000000e+00 : f32
    %341 = vector.broadcast %cst_172 : f32 to vector<2x32xf32>
    %342 = arith.addf %341, %340 : vector<2x32xf32>
    %343 = arith.divf %341, %342 : vector<2x32xf32>
    %344 = vector.extract_strided_slice %304 {offsets = [0, 64], sizes = [2, 32], strides = [1, 1]} : vector<2x128xf32> to vector<2x32xf32>
    %345 = math.tanh %344 : vector<2x32xf32>
    %346 = vector.extract_strided_slice %304 {offsets = [0, 96], sizes = [2, 32], strides = [1, 1]} : vector<2x128xf32> to vector<2x32xf32>
    %347 = arith.negf %346 : vector<2x32xf32>
    %348 = math.exp %347 : vector<2x32xf32>
    %cst_173 = arith.constant 1.000000e+00 : f32
    %349 = vector.broadcast %cst_173 : f32 to vector<2x32xf32>
    %350 = arith.addf %349, %348 : vector<2x32xf32>
    %351 = arith.divf %349, %350 : vector<2x32xf32>
    %352 = arith.mulf %343, %331 : vector<2x32xf32>
    %353 = arith.mulf %337, %345 : vector<2x32xf32>
    %354 = arith.addf %352, %353 : vector<2x32xf32>
    %355 = math.tanh %354 : vector<2x32xf32>
    %356 = arith.mulf %351, %355 : vector<2x32xf32>
    %c0_174 = arith.constant 0 : index
    %c0_175 = arith.constant 0 : index
    %357 = vector.load %arg6[%c0_174, %c0_175] : memref<2x32xf32, #tpu.memory_space<vmem>>, vector<2x32xf32>
    tpu.vector_store %arg6[%c0_174, %c0_175], %330 {strides = array<i32>} : memref<2x32xf32, #tpu.memory_space<vmem>>, vector<2x32xf32>,
    %c0_176 = arith.constant 0 : index
    %c0_177 = arith.constant 0 : index
    %358 = vector.load %arg7[%c0_176, %c0_177] : memref<2x32xf32, #tpu.memory_space<vmem>>, vector<2x32xf32>
    tpu.vector_store %arg7[%c0_176, %c0_177], %328 {strides = array<i32>} : memref<2x32xf32, #tpu.memory_space<vmem>>, vector<2x32xf32>,
    %c0_178 = arith.constant 0 : index
    %c0_179 = arith.constant 0 : index
    %359 = vector.load %arg8[%c0_178, %c0_179] : memref<2x32xf32, #tpu.memory_space<vmem>>, vector<2x32xf32>
    tpu.vector_store %arg8[%c0_178, %c0_179], %356 {strides = array<i32>} : memref<2x32xf32, #tpu.memory_space<vmem>>, vector<2x32xf32>,
    %c0_180 = arith.constant 0 : index
    %c0_181 = arith.constant 0 : index
    %360 = vector.load %arg9[%c0_180, %c0_181] : memref<2x32xf32, #tpu.memory_space<vmem>>, vector<2x32xf32>
    tpu.vector_store %arg9[%c0_180, %c0_181], %354 {strides = array<i32>} : memref<2x32xf32, #tpu.memory_space<vmem>>, vector<2x32xf32>,
    %c4_182 = arith.constant 4 : index
    %c0_183 = arith.constant 0 : index
    %c0_184 = arith.constant 0 : index
    %361 = vector.load %arg4[%c4_182, %c0_183, %c0_184] : memref<8x2x32xf32, #tpu.memory_space<vmem>>, vector<1x2x32xf32>
    %362 = vector.shape_cast %361 : vector<1x2x32xf32> to vector<2x32xf32>
    %363 = vector.shape_cast %330 : vector<2x32xf32> to vector<1x2x32xf32>
    tpu.vector_store %arg4[%c4_182, %c0_183, %c0_184], %363 {strides = array<i32>} : memref<8x2x32xf32, #tpu.memory_space<vmem>>, vector<1x2x32xf32>,
    %c3_185 = arith.constant 3 : index
    %c0_186 = arith.constant 0 : index
    %c0_187 = arith.constant 0 : index
    %364 = vector.load %arg5[%c3_185, %c0_186, %c0_187] : memref<8x2x32xf32, #tpu.memory_space<vmem>>, vector<1x2x32xf32>
    %365 = vector.shape_cast %364 : vector<1x2x32xf32> to vector<2x32xf32>
    %366 = vector.shape_cast %356 : vector<2x32xf32> to vector<1x2x32xf32>
    tpu.vector_store %arg5[%c3_185, %c0_186, %c0_187], %366 {strides = array<i32>} : memref<8x2x32xf32, #tpu.memory_space<vmem>>, vector<1x2x32xf32>,
    %c0_188 = arith.constant 0 : index
    %c5_189 = arith.constant 5 : index
    %c0_190 = arith.constant 0 : index
    %c0_191 = arith.constant 0 : index
    %367 = vector.load %arg1[%c0_188, %c5_189, %c0_190, %c0_191] : memref<1x8x2x128xf32, #tpu.memory_space<vmem>>, vector<1x1x2x128xf32>
    %368 = vector.shape_cast %367 : vector<1x1x2x128xf32> to vector<2x128xf32>
    %c0_192 = arith.constant 0 : index
    %c0_193 = arith.constant 0 : index
    %369 = vector.load %arg6[%c0_192, %c0_193] : memref<2x32xf32, #tpu.memory_space<vmem>>, vector<2x32xf32>
    %cst_194 = arith.constant dense<0.000000e+00> : vector<2x128xf32>
    %370 = tpu.matmul %369, %4, %cst_194 {dimension_numbers = #tpu.dot_dimension_numbers<[1], [0], [0], [1], [0, 0, 1, 1], [], []>} : vector<2x32xf32>, vector<32x128xf32>, vector<2x128xf32> -> vector<2x128xf32>
    %371 = arith.addf %368, %370 : vector<2x128xf32>
    %c0_195 = arith.constant 0 : index
    %c2_196 = arith.constant 2 : index
    %c0_197 = arith.constant 0 : index
    %c0_198 = arith.constant 0 : index
    %372 = vector.load %arg2[%c0_195, %c2_196, %c0_197, %c0_198] : memref<1x8x2x128xf32, #tpu.memory_space<vmem>>, vector<1x1x2x128xf32>
    %373 = vector.shape_cast %372 : vector<1x1x2x128xf32> to vector<2x128xf32>
    %c0_199 = arith.constant 0 : index
    %c0_200 = arith.constant 0 : index
    %374 = vector.load %arg8[%c0_199, %c0_200] : memref<2x32xf32, #tpu.memory_space<vmem>>, vector<2x32xf32>
    %cst_201 = arith.constant dense<0.000000e+00> : vector<2x128xf32>
    %375 = tpu.matmul %374, %6, %cst_201 {dimension_numbers = #tpu.dot_dimension_numbers<[1], [0], [0], [1], [0, 0, 1, 1], [], []>} : vector<2x32xf32>, vector<32x128xf32>, vector<2x128xf32> -> vector<2x128xf32>
    %376 = arith.addf %373, %375 : vector<2x128xf32>
    %c0_202 = arith.constant 0 : index
    %c0_203 = arith.constant 0 : index
    %377 = vector.load %arg7[%c0_202, %c0_203] : memref<2x32xf32, #tpu.memory_space<vmem>>, vector<2x32xf32>
    %378 = vector.extract_strided_slice %371 {offsets = [0, 0], sizes = [2, 32], strides = [1, 1]} : vector<2x128xf32> to vector<2x32xf32>
    %379 = arith.negf %378 : vector<2x32xf32>
    %380 = math.exp %379 : vector<2x32xf32>
    %cst_204 = arith.constant 1.000000e+00 : f32
    %381 = vector.broadcast %cst_204 : f32 to vector<2x32xf32>
    %382 = arith.addf %381, %380 : vector<2x32xf32>
    %383 = arith.divf %381, %382 : vector<2x32xf32>
    %384 = vector.extract_strided_slice %371 {offsets = [0, 32], sizes = [2, 32], strides = [1, 1]} : vector<2x128xf32> to vector<2x32xf32>
    %385 = arith.negf %384 : vector<2x32xf32>
    %386 = math.exp %385 : vector<2x32xf32>
    %cst_205 = arith.constant 1.000000e+00 : f32
    %387 = vector.broadcast %cst_205 : f32 to vector<2x32xf32>
    %388 = arith.addf %387, %386 : vector<2x32xf32>
    %389 = arith.divf %387, %388 : vector<2x32xf32>
    %390 = vector.extract_strided_slice %371 {offsets = [0, 64], sizes = [2, 32], strides = [1, 1]} : vector<2x128xf32> to vector<2x32xf32>
    %391 = math.tanh %390 : vector<2x32xf32>
    %392 = vector.extract_strided_slice %371 {offsets = [0, 96], sizes = [2, 32], strides = [1, 1]} : vector<2x128xf32> to vector<2x32xf32>
    %393 = arith.negf %392 : vector<2x32xf32>
    %394 = math.exp %393 : vector<2x32xf32>
    %cst_206 = arith.constant 1.000000e+00 : f32
    %395 = vector.broadcast %cst_206 : f32 to vector<2x32xf32>
    %396 = arith.addf %395, %394 : vector<2x32xf32>
    %397 = arith.divf %395, %396 : vector<2x32xf32>
    %398 = arith.mulf %389, %377 : vector<2x32xf32>
    %399 = arith.mulf %383, %391 : vector<2x32xf32>
    %400 = arith.addf %398, %399 : vector<2x32xf32>
    %401 = math.tanh %400 : vector<2x32xf32>
    %402 = arith.mulf %397, %401 : vector<2x32xf32>
    %c0_207 = arith.constant 0 : index
    %c0_208 = arith.constant 0 : index
    %403 = vector.load %arg9[%c0_207, %c0_208] : memref<2x32xf32, #tpu.memory_space<vmem>>, vector<2x32xf32>
    %404 = vector.extract_strided_slice %376 {offsets = [0, 0], sizes = [2, 32], strides = [1, 1]} : vector<2x128xf32> to vector<2x32xf32>
    %405 = arith.negf %404 : vector<2x32xf32>
    %406 = math.exp %405 : vector<2x32xf32>
    %cst_209 = arith.constant 1.000000e+00 : f32
    %407 = vector.broadcast %cst_209 : f32 to vector<2x32xf32>
    %408 = arith.addf %407, %406 : vector<2x32xf32>
    %409 = arith.divf %407, %408 : vector<2x32xf32>
    %410 = vector.extract_strided_slice %376 {offsets = [0, 32], sizes = [2, 32], strides = [1, 1]} : vector<2x128xf32> to vector<2x32xf32>
    %411 = arith.negf %410 : vector<2x32xf32>
    %412 = math.exp %411 : vector<2x32xf32>
    %cst_210 = arith.constant 1.000000e+00 : f32
    %413 = vector.broadcast %cst_210 : f32 to vector<2x32xf32>
    %414 = arith.addf %413, %412 : vector<2x32xf32>
    %415 = arith.divf %413, %414 : vector<2x32xf32>
    %416 = vector.extract_strided_slice %376 {offsets = [0, 64], sizes = [2, 32], strides = [1, 1]} : vector<2x128xf32> to vector<2x32xf32>
    %417 = math.tanh %416 : vector<2x32xf32>
    %418 = vector.extract_strided_slice %376 {offsets = [0, 96], sizes = [2, 32], strides = [1, 1]} : vector<2x128xf32> to vector<2x32xf32>
    %419 = arith.negf %418 : vector<2x32xf32>
    %420 = math.exp %419 : vector<2x32xf32>
    %cst_211 = arith.constant 1.000000e+00 : f32
    %421 = vector.broadcast %cst_211 : f32 to vector<2x32xf32>
    %422 = arith.addf %421, %420 : vector<2x32xf32>
    %423 = arith.divf %421, %422 : vector<2x32xf32>
    %424 = arith.mulf %415, %403 : vector<2x32xf32>
    %425 = arith.mulf %409, %417 : vector<2x32xf32>
    %426 = arith.addf %424, %425 : vector<2x32xf32>
    %427 = math.tanh %426 : vector<2x32xf32>
    %428 = arith.mulf %423, %427 : vector<2x32xf32>
    %c0_212 = arith.constant 0 : index
    %c0_213 = arith.constant 0 : index
    %429 = vector.load %arg6[%c0_212, %c0_213] : memref<2x32xf32, #tpu.memory_space<vmem>>, vector<2x32xf32>
    tpu.vector_store %arg6[%c0_212, %c0_213], %402 {strides = array<i32>} : memref<2x32xf32, #tpu.memory_space<vmem>>, vector<2x32xf32>,
    %c0_214 = arith.constant 0 : index
    %c0_215 = arith.constant 0 : index
    %430 = vector.load %arg7[%c0_214, %c0_215] : memref<2x32xf32, #tpu.memory_space<vmem>>, vector<2x32xf32>
    tpu.vector_store %arg7[%c0_214, %c0_215], %400 {strides = array<i32>} : memref<2x32xf32, #tpu.memory_space<vmem>>, vector<2x32xf32>,
    %c0_216 = arith.constant 0 : index
    %c0_217 = arith.constant 0 : index
    %431 = vector.load %arg8[%c0_216, %c0_217] : memref<2x32xf32, #tpu.memory_space<vmem>>, vector<2x32xf32>
    tpu.vector_store %arg8[%c0_216, %c0_217], %428 {strides = array<i32>} : memref<2x32xf32, #tpu.memory_space<vmem>>, vector<2x32xf32>,
    %c0_218 = arith.constant 0 : index
    %c0_219 = arith.constant 0 : index
    %432 = vector.load %arg9[%c0_218, %c0_219] : memref<2x32xf32, #tpu.memory_space<vmem>>, vector<2x32xf32>
    tpu.vector_store %arg9[%c0_218, %c0_219], %426 {strides = array<i32>} : memref<2x32xf32, #tpu.memory_space<vmem>>, vector<2x32xf32>,
    %c5_220 = arith.constant 5 : index
    %c0_221 = arith.constant 0 : index
    %c0_222 = arith.constant 0 : index
    %433 = vector.load %arg4[%c5_220, %c0_221, %c0_222] : memref<8x2x32xf32, #tpu.memory_space<vmem>>, vector<1x2x32xf32>
    %434 = vector.shape_cast %433 : vector<1x2x32xf32> to vector<2x32xf32>
    %435 = vector.shape_cast %402 : vector<2x32xf32> to vector<1x2x32xf32>
    tpu.vector_store %arg4[%c5_220, %c0_221, %c0_222], %435 {strides = array<i32>} : memref<8x2x32xf32, #tpu.memory_space<vmem>>, vector<1x2x32xf32>,
    %c2_223 = arith.constant 2 : index
    %c0_224 = arith.constant 0 : index
    %c0_225 = arith.constant 0 : index
    %436 = vector.load %arg5[%c2_223, %c0_224, %c0_225] : memref<8x2x32xf32, #tpu.memory_space<vmem>>, vector<1x2x32xf32>
    %437 = vector.shape_cast %436 : vector<1x2x32xf32> to vector<2x32xf32>
    %438 = vector.shape_cast %428 : vector<2x32xf32> to vector<1x2x32xf32>
    tpu.vector_store %arg5[%c2_223, %c0_224, %c0_225], %438 {strides = array<i32>} : memref<8x2x32xf32, #tpu.memory_space<vmem>>, vector<1x2x32xf32>,
    %c0_226 = arith.constant 0 : index
    %c6_227 = arith.constant 6 : index
    %c0_228 = arith.constant 0 : index
    %c0_229 = arith.constant 0 : index
    %439 = vector.load %arg1[%c0_226, %c6_227, %c0_228, %c0_229] : memref<1x8x2x128xf32, #tpu.memory_space<vmem>>, vector<1x1x2x128xf32>
    %440 = vector.shape_cast %439 : vector<1x1x2x128xf32> to vector<2x128xf32>
    %c0_230 = arith.constant 0 : index
    %c0_231 = arith.constant 0 : index
    %441 = vector.load %arg6[%c0_230, %c0_231] : memref<2x32xf32, #tpu.memory_space<vmem>>, vector<2x32xf32>
    %cst_232 = arith.constant dense<0.000000e+00> : vector<2x128xf32>
    %442 = tpu.matmul %441, %4, %cst_232 {dimension_numbers = #tpu.dot_dimension_numbers<[1], [0], [0], [1], [0, 0, 1, 1], [], []>} : vector<2x32xf32>, vector<32x128xf32>, vector<2x128xf32> -> vector<2x128xf32>
    %443 = arith.addf %440, %442 : vector<2x128xf32>
    %c0_233 = arith.constant 0 : index
    %c1_234 = arith.constant 1 : index
    %c0_235 = arith.constant 0 : index
    %c0_236 = arith.constant 0 : index
    %444 = vector.load %arg2[%c0_233, %c1_234, %c0_235, %c0_236] : memref<1x8x2x128xf32, #tpu.memory_space<vmem>>, vector<1x1x2x128xf32>
    %445 = vector.shape_cast %444 : vector<1x1x2x128xf32> to vector<2x128xf32>
    %c0_237 = arith.constant 0 : index
    %c0_238 = arith.constant 0 : index
    %446 = vector.load %arg8[%c0_237, %c0_238] : memref<2x32xf32, #tpu.memory_space<vmem>>, vector<2x32xf32>
    %cst_239 = arith.constant dense<0.000000e+00> : vector<2x128xf32>
    %447 = tpu.matmul %446, %6, %cst_239 {dimension_numbers = #tpu.dot_dimension_numbers<[1], [0], [0], [1], [0, 0, 1, 1], [], []>} : vector<2x32xf32>, vector<32x128xf32>, vector<2x128xf32> -> vector<2x128xf32>
    %448 = arith.addf %445, %447 : vector<2x128xf32>
    %c0_240 = arith.constant 0 : index
    %c0_241 = arith.constant 0 : index
    %449 = vector.load %arg7[%c0_240, %c0_241] : memref<2x32xf32, #tpu.memory_space<vmem>>, vector<2x32xf32>
    %450 = vector.extract_strided_slice %443 {offsets = [0, 0], sizes = [2, 32], strides = [1, 1]} : vector<2x128xf32> to vector<2x32xf32>
    %451 = arith.negf %450 : vector<2x32xf32>
    %452 = math.exp %451 : vector<2x32xf32>
    %cst_242 = arith.constant 1.000000e+00 : f32
    %453 = vector.broadcast %cst_242 : f32 to vector<2x32xf32>
    %454 = arith.addf %453, %452 : vector<2x32xf32>
    %455 = arith.divf %453, %454 : vector<2x32xf32>
    %456 = vector.extract_strided_slice %443 {offsets = [0, 32], sizes = [2, 32], strides = [1, 1]} : vector<2x128xf32> to vector<2x32xf32>
    %457 = arith.negf %456 : vector<2x32xf32>
    %458 = math.exp %457 : vector<2x32xf32>
    %cst_243 = arith.constant 1.000000e+00 : f32
    %459 = vector.broadcast %cst_243 : f32 to vector<2x32xf32>
    %460 = arith.addf %459, %458 : vector<2x32xf32>
    %461 = arith.divf %459, %460 : vector<2x32xf32>
    %462 = vector.extract_strided_slice %443 {offsets = [0, 64], sizes = [2, 32], strides = [1, 1]} : vector<2x128xf32> to vector<2x32xf32>
    %463 = math.tanh %462 : vector<2x32xf32>
    %464 = vector.extract_strided_slice %443 {offsets = [0, 96], sizes = [2, 32], strides = [1, 1]} : vector<2x128xf32> to vector<2x32xf32>
    %465 = arith.negf %464 : vector<2x32xf32>
    %466 = math.exp %465 : vector<2x32xf32>
    %cst_244 = arith.constant 1.000000e+00 : f32
    %467 = vector.broadcast %cst_244 : f32 to vector<2x32xf32>
    %468 = arith.addf %467, %466 : vector<2x32xf32>
    %469 = arith.divf %467, %468 : vector<2x32xf32>
    %470 = arith.mulf %461, %449 : vector<2x32xf32>
    %471 = arith.mulf %455, %463 : vector<2x32xf32>
    %472 = arith.addf %470, %471 : vector<2x32xf32>
    %473 = math.tanh %472 : vector<2x32xf32>
    %474 = arith.mulf %469, %473 : vector<2x32xf32>
    %c0_245 = arith.constant 0 : index
    %c0_246 = arith.constant 0 : index
    %475 = vector.load %arg9[%c0_245, %c0_246] : memref<2x32xf32, #tpu.memory_space<vmem>>, vector<2x32xf32>
    %476 = vector.extract_strided_slice %448 {offsets = [0, 0], sizes = [2, 32], strides = [1, 1]} : vector<2x128xf32> to vector<2x32xf32>
    %477 = arith.negf %476 : vector<2x32xf32>
    %478 = math.exp %477 : vector<2x32xf32>
    %cst_247 = arith.constant 1.000000e+00 : f32
    %479 = vector.broadcast %cst_247 : f32 to vector<2x32xf32>
    %480 = arith.addf %479, %478 : vector<2x32xf32>
    %481 = arith.divf %479, %480 : vector<2x32xf32>
    %482 = vector.extract_strided_slice %448 {offsets = [0, 32], sizes = [2, 32], strides = [1, 1]} : vector<2x128xf32> to vector<2x32xf32>
    %483 = arith.negf %482 : vector<2x32xf32>
    %484 = math.exp %483 : vector<2x32xf32>
    %cst_248 = arith.constant 1.000000e+00 : f32
    %485 = vector.broadcast %cst_248 : f32 to vector<2x32xf32>
    %486 = arith.addf %485, %484 : vector<2x32xf32>
    %487 = arith.divf %485, %486 : vector<2x32xf32>
    %488 = vector.extract_strided_slice %448 {offsets = [0, 64], sizes = [2, 32], strides = [1, 1]} : vector<2x128xf32> to vector<2x32xf32>
    %489 = math.tanh %488 : vector<2x32xf32>
    %490 = vector.extract_strided_slice %448 {offsets = [0, 96], sizes = [2, 32], strides = [1, 1]} : vector<2x128xf32> to vector<2x32xf32>
    %491 = arith.negf %490 : vector<2x32xf32>
    %492 = math.exp %491 : vector<2x32xf32>
    %cst_249 = arith.constant 1.000000e+00 : f32
    %493 = vector.broadcast %cst_249 : f32 to vector<2x32xf32>
    %494 = arith.addf %493, %492 : vector<2x32xf32>
    %495 = arith.divf %493, %494 : vector<2x32xf32>
    %496 = arith.mulf %487, %475 : vector<2x32xf32>
    %497 = arith.mulf %481, %489 : vector<2x32xf32>
    %498 = arith.addf %496, %497 : vector<2x32xf32>
    %499 = math.tanh %498 : vector<2x32xf32>
    %500 = arith.mulf %495, %499 : vector<2x32xf32>
    %c0_250 = arith.constant 0 : index
    %c0_251 = arith.constant 0 : index
    %501 = vector.load %arg6[%c0_250, %c0_251] : memref<2x32xf32, #tpu.memory_space<vmem>>, vector<2x32xf32>
    tpu.vector_store %arg6[%c0_250, %c0_251], %474 {strides = array<i32>} : memref<2x32xf32, #tpu.memory_space<vmem>>, vector<2x32xf32>,
    %c0_252 = arith.constant 0 : index
    %c0_253 = arith.constant 0 : index
    %502 = vector.load %arg7[%c0_252, %c0_253] : memref<2x32xf32, #tpu.memory_space<vmem>>, vector<2x32xf32>
    tpu.vector_store %arg7[%c0_252, %c0_253], %472 {strides = array<i32>} : memref<2x32xf32, #tpu.memory_space<vmem>>, vector<2x32xf32>,
    %c0_254 = arith.constant 0 : index
    %c0_255 = arith.constant 0 : index
    %503 = vector.load %arg8[%c0_254, %c0_255] : memref<2x32xf32, #tpu.memory_space<vmem>>, vector<2x32xf32>
    tpu.vector_store %arg8[%c0_254, %c0_255], %500 {strides = array<i32>} : memref<2x32xf32, #tpu.memory_space<vmem>>, vector<2x32xf32>,
    %c0_256 = arith.constant 0 : index
    %c0_257 = arith.constant 0 : index
    %504 = vector.load %arg9[%c0_256, %c0_257] : memref<2x32xf32, #tpu.memory_space<vmem>>, vector<2x32xf32>
    tpu.vector_store %arg9[%c0_256, %c0_257], %498 {strides = array<i32>} : memref<2x32xf32, #tpu.memory_space<vmem>>, vector<2x32xf32>,
    %c6_258 = arith.constant 6 : index
    %c0_259 = arith.constant 0 : index
    %c0_260 = arith.constant 0 : index
    %505 = vector.load %arg4[%c6_258, %c0_259, %c0_260] : memref<8x2x32xf32, #tpu.memory_space<vmem>>, vector<1x2x32xf32>
    %506 = vector.shape_cast %505 : vector<1x2x32xf32> to vector<2x32xf32>
    %507 = vector.shape_cast %474 : vector<2x32xf32> to vector<1x2x32xf32>
    tpu.vector_store %arg4[%c6_258, %c0_259, %c0_260], %507 {strides = array<i32>} : memref<8x2x32xf32, #tpu.memory_space<vmem>>, vector<1x2x32xf32>,
    %c1_261 = arith.constant 1 : index
    %c0_262 = arith.constant 0 : index
    %c0_263 = arith.constant 0 : index
    %508 = vector.load %arg5[%c1_261, %c0_262, %c0_263] : memref<8x2x32xf32, #tpu.memory_space<vmem>>, vector<1x2x32xf32>
    %509 = vector.shape_cast %508 : vector<1x2x32xf32> to vector<2x32xf32>
    %510 = vector.shape_cast %500 : vector<2x32xf32> to vector<1x2x32xf32>
    tpu.vector_store %arg5[%c1_261, %c0_262, %c0_263], %510 {strides = array<i32>} : memref<8x2x32xf32, #tpu.memory_space<vmem>>, vector<1x2x32xf32>,
    %c0_264 = arith.constant 0 : index
    %c7_265 = arith.constant 7 : index
    %c0_266 = arith.constant 0 : index
    %c0_267 = arith.constant 0 : index
    %511 = vector.load %arg1[%c0_264, %c7_265, %c0_266, %c0_267] : memref<1x8x2x128xf32, #tpu.memory_space<vmem>>, vector<1x1x2x128xf32>
    %512 = vector.shape_cast %511 : vector<1x1x2x128xf32> to vector<2x128xf32>
    %c0_268 = arith.constant 0 : index
    %c0_269 = arith.constant 0 : index
    %513 = vector.load %arg6[%c0_268, %c0_269] : memref<2x32xf32, #tpu.memory_space<vmem>>, vector<2x32xf32>
    %cst_270 = arith.constant dense<0.000000e+00> : vector<2x128xf32>
    %514 = tpu.matmul %513, %4, %cst_270 {dimension_numbers = #tpu.dot_dimension_numbers<[1], [0], [0], [1], [0, 0, 1, 1], [], []>} : vector<2x32xf32>, vector<32x128xf32>, vector<2x128xf32> -> vector<2x128xf32>
    %515 = arith.addf %512, %514 : vector<2x128xf32>
    %c0_271 = arith.constant 0 : index
    %c0_272 = arith.constant 0 : index
    %c0_273 = arith.constant 0 : index
    %c0_274 = arith.constant 0 : index
    %516 = vector.load %arg2[%c0_271, %c0_272, %c0_273, %c0_274] : memref<1x8x2x128xf32, #tpu.memory_space<vmem>>, vector<1x1x2x128xf32>
    %517 = vector.shape_cast %516 : vector<1x1x2x128xf32> to vector<2x128xf32>
    %c0_275 = arith.constant 0 : index
    %c0_276 = arith.constant 0 : index
    %518 = vector.load %arg8[%c0_275, %c0_276] : memref<2x32xf32, #tpu.memory_space<vmem>>, vector<2x32xf32>
    %cst_277 = arith.constant dense<0.000000e+00> : vector<2x128xf32>
    %519 = tpu.matmul %518, %6, %cst_277 {dimension_numbers = #tpu.dot_dimension_numbers<[1], [0], [0], [1], [0, 0, 1, 1], [], []>} : vector<2x32xf32>, vector<32x128xf32>, vector<2x128xf32> -> vector<2x128xf32>
    %520 = arith.addf %517, %519 : vector<2x128xf32>
    %c0_278 = arith.constant 0 : index
    %c0_279 = arith.constant 0 : index
    %521 = vector.load %arg7[%c0_278, %c0_279] : memref<2x32xf32, #tpu.memory_space<vmem>>, vector<2x32xf32>
    %522 = vector.extract_strided_slice %515 {offsets = [0, 0], sizes = [2, 32], strides = [1, 1]} : vector<2x128xf32> to vector<2x32xf32>
    %523 = arith.negf %522 : vector<2x32xf32>
    %524 = math.exp %523 : vector<2x32xf32>
    %cst_280 = arith.constant 1.000000e+00 : f32
    %525 = vector.broadcast %cst_280 : f32 to vector<2x32xf32>
    %526 = arith.addf %525, %524 : vector<2x32xf32>
    %527 = arith.divf %525, %526 : vector<2x32xf32>
    %528 = vector.extract_strided_slice %515 {offsets = [0, 32], sizes = [2, 32], strides = [1, 1]} : vector<2x128xf32> to vector<2x32xf32>
    %529 = arith.negf %528 : vector<2x32xf32>
    %530 = math.exp %529 : vector<2x32xf32>
    %cst_281 = arith.constant 1.000000e+00 : f32
    %531 = vector.broadcast %cst_281 : f32 to vector<2x32xf32>
    %532 = arith.addf %531, %530 : vector<2x32xf32>
    %533 = arith.divf %531, %532 : vector<2x32xf32>
    %534 = vector.extract_strided_slice %515 {offsets = [0, 64], sizes = [2, 32], strides = [1, 1]} : vector<2x128xf32> to vector<2x32xf32>
    %535 = math.tanh %534 : vector<2x32xf32>
    %536 = vector.extract_strided_slice %515 {offsets = [0, 96], sizes = [2, 32], strides = [1, 1]} : vector<2x128xf32> to vector<2x32xf32>
    %537 = arith.negf %536 : vector<2x32xf32>
    %538 = math.exp %537 : vector<2x32xf32>
    %cst_282 = arith.constant 1.000000e+00 : f32
    %539 = vector.broadcast %cst_282 : f32 to vector<2x32xf32>
    %540 = arith.addf %539, %538 : vector<2x32xf32>
    %541 = arith.divf %539, %540 : vector<2x32xf32>
    %542 = arith.mulf %533, %521 : vector<2x32xf32>
    %543 = arith.mulf %527, %535 : vector<2x32xf32>
    %544 = arith.addf %542, %543 : vector<2x32xf32>
    %545 = math.tanh %544 : vector<2x32xf32>
    %546 = arith.mulf %541, %545 : vector<2x32xf32>
    %c0_283 = arith.constant 0 : index
    %c0_284 = arith.constant 0 : index
    %547 = vector.load %arg9[%c0_283, %c0_284] : memref<2x32xf32, #tpu.memory_space<vmem>>, vector<2x32xf32>
    %548 = vector.extract_strided_slice %520 {offsets = [0, 0], sizes = [2, 32], strides = [1, 1]} : vector<2x128xf32> to vector<2x32xf32>
    %549 = arith.negf %548 : vector<2x32xf32>
    %550 = math.exp %549 : vector<2x32xf32>
    %cst_285 = arith.constant 1.000000e+00 : f32
    %551 = vector.broadcast %cst_285 : f32 to vector<2x32xf32>
    %552 = arith.addf %551, %550 : vector<2x32xf32>
    %553 = arith.divf %551, %552 : vector<2x32xf32>
    %554 = vector.extract_strided_slice %520 {offsets = [0, 32], sizes = [2, 32], strides = [1, 1]} : vector<2x128xf32> to vector<2x32xf32>
    %555 = arith.negf %554 : vector<2x32xf32>
    %556 = math.exp %555 : vector<2x32xf32>
    %cst_286 = arith.constant 1.000000e+00 : f32
    %557 = vector.broadcast %cst_286 : f32 to vector<2x32xf32>
    %558 = arith.addf %557, %556 : vector<2x32xf32>
    %559 = arith.divf %557, %558 : vector<2x32xf32>
    %560 = vector.extract_strided_slice %520 {offsets = [0, 64], sizes = [2, 32], strides = [1, 1]} : vector<2x128xf32> to vector<2x32xf32>
    %561 = math.tanh %560 : vector<2x32xf32>
    %562 = vector.extract_strided_slice %520 {offsets = [0, 96], sizes = [2, 32], strides = [1, 1]} : vector<2x128xf32> to vector<2x32xf32>
    %563 = arith.negf %562 : vector<2x32xf32>
    %564 = math.exp %563 : vector<2x32xf32>
    %cst_287 = arith.constant 1.000000e+00 : f32
    %565 = vector.broadcast %cst_287 : f32 to vector<2x32xf32>
    %566 = arith.addf %565, %564 : vector<2x32xf32>
    %567 = arith.divf %565, %566 : vector<2x32xf32>
    %568 = arith.mulf %559, %547 : vector<2x32xf32>
    %569 = arith.mulf %553, %561 : vector<2x32xf32>
    %570 = arith.addf %568, %569 : vector<2x32xf32>
    %571 = math.tanh %570 : vector<2x32xf32>
    %572 = arith.mulf %567, %571 : vector<2x32xf32>
    %c0_288 = arith.constant 0 : index
    %c0_289 = arith.constant 0 : index
    %573 = vector.load %arg6[%c0_288, %c0_289] : memref<2x32xf32, #tpu.memory_space<vmem>>, vector<2x32xf32>
    tpu.vector_store %arg6[%c0_288, %c0_289], %546 {strides = array<i32>} : memref<2x32xf32, #tpu.memory_space<vmem>>, vector<2x32xf32>,
    %c0_290 = arith.constant 0 : index
    %c0_291 = arith.constant 0 : index
    %574 = vector.load %arg7[%c0_290, %c0_291] : memref<2x32xf32, #tpu.memory_space<vmem>>, vector<2x32xf32>
    tpu.vector_store %arg7[%c0_290, %c0_291], %544 {strides = array<i32>} : memref<2x32xf32, #tpu.memory_space<vmem>>, vector<2x32xf32>,
    %c0_292 = arith.constant 0 : index
    %c0_293 = arith.constant 0 : index
    %575 = vector.load %arg8[%c0_292, %c0_293] : memref<2x32xf32, #tpu.memory_space<vmem>>, vector<2x32xf32>
    tpu.vector_store %arg8[%c0_292, %c0_293], %572 {strides = array<i32>} : memref<2x32xf32, #tpu.memory_space<vmem>>, vector<2x32xf32>,
    %c0_294 = arith.constant 0 : index
    %c0_295 = arith.constant 0 : index
    %576 = vector.load %arg9[%c0_294, %c0_295] : memref<2x32xf32, #tpu.memory_space<vmem>>, vector<2x32xf32>
    tpu.vector_store %arg9[%c0_294, %c0_295], %570 {strides = array<i32>} : memref<2x32xf32, #tpu.memory_space<vmem>>, vector<2x32xf32>,
    %c7_296 = arith.constant 7 : index
    %c0_297 = arith.constant 0 : index
    %c0_298 = arith.constant 0 : index
    %577 = vector.load %arg4[%c7_296, %c0_297, %c0_298] : memref<8x2x32xf32, #tpu.memory_space<vmem>>, vector<1x2x32xf32>
    %578 = vector.shape_cast %577 : vector<1x2x32xf32> to vector<2x32xf32>
    %579 = vector.shape_cast %546 : vector<2x32xf32> to vector<1x2x32xf32>
    tpu.vector_store %arg4[%c7_296, %c0_297, %c0_298], %579 {strides = array<i32>} : memref<8x2x32xf32, #tpu.memory_space<vmem>>, vector<1x2x32xf32>,
    %c0_299 = arith.constant 0 : index
    %c0_300 = arith.constant 0 : index
    %c0_301 = arith.constant 0 : index
    %580 = vector.load %arg5[%c0_299, %c0_300, %c0_301] : memref<8x2x32xf32, #tpu.memory_space<vmem>>, vector<1x2x32xf32>
    %581 = vector.shape_cast %580 : vector<1x2x32xf32> to vector<2x32xf32>
    %582 = vector.shape_cast %572 : vector<2x32xf32> to vector<1x2x32xf32>
    tpu.vector_store %arg5[%c0_299, %c0_300, %c0_301], %582 {strides = array<i32>} : memref<8x2x32xf32, #tpu.memory_space<vmem>>, vector<1x2x32xf32>,
    return
  }
  func.func @transform_0(%arg0: i32) -> (i32, i32, i32, i32) {
    %c0_i32 = arith.constant 0 : i32
    %c0_i32_0 = arith.constant 0 : i32
    %c0_i32_1 = arith.constant 0 : i32
    %c0_i32_2 = arith.constant 0 : i32
    return %c0_i32, %arg0, %c0_i32_0, %c0_i32_1 : i32, i32, i32, i32
  }
  func.func @transform_1(%arg0: i32) -> (i32, i32, i32, i32) {
    %c0_i32 = arith.constant 0 : i32
    %0 = arith.subi %c0_i32, %arg0 : i32
    %c1_i32 = arith.constant 1 : i32
    %c0_i32_0 = arith.constant 0 : i32
    %c0_i32_1 = arith.constant 0 : i32
    %c0_i32_2 = arith.constant 0 : i32
    return %c1_i32, %0, %c0_i32_0, %c0_i32_1 : i32, i32, i32, i32
  }
  func.func @transform_2(%arg0: i32) -> (i32, i32, i32) {
    %c0_i32 = arith.constant 0 : i32
    %c0_i32_0 = arith.constant 0 : i32
    %c0_i32_1 = arith.constant 0 : i32
    %c0_i32_2 = arith.constant 0 : i32
    return %c0_i32, %c0_i32_0, %c0_i32_1 : i32, i32, i32
  }
  func.func @transform_3(%arg0: i32) -> (i32, i32, i32) {
    %c0_i32 = arith.constant 0 : i32
    %c0_i32_0 = arith.constant 0 : i32
    %c0_i32_1 = arith.constant 0 : i32
    return %arg0, %c0_i32, %c0_i32_0 : i32, i32, i32
  }
  func.func @transform_4(%arg0: i32) -> (i32, i32, i32) {
    %c0_i32 = arith.constant 0 : i32
    %0 = arith.subi %c0_i32, %arg0 : i32
    %c0_i32_0 = arith.constant 0 : i32
    %c0_i32_1 = arith.constant 0 : i32
    %c0_i32_2 = arith.constant 0 : i32
    return %0, %c0_i32_0, %c0_i32_1 : i32, i32, i32
  }
}

</mosaic_0001>

<llo_original>
// kernel: a_call__.7
$region0: #{a_call__.7}
  #allocation0 [shape = 'u32[]', space=smem, size = 0x4, offset = 0x4, fixed_abs, tag = 'smem constant byte address 0x4 - core index']
  #allocation1 [shape = 'u32[72,128]{1,0:T(1,128)}', space=vmem, size = 0x9000, scoped, tag = 'internal scratch']
  %s0 = inlined_call_operand.vmem [shape: f32[16,32], index: 0, kind: input, shape index: {}]
  %s1 = inlined_call_operand.vmem [shape: f32[16,32], index: 1, kind: input, shape index: {}]
  %s2 = inlined_call_operand.hbm [shape: f32[2,32,128], index: 2, kind: input, shape index: {}]
  %s3 = inlined_call_operand.hbm [shape: f32[2,32,128], index: 3, kind: input, shape index: {}]
  %s4 = inlined_call_operand.vmem [shape: f32[2,1,128], index: 4, kind: input, shape index: {}]
  %s5 = inlined_call_operand.vmem [shape: f32[2,16,128], index: 5, kind: output, shape index: {}]
  %s6 = sld [smem:[#allocation0]]
  $region61: #{a_call__.7} parent=0
    _
  %s8 = ssub.s32 1, %s6
  %s9 = scalar_select 0, %s8, %s6
  $region1: #{a_call__.7} parent=0
    #allocation2 [shape = 'u8[32768]{0}', space=vmem, size = 0x8000, scoped, tag = 'input window, operand 2']
    #allocation3 [shape = 's32[2]{0}', space=sflag, size = 0x8, scoped, tag = 'scoped memory for a_call__.7']
    #allocation4 [shape = 'u8[32768]{0}', space=vmem, size = 0x8000, scoped, tag = 'input window, operand 3']
    #allocation5 [shape = 's32[2]{0}', space=sflag, size = 0x8, scoped, tag = 'scoped memory for a_call__.7']
    %10 = vsyncpa [#allocation3], 0
    %s11 = scalar_lea.sflag [#allocation3], 1
    %12 = vsyncpa %s11, 0
    %13 = vsyncpa [#allocation5], 0
    %s14 = scalar_lea.sflag [#allocation5], 1
    %15 = vsyncpa %s14, 0
    loop: start=0, step=1, limit=4
    $region2: #{a_call__.7} parent=1 // loop_pre_header
      _
    $region3: #{a_call__.7} parent=1 // loop_header
      %s17 = sphi 0, %s21
      %p18 = scmp.ge.s32.totalorder %s17, 4
      %s24 = sphi 0, %s36
      %s25 = sphi 0, %s32
      %s26 = sphi 0, %s24
      %s27 = sphi 0, %s25
      %s28 = sphi 0, %s26
      %s29 = sphi 0, %s27
      %s39 = sphi 0, %s41
      %s42 = sphi 0, %s39
      %s43 = sphi 0, %s42
      %s59 = sphi 0, %s43
      %s65 = sphi 0, %s67
      %s68 = sphi 0, %s65
      %s69 = sphi 0, %s68
      %s85 = sphi 0, %s69
      %s91 = sphi 0, %s93
      %s94 = sphi 0, %s91
      %s95 = sphi 0, %s94
      %s111 = sphi 0, %s95
      %s117 = sphi 0, %s119
      %s120 = sphi 0, %s117
      %s121 = sphi 0, %s120
      %s137 = sphi 0, %s121
      %s143 = sphi 0, %s145
      %s146 = sphi 0, %s143
      %s147 = sphi 0, %s146
      %s163 = sphi 0, %s147
      %s171 = sphi 0, %s173
      %s174 = sphi 0, %s171
      %s175 = sphi 0, %s174
      %s191 = sphi 0, %s175
    $region4: #{a_call__.7} parent=1 // loop_header_branch
      %20 = sbr.rel (%p18) target = $region8
    $region5: #{a_call__.7} parent=1 // loop_body
      %s22 = ssub.s32 %s17, 1
      %s23 = ssub.s32 %s17, 2
      %s30 = sadd.s32 1, %s25
      %p31 = scmp.ge.s32.totalorder %s30, 1
      %s32 = scalar_select %p31, 0, %s30
      %s33 = sadd.s32 1, %s24
      %s34 = scalar_select %p31, %s33, %s24
      %p35 = scmp.ge.s32.totalorder %s34, 2
      %s36 = scalar_select %p35, 0, %s34
      %s37 = ssub.s32 %s25, %s32
      %p38 = scmp.eq.s32.totalorder %s37, 0
      %s40 = sadd.s32 %s39, 1
      %s41 = scalar_select %p38, %s39, %s40
      %p44 = pneg %p38
      %p45 = scmp.eq.s32.totalorder %s17, 1
      %p46 = por %p44, %p45
      %p47 = scmp.ne.s32.totalorder %s39, %s42
      %p48 = scmp.eq.s32.totalorder %s17, 0
      %p49 = por %p47, %p48
      %p50 = scmp.ne.s32.totalorder %s39, %s42
      %p51 = scmp.eq.s32.totalorder %s22, 1
      %p52 = por %p50, %p51
      %p53 = scmp.ne.s32.totalorder %s42, %s43
      %p54 = scmp.eq.s32.totalorder %s22, 0
      %p55 = por %p53, %p54
      %p56 = scmp.ne.s32.totalorder %s42, %s43
      %p57 = scmp.eq.s32.totalorder %s23, 1
      %p58 = por %p56, %p57
      %p60 = scmp.ne.s32.totalorder %s43, %s59
      %p61 = scmp.eq.s32.totalorder %s23, 0
      %p62 = por %p60, %p61
      %s63 = ssub.s32 %s25, %s32
      %p64 = scmp.eq.s32.totalorder %s63, 0
      %s66 = sadd.s32 %s65, 1
      %s67 = scalar_select %p64, %s65, %s66
      %p70 = pneg %p64
      %p71 = scmp.eq.s32.totalorder %s17, 1
      %p72 = por %p70, %p71
      %p73 = scmp.ne.s32.totalorder %s65, %s68
      %p74 = scmp.eq.s32.totalorder %s17, 0
      %p75 = por %p73, %p74
      %p76 = scmp.ne.s32.totalorder %s65, %s68
      %p77 = scmp.eq.s32.totalorder %s22, 1
      %p78 = por %p76, %p77
      %p79 = scmp.ne.s32.totalorder %s68, %s69
      %p80 = scmp.eq.s32.totalorder %s22, 0
      %p81 = por %p79, %p80
      %p82 = scmp.ne.s32.totalorder %s68, %s69
      %p83 = scmp.eq.s32.totalorder %s23, 1
      %p84 = por %p82, %p83
      %p86 = scmp.ne.s32.totalorder %s69, %s85
      %p87 = scmp.eq.s32.totalorder %s23, 0
      %p88 = por %p86, %p87
      %s89 = ssub.s32 %s24, %s36
      %p90 = scmp.eq.s32.totalorder %s89, 0
      %s92 = sadd.s32 %s91, 1
      %s93 = scalar_select %p90, %s91, %s92
      %p96 = pneg %p90
      %p97 = scmp.eq.s32.totalorder %s17, 1
      %p98 = por %p96, %p97
      %p99 = scmp.ne.s32.totalorder %s91, %s94
      %p100 = scmp.eq.s32.totalorder %s17, 0
      %p101 = por %p99, %p100
      %p102 = scmp.ne.s32.totalorder %s91, %s94
      %p103 = scmp.eq.s32.totalorder %s22, 1
      %p104 = por %p102, %p103
      %p105 = scmp.ne.s32.totalorder %s94, %s95
      %p106 = scmp.eq.s32.totalorder %s22, 0
      %p107 = por %p105, %p106
      %p108 = scmp.ne.s32.totalorder %s94, %s95
      %p109 = scmp.eq.s32.totalorder %s23, 1
      %p110 = por %p108, %p109
      %p112 = scmp.ne.s32.totalorder %s95, %s111
      %p113 = scmp.eq.s32.totalorder %s23, 0
      %p114 = por %p112, %p113
      %s115 = ssub.s32 %s24, %s36
      %p116 = scmp.eq.s32.totalorder %s115, 0
      %s118 = sadd.s32 %s117, 1
      %s119 = scalar_select %p116, %s117, %s118
      %p122 = pneg %p116
      %p123 = scmp.eq.s32.totalorder %s17, 1
      %p124 = por %p122, %p123
      %p125 = scmp.ne.s32.totalorder %s117, %s120
      %p126 = scmp.eq.s32.totalorder %s17, 0
      %p127 = por %p125, %p126
      %p128 = scmp.ne.s32.totalorder %s117, %s120
      %p129 = scmp.eq.s32.totalorder %s22, 1
      %p130 = por %p128, %p129
      %p131 = scmp.ne.s32.totalorder %s120, %s121
      %p132 = scmp.eq.s32.totalorder %s22, 0
      %p133 = por %p131, %p132
      %p134 = scmp.ne.s32.totalorder %s120, %s121
      %p135 = scmp.eq.s32.totalorder %s23, 1
      %p136 = por %p134, %p135
      %p138 = scmp.ne.s32.totalorder %s121, %s137
      %p139 = scmp.eq.s32.totalorder %s23, 0
      %p140 = por %p138, %p139
      %s141 = ssub.s32 %s24, %s36
      %p142 = scmp.eq.s32.totalorder %s141, 0
      %s144 = sadd.s32 %s143, 1
      %s145 = scalar_select %p142, %s143, %s144
      %p148 = pneg %p142
      %p149 = scmp.eq.s32.totalorder %s17, 1
      %p150 = por %p148, %p149
      %p151 = scmp.ne.s32.totalorder %s143, %s146
      %p152 = scmp.eq.s32.totalorder %s17, 0
      %p153 = por %p151, %p152
      %p154 = scmp.ne.s32.totalorder %s143, %s146
      %p155 = scmp.eq.s32.totalorder %s22, 1
      %p156 = por %p154, %p155
      %p157 = scmp.ne.s32.totalorder %s146, %s147
      %p158 = scmp.eq.s32.totalorder %s22, 0
      %p159 = por %p157, %p158
      %p160 = scmp.ne.s32.totalorder %s146, %s147
      %p161 = scmp.eq.s32.totalorder %s23, 1
      %p162 = por %p160, %p161
      %p164 = scmp.ne.s32.totalorder %s147, %s163
      %p165 = scmp.eq.s32.totalorder %s23, 0
      %p166 = por %p164, %p165
      %s167 = ssub.s32 %s24, %s36
      %s168 = ssub.s32 %s25, %s32
      %s169 = sor.u32 %s167, %s168
      %p170 = scmp.eq.s32.totalorder %s169, 0
      %s172 = sadd.s32 %s171, 1
      %s173 = scalar_select %p170, %s171, %s172
      %p176 = pneg %p170
      %p177 = scmp.eq.s32.totalorder %s17, 1
      %p178 = por %p176, %p177
      %p179 = scmp.ne.s32.totalorder %s171, %s174
      %p180 = scmp.eq.s32.totalorder %s17, 0
      %p181 = por %p179, %p180
      %p182 = scmp.ne.s32.totalorder %s171, %s174
      %p183 = scmp.eq.s32.totalorder %s22, 1
      %p184 = por %p182, %p183
      %p185 = scmp.ne.s32.totalorder %s174, %s175
      %p186 = scmp.eq.s32.totalorder %s22, 0
      %p187 = por %p185, %p186
      %p188 = scmp.ne.s32.totalorder %s174, %s175
      %p189 = scmp.eq.s32.totalorder %s23, 1
      %p190 = por %p188, %p189
      %p192 = scmp.ne.s32.totalorder %s175, %s191
      %p193 = scmp.eq.s32.totalorder %s23, 0
      %p194 = por %p192, %p193
      %p195 = scmp.le.s32.totalorder 1, %s17
      %p196 = scmp.lt.s32.totalorder %s17, 3
      %p197 = pnand %p195, %p196
      %p198 = pneg %p197
      // Predicated region
      $region9: #{a_call__.7} parent=5 // pred_check
        _
      $region10: #{a_call__.7} parent=5 // pred_check_branch
        %200 = sbr.rel (%p197) target = $region12
      $region11: #{a_call__.7} parent=5 // pred_region
        %s201 = ssub.s32 %s17, 1
        // Predicated region
        $region13: #{a_call__.7} parent=11 // pred_check
          %p202 = pneg %p55
        $region14: #{a_call__.7} parent=11 // pred_check_branch
          %204 = sbr.rel (%p202) target = $region16
        $region15: #{a_call__.7} parent=11 // pred_region
          %s205 = smul.u32 2, %s27
          %p206 = scmp.lt.s32.totalorder %s205, 1
          %s207 = scalar_select %p206, %s205, 1
          %s208 = smul.addr %s207, 8
          %s209 = scalar_lea.vmem %s0, %s208
          %s210 = smul.u32 2, %s27
        $region16: #{a_call__.7} parent=11 // pred_fallthru
          _
        // Predicated region
        $region17: #{a_call__.7} parent=11 // pred_check
          %p211 = pneg %p81
        $region18: #{a_call__.7} parent=11 // pred_check_branch
          %213 = sbr.rel (%p211) target = $region20
        $region19: #{a_call__.7} parent=11 // pred_region
          %s214 = smul.u32 2, %s27
          %p215 = scmp.lt.s32.totalorder %s214, 1
          %s216 = scalar_select %p215, %s214, 1
          %s217 = smul.addr %s216, 8
          %s218 = scalar_lea.vmem %s1, %s217
          %s219 = smul.u32 2, %s27
        $region20: #{a_call__.7} parent=11 // pred_fallthru
          _
      $region12: #{a_call__.7} parent=5 // pred_fallthru
        _
      %p220 = scmp.lt.s32.totalorder %s17, 2
      // Predicated region
      $region21: #{a_call__.7} parent=5 // pred_check
        %p221 = pneg %p220
      $region22: #{a_call__.7} parent=5 // pred_check_branch
        %223 = sbr.rel (%p221) target = $region24
      $region23: #{a_call__.7} parent=5 // pred_region
        // Predicated region
        $region25: #{a_call__.7} parent=23 // pred_check
          %p224 = pneg %p101
        $region26: #{a_call__.7} parent=23 // pred_check_branch
          %226 = sbr.rel (%p224) target = $region28
        $region27: #{a_call__.7} parent=23 // pred_region
          %s227 = sand.u32 %s91, 1
          %s228 = scalar_lea.sflag [#allocation3], %s227
          %s229 = sand.u32 %s91, 1
          %s230 = smul.addr %s229, 32
          %s231 = scalar_lea.vmem [#allocation2], %s230
          %233 = vsyncadd %s228, 0
          %s234 = smul.addr %s24, 4
          %s235 = smul.addr %s234, 8
          %s236 = scalar_lea.hbm %s2, %s235
          %s237 = sshll.u32 %s236, 4
          %s238 = int_to_ptr.hbm [resolvable:$true] %s237
          %s239 = sshll.u32 %s231, 4
          %s240 = int_to_ptr.vmem [resolvable:$true] %s239
          %245 = dma.hbm_to_vmem [thread:$0]  %s238, 512, %s240, %s228, 128, 128, 8
        $region28: #{a_call__.7} parent=23 // pred_fallthru
          _
        // Predicated region
        $region29: #{a_call__.7} parent=23 // pred_check
          %p246 = pneg %p127
        $region30: #{a_call__.7} parent=23 // pred_check_branch
          %248 = sbr.rel (%p246) target = $region32
        $region31: #{a_call__.7} parent=23 // pred_region
          %s249 = sand.u32 %s117, 1
          %s250 = scalar_lea.sflag [#allocation5], %s249
          %s251 = sand.u32 %s117, 1
          %s252 = smul.addr %s251, 32
          %s253 = scalar_lea.vmem [#allocation4], %s252
          %255 = vsyncadd %s250, 0
          %s256 = smul.addr %s24, 4
          %s257 = smul.addr %s256, 8
          %s258 = scalar_lea.hbm %s3, %s257
          %s259 = sshll.u32 %s258, 4
          %s260 = int_to_ptr.hbm [resolvable:$true] %s259
          %s261 = sshll.u32 %s253, 4
          %s262 = int_to_ptr.vmem [resolvable:$true] %s261
          %267 = dma.hbm_to_vmem [thread:$0]  %s260, 512, %s262, %s250, 128, 128, 8
        $region32: #{a_call__.7} parent=23 // pred_fallthru
          _
        // Predicated region
        $region33: #{a_call__.7} parent=23 // pred_check
          %p268 = pneg %p153
        $region34: #{a_call__.7} parent=23 // pred_check_branch
          %270 = sbr.rel (%p268) target = $region36
        $region35: #{a_call__.7} parent=23 // pred_region
          %p271 = scmp.lt.s32.totalorder %s24, 1
          %s272 = scalar_select %p271, %s24, 1
          %s273 = scalar_lea.vmem %s4, %s272
        $region36: #{a_call__.7} parent=23 // pred_fallthru
          _
      $region24: #{a_call__.7} parent=5 // pred_fallthru
        _
      %p274 = scmp.le.s32.totalorder 1, %s17
      %p275 = scmp.lt.s32.totalorder %s17, 3
      %p276 = pnand %p274, %p275
      %p277 = pneg %p276
      // Predicated region
      $region37: #{a_call__.7} parent=5 // pred_check
        _
      $region38: #{a_call__.7} parent=5 // pred_check_branch
        %279 = sbr.rel (%p276) target = $region40
      $region39: #{a_call__.7} parent=5 // pred_region
        %s280 = ssub.s32 %s17, 1
        %s281 = sand.u32 %s94, 1
        %s282 = scalar_lea.sflag [#allocation3], %s281
        %s283 = sand.u32 %s94, 1
        %s284 = smul.addr %s283, 32
        %s285 = scalar_lea.vmem [#allocation2], %s284
        // Predicated region
        $region41: #{a_call__.7} parent=39 // pred_check
          %p286 = pneg %p107
        $region42: #{a_call__.7} parent=39 // pred_check_branch
          %288 = sbr.rel (%p286) target = $region44
        $region43: #{a_call__.7} parent=39 // pred_region
          %290 = dma.done %s282, 512
        $region44: #{a_call__.7} parent=39 // pred_fallthru
          _
        %s291 = sand.u32 %s120, 1
        %s292 = scalar_lea.sflag [#allocation5], %s291
        %s293 = sand.u32 %s120, 1
        %s294 = smul.addr %s293, 32
        %s295 = scalar_lea.vmem [#allocation4], %s294
        // Predicated region
        $region45: #{a_call__.7} parent=39 // pred_check
          %p296 = pneg %p133
        $region46: #{a_call__.7} parent=39 // pred_check_branch
          %298 = sbr.rel (%p296) target = $region48
        $region47: #{a_call__.7} parent=39 // pred_region
          %300 = dma.done %s292, 512
        $region48: #{a_call__.7} parent=39 // pred_fallthru
          _
        %s301 = smul.u32 2, %s27
        %p302 = scmp.lt.s32.totalorder %s301, 1
        %s303 = scalar_select %p302, %s301, 1
        %s304 = smul.addr %s303, 8
        %s305 = scalar_lea.vmem %s0, %s304
        %p306 = pneg %p55
        %p307 = pneg %p52
        %s308 = smul.u32 2, %s27
        %p309 = scmp.lt.s32.totalorder %s308, 1
        %s310 = scalar_select %p309, %s308, 1
        %s311 = smul.addr %s310, 8
        %s312 = scalar_lea.vmem %s1, %s311
        %p313 = pneg %p81
        %p314 = pneg %p78
        %s315 = sand.u32 %s94, 1
        %s316 = scalar_lea.sflag [#allocation3], %s315
        %s317 = sand.u32 %s94, 1
        %s318 = smul.addr %s317, 32
        %s319 = scalar_lea.vmem [#allocation2], %s318
        %p320 = pneg %p107
        %p321 = pneg %p104
        %s322 = sand.u32 %s120, 1
        %s323 = scalar_lea.sflag [#allocation5], %s322
        %s324 = sand.u32 %s120, 1
        %s325 = smul.addr %s324, 32
        %s326 = scalar_lea.vmem [#allocation4], %s325
        %p327 = pneg %p133
        %p328 = pneg %p130
        %p329 = scmp.lt.s32.totalorder %s26, 1
        %s330 = scalar_select %p329, %s26, 1
        %s331 = scalar_lea.vmem %s4, %s330
        %p332 = pneg %p159
        %p333 = pneg %p156
        %p334 = pneg %p187
        %p335 = pneg %p184
        %s336 = smul.u32 2, %s27
        %p337 = scmp.lt.s32.totalorder %s26, 1
        %s338 = scalar_select %p337, %s26, 1
        %p339 = scmp.lt.s32.totalorder %s336, 1
        %s340 = scalar_select %p339, %s336, 1
        %s341 = smul.addr %s338, 2
        %s342 = sadd.s32 %s340, %s341
        %s343 = smul.addr %s342, 8
        %s344 = scalar_lea.vmem %s5, %s343
        %s345 = smul.u32 2, %s27
        %p346 = scmp.lt.s32.totalorder %s345, 1
        %s347 = scalar_select %p346, %s345, 1
        %s348 = smul.addr %s347, 8
        %s349 = scalar_lea.vmem %s0, %s348
        %s350 = smul.u32 2, %s27
        %s351 = smul.u32 2, %s27
        %p352 = scmp.lt.s32.totalorder %s351, 1
        %s353 = scalar_select %p352, %s351, 1
        %s354 = smul.addr %s353, 8
        %s355 = scalar_lea.vmem %s1, %s354
        %s356 = smul.u32 2, %s27
        %p357 = scmp.lt.s32.totalorder %s26, 1
        %s358 = scalar_select %p357, %s26, 1
        %s359 = scalar_lea.vmem %s4, %s358
        %s360 = smul.u32 2, %s27
        %p361 = scmp.lt.s32.totalorder %s26, 1
        %s362 = scalar_select %p361, %s26, 1
        %p363 = scmp.lt.s32.totalorder %s360, 1
        %s364 = scalar_select %p363, %s360, 1
        %s365 = smul.addr %s362, 2
        %s366 = sadd.s32 %s364, %s365
        %s367 = smul.addr %s366, 8
        %s368 = scalar_lea.vmem %s5, %s367
        %s369 = smul.u32 2, %s27
        %v370 = vld [vmem:[%s349] sm:$0xff]
        %v371 = vld [vmem:[%s349 + $0x8] sm:$0xff]
        %v372 = vld [vmem:[%s285] sm:$0xff]
        %v373 = vld [vmem:[%s285 + $0x8] sm:$0xff]
        %v374 = vld [vmem:[%s285 + $0x10] sm:$0xff]
        %v375 = vld [vmem:[%s285 + $0x18] sm:$0xff]
        %v376 = vld [vmem:[%s355] sm:$0xff]
        %v377 = vld [vmem:[%s355 + $0x8] sm:$0xff]
        %v378 = vld [vmem:[%s295] sm:$0xff]
        %v379 = vld [vmem:[%s295 + $0x8] sm:$0xff]
        %v380 = vld [vmem:[%s295 + $0x10] sm:$0xff]
        %v381 = vld [vmem:[%s295 + $0x18] sm:$0xff]
        %vm382 = vcmask 261120
        %v384 = vsel %vm382, %v376, 0
        %v387 = vsel %vm382, %v377, 0
        %389 = vmatpush.msra.mxu0 0.0
        %390 = vmatpush.msra.mxu0 0.0
        %391 = vmatpush.msra.mxu0 0.0
        %392 = vmatpush.msra.mxu0 0.0
        %393 = vmatpush.msra.mxu0 0.0
        %394 = vmatpush.msra.mxu0 0.0
        %395 = vmatpush.msra.mxu0 0.0
        %396 = vmatpush.msra.mxu0 0.0
        %397 = vmatpush.msra.mxu0 0.0
        %398 = vmatpush.msra.mxu0 0.0
        %399 = vmatpush.msra.mxu0 0.0
        %400 = vmatpush.msra.mxu0 0.0
        %401 = vmatpush.msra.mxu0 %v381
        %402 = vmatpush.msra.mxu0 %v380
        %403 = vmatpush.msra.mxu0 %v379
        %404 = vmatpush.msra.mxu0 %v378
        %405 = vmatmul.f32.gmra.mxu0 %v384
        %v406 = vpop.f32.mrf.mxu0
        %v407 = vadd.f32 0.0, %v406
        %408 = vmatmul.f32.gmra.mxu0 %v387
        %v409 = vpop.f32.mrf.mxu0
        %v410 = vadd.f32 0.0, %v409
        %411 = vdwg.mxu0
        %v413 = vsel %vm382, %v370, 0
        %v416 = vsel %vm382, %v371, 0
        %418 = vmatpush.msra.mxu0 0.0
        %419 = vmatpush.msra.mxu0 0.0
        %420 = vmatpush.msra.mxu0 0.0
        %421 = vmatpush.msra.mxu0 0.0
        %422 = vmatpush.msra.mxu0 0.0
        %423 = vmatpush.msra.mxu0 0.0
        %424 = vmatpush.msra.mxu0 0.0
        %425 = vmatpush.msra.mxu0 0.0
        %426 = vmatpush.msra.mxu0 0.0
        %427 = vmatpush.msra.mxu0 0.0
        %428 = vmatpush.msra.mxu0 0.0
        %429 = vmatpush.msra.mxu0 0.0
        %430 = vmatpush.msra.mxu0 %v375
        %431 = vmatpush.msra.mxu0 %v374
        %432 = vmatpush.msra.mxu0 %v373
        %433 = vmatpush.msra.mxu0 %v372
        %434 = vmatmul.f32.gmra.mxu0 %v413
        %v435 = vpop.f32.mrf.mxu0
        %v436 = vadd.f32 %v407, %v435
        %437 = vmatmul.f32.gmra.mxu0 %v416
        %v438 = vpop.f32.mrf.mxu0
        %v439 = vadd.f32 %v410, %v438
        %440 = vdwg.mxu0
        %v441 = vld [vmem:[%s359] sm:$0x1]
        %v443 = vperm.slane %v441, 0
        %v445 = vadd.f32 %v436, %v443
        %v446 = vadd.f32 %v439, %v443
        %447 = vst [vmem:[%s368] sm:$0xff] %v445
        %448 = vst [vmem:[%s368 + $0x8] sm:$0xff] %v446
        %s449 = smul.u32 2, %s27
        %p450 = scmp.lt.s32.totalorder %s26, 1
        %s451 = scalar_select %p450, %s26, 1
        %p452 = scmp.lt.s32.totalorder %s449, 1
        %s453 = scalar_select %p452, %s449, 1
        %s454 = smul.addr %s451, 2
        %s455 = sadd.s32 %s453, %s454
        %s456 = smul.addr %s455, 8
        %s457 = scalar_lea.vmem %s5, %s456
        // Predicated region
        $region49: #{a_call__.7} parent=39 // pred_check
          %p458 = pneg %p184
        $region50: #{a_call__.7} parent=39 // pred_check_branch
          %460 = sbr.rel (%p458) target = $region52
        $region51: #{a_call__.7} parent=39 // pred_region
          %s461 = smul.u32 2, %s27
        $region52: #{a_call__.7} parent=39 // pred_fallthru
          _
      $region40: #{a_call__.7} parent=5 // pred_fallthru
        _
      %p462 = scmp.le.s32.totalorder 2, %s17
      // Predicated region
      $region53: #{a_call__.7} parent=5 // pred_check
        %p463 = pneg %p462
      $region54: #{a_call__.7} parent=5 // pred_check_branch
        %465 = sbr.rel (%p463) target = $region56
      $region55: #{a_call__.7} parent=5 // pred_region
        %s466 = ssub.s32 %s17, 2
        // Predicated region
        $region57: #{a_call__.7} parent=55 // pred_check
          %p467 = pneg %p190
        $region58: #{a_call__.7} parent=55 // pred_check_branch
          %469 = sbr.rel (%p467) target = $region60
        $region59: #{a_call__.7} parent=55 // pred_region
          %s470 = smul.u32 2, %s29
          %p471 = scmp.lt.s32.totalorder %s28, 1
          %s472 = scalar_select %p471, %s28, 1
          %p473 = scmp.lt.s32.totalorder %s470, 1
          %s474 = scalar_select %p473, %s470, 1
          %s475 = smul.addr %s472, 2
          %s476 = sadd.s32 %s474, %s475
          %s477 = smul.addr %s476, 8
          %s478 = scalar_lea.vmem %s5, %s477
        $region60: #{a_call__.7} parent=55 // pred_fallthru
          _
      $region56: #{a_call__.7} parent=5 // pred_fallthru
        _
    $region6: #{a_call__.7} parent=1 // loop_footer
      %s21 = sadd.s32 1, %s17
    $region7: #{a_call__.7} parent=1 // loop_footer_branch
      %16 = sbr.rel target = $region3
    $region8: #{a_call__.7} parent=1 // loop_exit
      _
    %479 = vsyncpa [#allocation3], 1
    %s480 = scalar_lea.sflag [#allocation3], 1
    %481 = vsyncpa %s480, 1
    %482 = vsyncpa [#allocation5], 1
    %s483 = scalar_lea.sflag [#allocation5], 1
    %484 = vsyncpa %s483, 1

// kernel: a_call__.5
$region0: #{a_call__.5}
  #allocation0 [shape = 'u32[]', space=smem, size = 0x4, offset = 0x4, fixed_abs, tag = 'smem constant byte address 0x4 - core index']
  #allocation1 [shape = 'u32[72,128]{1,0:T(1,128)}', space=vmem, size = 0x9000, scoped, tag = 'internal scratch']
  %s0 = inlined_call_operand.hbm [shape: f32[16,16], index: 0, kind: input, shape index: {}]
  %s1 = inlined_call_operand.hbm [shape: f32[2,16,128], index: 1, kind: input, shape index: {}]
  %s2 = inlined_call_operand.vmem [shape: f32[2,1,128], index: 2, kind: input, shape index: {}]
  %s3 = inlined_call_operand.vmem [shape: f32[2,16,128], index: 3, kind: output, shape index: {}]
  %s4 = sld [smem:[#allocation0]]
  $region53: #{a_call__.5} parent=0
    _
  %s6 = ssub.s32 1, %s4
  %s7 = scalar_select 0, %s6, %s4
  $region1: #{a_call__.5} parent=0
    #allocation2 [shape = 'u8[8192]{0}', space=vmem, size = 0x2000, scoped, tag = 'input window, operand 0, single buffered']
    #allocation3 [shape = 's32[2]{0}', space=sflag, size = 0x8, scoped, tag = 'scoped memory for a_call__.5']
    #allocation4 [shape = 'u8[16384]{0}', space=vmem, size = 0x4000, scoped, tag = 'input window, operand 1']
    #allocation5 [shape = 's32[2]{0}', space=sflag, size = 0x8, scoped, tag = 'scoped memory for a_call__.5']
    %8 = vsyncpa [#allocation3], 0
    %9 = vsyncpa [#allocation5], 0
    %s10 = scalar_lea.sflag [#allocation5], 1
    %11 = vsyncpa %s10, 0
    loop: start=0, step=1, limit=4
    $region2: #{a_call__.5} parent=1 // loop_pre_header
      _
    $region3: #{a_call__.5} parent=1 // loop_header
      %s13 = sphi 0, %s17
      %p14 = scmp.ge.s32.totalorder %s13, 4
      %s20 = sphi 0, %s32
      %s21 = sphi 0, %s28
      %s22 = sphi 0, %s20
      %s23 = sphi 0, %s21
      %s24 = sphi 0, %s22
      %s25 = sphi 0, %s23
      %s35 = sphi 0, %s37
      %s38 = sphi 0, %s35
      %s39 = sphi 0, %s38
      %s55 = sphi 0, %s39
      %s61 = sphi 0, %s63
      %s64 = sphi 0, %s61
      %s65 = sphi 0, %s64
      %s81 = sphi 0, %s65
      %s87 = sphi 0, %s89
      %s90 = sphi 0, %s87
      %s91 = sphi 0, %s90
      %s107 = sphi 0, %s91
      %s115 = sphi 0, %s117
      %s118 = sphi 0, %s115
      %s119 = sphi 0, %s118
      %s135 = sphi 0, %s119
    $region4: #{a_call__.5} parent=1 // loop_header_branch
      %16 = sbr.rel (%p14) target = $region8
    $region5: #{a_call__.5} parent=1 // loop_body
      %s18 = ssub.s32 %s13, 1
      %s19 = ssub.s32 %s13, 2
      %s26 = sadd.s32 1, %s21
      %p27 = scmp.ge.s32.totalorder %s26, 1
      %s28 = scalar_select %p27, 0, %s26
      %s29 = sadd.s32 1, %s20
      %s30 = scalar_select %p27, %s29, %s20
      %p31 = scmp.ge.s32.totalorder %s30, 2
      %s32 = scalar_select %p31, 0, %s30
      %s33 = ssub.s32 %s21, %s28
      %p34 = scmp.eq.s32.totalorder %s33, 0
      %s36 = sadd.s32 %s35, 1
      %s37 = scalar_select %p34, %s35, %s36
      %p40 = pneg %p34
      %p41 = scmp.eq.s32.totalorder %s13, 1
      %p42 = por %p40, %p41
      %p43 = scmp.ne.s32.totalorder %s35, %s38
      %p44 = scmp.eq.s32.totalorder %s13, 0
      %p45 = por %p43, %p44
      %p46 = scmp.ne.s32.totalorder %s35, %s38
      %p47 = scmp.eq.s32.totalorder %s18, 1
      %p48 = por %p46, %p47
      %p49 = scmp.ne.s32.totalorder %s38, %s39
      %p50 = scmp.eq.s32.totalorder %s18, 0
      %p51 = por %p49, %p50
      %p52 = scmp.ne.s32.totalorder %s38, %s39
      %p53 = scmp.eq.s32.totalorder %s19, 1
      %p54 = por %p52, %p53
      %p56 = scmp.ne.s32.totalorder %s39, %s55
      %p57 = scmp.eq.s32.totalorder %s19, 0
      %p58 = por %p56, %p57
      %s59 = ssub.s32 %s20, %s32
      %p60 = scmp.eq.s32.totalorder %s59, 0
      %s62 = sadd.s32 %s61, 1
      %s63 = scalar_select %p60, %s61, %s62
      %p66 = pneg %p60
      %p67 = scmp.eq.s32.totalorder %s13, 1
      %p68 = por %p66, %p67
      %p69 = scmp.ne.s32.totalorder %s61, %s64
      %p70 = scmp.eq.s32.totalorder %s13, 0
      %p71 = por %p69, %p70
      %p72 = scmp.ne.s32.totalorder %s61, %s64
      %p73 = scmp.eq.s32.totalorder %s18, 1
      %p74 = por %p72, %p73
      %p75 = scmp.ne.s32.totalorder %s64, %s65
      %p76 = scmp.eq.s32.totalorder %s18, 0
      %p77 = por %p75, %p76
      %p78 = scmp.ne.s32.totalorder %s64, %s65
      %p79 = scmp.eq.s32.totalorder %s19, 1
      %p80 = por %p78, %p79
      %p82 = scmp.ne.s32.totalorder %s65, %s81
      %p83 = scmp.eq.s32.totalorder %s19, 0
      %p84 = por %p82, %p83
      %s85 = ssub.s32 %s20, %s32
      %p86 = scmp.eq.s32.totalorder %s85, 0
      %s88 = sadd.s32 %s87, 1
      %s89 = scalar_select %p86, %s87, %s88
      %p92 = pneg %p86
      %p93 = scmp.eq.s32.totalorder %s13, 1
      %p94 = por %p92, %p93
      %p95 = scmp.ne.s32.totalorder %s87, %s90
      %p96 = scmp.eq.s32.totalorder %s13, 0
      %p97 = por %p95, %p96
      %p98 = scmp.ne.s32.totalorder %s87, %s90
      %p99 = scmp.eq.s32.totalorder %s18, 1
      %p100 = por %p98, %p99
      %p101 = scmp.ne.s32.totalorder %s90, %s91
      %p102 = scmp.eq.s32.totalorder %s18, 0
      %p103 = por %p101, %p102
      %p104 = scmp.ne.s32.totalorder %s90, %s91
      %p105 = scmp.eq.s32.totalorder %s19, 1
      %p106 = por %p104, %p105
      %p108 = scmp.ne.s32.totalorder %s91, %s107
      %p109 = scmp.eq.s32.totalorder %s19, 0
      %p110 = por %p108, %p109
      %s111 = ssub.s32 %s20, %s32
      %s112 = ssub.s32 %s21, %s28
      %s113 = sor.u32 %s111, %s112
      %p114 = scmp.eq.s32.totalorder %s113, 0
      %s116 = sadd.s32 %s115, 1
      %s117 = scalar_select %p114, %s115, %s116
      %p120 = pneg %p114
      %p121 = scmp.eq.s32.totalorder %s13, 1
      %p122 = por %p120, %p121
      %p123 = scmp.ne.s32.totalorder %s115, %s118
      %p124 = scmp.eq.s32.totalorder %s13, 0
      %p125 = por %p123, %p124
      %p126 = scmp.ne.s32.totalorder %s115, %s118
      %p127 = scmp.eq.s32.totalorder %s18, 1
      %p128 = por %p126, %p127
      %p129 = scmp.ne.s32.totalorder %s118, %s119
      %p130 = scmp.eq.s32.totalorder %s18, 0
      %p131 = por %p129, %p130
      %p132 = scmp.ne.s32.totalorder %s118, %s119
      %p133 = scmp.eq.s32.totalorder %s19, 1
      %p134 = por %p132, %p133
      %p136 = scmp.ne.s32.totalorder %s119, %s135
      %p137 = scmp.eq.s32.totalorder %s19, 0
      %p138 = por %p136, %p137
      %p139 = scmp.le.s32.totalorder 1, %s13
      %p140 = scmp.lt.s32.totalorder %s13, 3
      %p141 = pnand %p139, %p140
      %p142 = pneg %p141
      // Predicated region
      $region9: #{a_call__.5} parent=5 // pred_check
        _
      $region10: #{a_call__.5} parent=5 // pred_check_branch
        %144 = sbr.rel (%p141) target = $region12
      $region11: #{a_call__.5} parent=5 // pred_region
        %s145 = ssub.s32 %s13, 1
        // Predicated region
        $region13: #{a_call__.5} parent=11 // pred_check
          %p146 = pneg %p51
        $region14: #{a_call__.5} parent=11 // pred_check_branch
          %148 = sbr.rel (%p146) target = $region16
        $region15: #{a_call__.5} parent=11 // pred_region
          %s149 = smul.u32 2, %s23
          %151 = vsyncadd [#allocation3], 0
          %s152 = smul.addr %s149, 8
          %s153 = scalar_lea.hbm %s0, %s152
          %s154 = sshll.u32 %s153, 4
          %s155 = int_to_ptr.hbm [resolvable:$true] %s154
          %s156 = sshll.u32 [#allocation2], 4
          %s157 = int_to_ptr.vmem [resolvable:$true] %s156
          %162 = dma.hbm_to_vmem [thread:$0]  %s155, 256, %s157, [#allocation3], 128, 128, 8
        $region16: #{a_call__.5} parent=11 // pred_fallthru
          _
      $region12: #{a_call__.5} parent=5 // pred_fallthru
        _
      %p163 = scmp.lt.s32.totalorder %s13, 2
      // Predicated region
      $region17: #{a_call__.5} parent=5 // pred_check
        %p164 = pneg %p163
      $region18: #{a_call__.5} parent=5 // pred_check_branch
        %166 = sbr.rel (%p164) target = $region20
      $region19: #{a_call__.5} parent=5 // pred_region
        // Predicated region
        $region21: #{a_call__.5} parent=19 // pred_check
          %p167 = pneg %p71
        $region22: #{a_call__.5} parent=19 // pred_check_branch
          %169 = sbr.rel (%p167) target = $region24
        $region23: #{a_call__.5} parent=19 // pred_region
          %s170 = sand.u32 %s61, 1
          %s171 = scalar_lea.sflag [#allocation5], %s170
          %s172 = sand.u32 %s61, 1
          %s173 = smul.addr %s172, 16
          %s174 = scalar_lea.vmem [#allocation4], %s173
          %176 = vsyncadd %s171, 0
          %s177 = smul.addr %s20, 2
          %s178 = smul.addr %s177, 8
          %s179 = scalar_lea.hbm %s1, %s178
          %s180 = sshll.u32 %s179, 4
          %s181 = int_to_ptr.hbm [resolvable:$true] %s180
          %s182 = sshll.u32 %s174, 4
          %s183 = int_to_ptr.vmem [resolvable:$true] %s182
          %188 = dma.hbm_to_vmem [thread:$0]  %s181, 256, %s183, %s171, 128, 128, 8
        $region24: #{a_call__.5} parent=19 // pred_fallthru
          _
        // Predicated region
        $region25: #{a_call__.5} parent=19 // pred_check
          %p189 = pneg %p97
        $region26: #{a_call__.5} parent=19 // pred_check_branch
          %191 = sbr.rel (%p189) target = $region28
        $region27: #{a_call__.5} parent=19 // pred_region
          %p192 = scmp.lt.s32.totalorder %s20, 1
          %s193 = scalar_select %p192, %s20, 1
          %s194 = scalar_lea.vmem %s2, %s193
        $region28: #{a_call__.5} parent=19 // pred_fallthru
          _
      $region20: #{a_call__.5} parent=5 // pred_fallthru
        _
      %p195 = scmp.le.s32.totalorder 1, %s13
      %p196 = scmp.lt.s32.totalorder %s13, 3
      %p197 = pnand %p195, %p196
      %p198 = pneg %p197
      // Predicated region
      $region29: #{a_call__.5} parent=5 // pred_check
        _
      $region30: #{a_call__.5} parent=5 // pred_check_branch
        %200 = sbr.rel (%p197) target = $region32
      $region31: #{a_call__.5} parent=5 // pred_region
        %s201 = ssub.s32 %s13, 1
        // Predicated region
        $region33: #{a_call__.5} parent=31 // pred_check
          %p202 = pneg %p51
        $region34: #{a_call__.5} parent=31 // pred_check_branch
          %204 = sbr.rel (%p202) target = $region36
        $region35: #{a_call__.5} parent=31 // pred_region
          %206 = dma.done [#allocation3], 256
        $region36: #{a_call__.5} parent=31 // pred_fallthru
          _
        %s207 = sand.u32 %s64, 1
        %s208 = scalar_lea.sflag [#allocation5], %s207
        %s209 = sand.u32 %s64, 1
        %s210 = smul.addr %s209, 16
        %s211 = scalar_lea.vmem [#allocation4], %s210
        // Predicated region
        $region37: #{a_call__.5} parent=31 // pred_check
          %p212 = pneg %p77
        $region38: #{a_call__.5} parent=31 // pred_check_branch
          %214 = sbr.rel (%p212) target = $region40
        $region39: #{a_call__.5} parent=31 // pred_region
          %216 = dma.done %s208, 256
        $region40: #{a_call__.5} parent=31 // pred_fallthru
          _
        %p217 = pneg %p51
        %p218 = pneg %p48
        %s219 = sand.u32 %s64, 1
        %s220 = scalar_lea.sflag [#allocation5], %s219
        %s221 = sand.u32 %s64, 1
        %s222 = smul.addr %s221, 16
        %s223 = scalar_lea.vmem [#allocation4], %s222
        %p224 = pneg %p77
        %p225 = pneg %p74
        %p226 = scmp.lt.s32.totalorder %s22, 1
        %s227 = scalar_select %p226, %s22, 1
        %s228 = scalar_lea.vmem %s2, %s227
        %p229 = pneg %p103
        %p230 = pneg %p100
        %p231 = pneg %p131
        %p232 = pneg %p128
        %s233 = smul.u32 2, %s23
        %p234 = scmp.lt.s32.totalorder %s22, 1
        %s235 = scalar_select %p234, %s22, 1
        %p236 = scmp.lt.s32.totalorder %s233, 1
        %s237 = scalar_select %p236, %s233, 1
        %s238 = smul.addr %s235, 2
        %s239 = sadd.s32 %s237, %s238
        %s240 = smul.addr %s239, 8
        %s241 = scalar_lea.vmem %s3, %s240
        %s242 = smul.u32 2, %s23
        %p243 = scmp.lt.s32.totalorder %s22, 1
        %s244 = scalar_select %p243, %s22, 1
        %s245 = scalar_lea.vmem %s2, %s244
        %s246 = smul.u32 2, %s23
        %p247 = scmp.lt.s32.totalorder %s22, 1
        %s248 = scalar_select %p247, %s22, 1
        %p249 = scmp.lt.s32.totalorder %s246, 1
        %s250 = scalar_select %p249, %s246, 1
        %s251 = smul.addr %s248, 2
        %s252 = sadd.s32 %s250, %s251
        %s253 = smul.addr %s252, 8
        %s254 = scalar_lea.vmem %s3, %s253
        %s255 = smul.u32 2, %s23
        %v256 = vld [vmem:[#allocation2] sm:$0xff]
        %v257 = vld [vmem:[#allocation2 + $0x8] sm:$0xff]
        %v258 = vld [vmem:[%s211] sm:$0xff]
        %v259 = vld [vmem:[%s211 + $0x8] sm:$0xff]
        %v260 = vld [vmem:[%s245] sm:$0x1]
        %v262 = vperm.slane %v260, 0
        %vm264 = vcmask 130048
        %v266 = vsel %vm264, %v256, 0
        %v269 = vsel %vm264, %v257, 0
        %271 = vmatpush.msra.mxu0 0.0
        %272 = vmatpush.msra.mxu0 0.0
        %273 = vmatpush.msra.mxu0 0.0
        %274 = vmatpush.msra.mxu0 0.0
        %275 = vmatpush.msra.mxu0 0.0
        %276 = vmatpush.msra.mxu0 0.0
        %277 = vmatpush.msra.mxu0 0.0
        %278 = vmatpush.msra.mxu0 0.0
        %279 = vmatpush.msra.mxu0 0.0
        %280 = vmatpush.msra.mxu0 0.0
        %281 = vmatpush.msra.mxu0 0.0
        %282 = vmatpush.msra.mxu0 0.0
        %283 = vmatpush.msra.mxu0 0.0
        %284 = vmatpush.msra.mxu0 0.0
        %285 = vmatpush.msra.mxu0 %v259
        %286 = vmatpush.msra.mxu0 %v258
        %287 = vmatmul.f32.gmra.mxu0 %v266
        %v288 = vpop.f32.mrf.mxu0
        %v289 = vadd.f32 %v262, %v288
        %290 = vmatmul.f32.gmra.mxu0 %v269
        %v291 = vpop.f32.mrf.mxu0
        %v292 = vadd.f32 %v262, %v291
        %293 = vdwg.mxu0
        %294 = vst [vmem:[%s254] sm:$0xff] %v289
        %295 = vst [vmem:[%s254 + $0x8] sm:$0xff] %v292
        %s296 = smul.u32 2, %s23
        %p297 = scmp.lt.s32.totalorder %s22, 1
        %s298 = scalar_select %p297, %s22, 1
        %p299 = scmp.lt.s32.totalorder %s296, 1
        %s300 = scalar_select %p299, %s296, 1
        %s301 = smul.addr %s298, 2
        %s302 = sadd.s32 %s300, %s301
        %s303 = smul.addr %s302, 8
        %s304 = scalar_lea.vmem %s3, %s303
        // Predicated region
        $region41: #{a_call__.5} parent=31 // pred_check
          %p305 = pneg %p128
        $region42: #{a_call__.5} parent=31 // pred_check_branch
          %307 = sbr.rel (%p305) target = $region44
        $region43: #{a_call__.5} parent=31 // pred_region
          %s308 = smul.u32 2, %s23
        $region44: #{a_call__.5} parent=31 // pred_fallthru
          _
      $region32: #{a_call__.5} parent=5 // pred_fallthru
        _
      %p309 = scmp.le.s32.totalorder 2, %s13
      // Predicated region
      $region45: #{a_call__.5} parent=5 // pred_check
        %p310 = pneg %p309
      $region46: #{a_call__.5} parent=5 // pred_check_branch
        %312 = sbr.rel (%p310) target = $region48
      $region47: #{a_call__.5} parent=5 // pred_region
        %s313 = ssub.s32 %s13, 2
        // Predicated region
        $region49: #{a_call__.5} parent=47 // pred_check
          %p314 = pneg %p134
        $region50: #{a_call__.5} parent=47 // pred_check_branch
          %316 = sbr.rel (%p314) target = $region52
        $region51: #{a_call__.5} parent=47 // pred_region
          %s317 = smul.u32 2, %s25
          %p318 = scmp.lt.s32.totalorder %s24, 1
          %s319 = scalar_select %p318, %s24, 1
          %p320 = scmp.lt.s32.totalorder %s317, 1
          %s321 = scalar_select %p320, %s317, 1
          %s322 = smul.addr %s319, 2
          %s323 = sadd.s32 %s321, %s322
          %s324 = smul.addr %s323, 8
          %s325 = scalar_lea.vmem %s3, %s324
        $region52: #{a_call__.5} parent=47 // pred_fallthru
          _
      $region48: #{a_call__.5} parent=5 // pred_fallthru
        _
    $region6: #{a_call__.5} parent=1 // loop_footer
      %s17 = sadd.s32 1, %s13
    $region7: #{a_call__.5} parent=1 // loop_footer_branch
      %12 = sbr.rel target = $region3
    $region8: #{a_call__.5} parent=1 // loop_exit
      _
    %326 = vsyncpa [#allocation3], 1
    %s327 = scalar_lea.sflag [#allocation3], 1
    %328 = vsyncpa %s327, 1
    %329 = vsyncpa [#allocation5], 1
    %s330 = scalar_lea.sflag [#allocation5], 1
    %331 = vsyncpa %s330, 1

// kernel: a_call__.9
$region0: #{a_call__.9}
  #allocation0 [shape = 'u32[]', space=smem, size = 0x4, offset = 0x4, fixed_abs, tag = 'smem constant byte address 0x4 - core index']
  #allocation1 [shape = 'u32[72,128]{1,0:T(1,128)}', space=vmem, size = 0x9000, scoped, tag = 'internal scratch']
  %s0 = inlined_call_operand.vmem [shape: f32[16,32], index: 0, kind: input, shape index: {}]
  %s1 = inlined_call_operand.vmem [shape: f32[16,32], index: 1, kind: input, shape index: {}]
  %s2 = inlined_call_operand.hbm [shape: f32[1,32,128], index: 2, kind: input, shape index: {}]
  %s3 = inlined_call_operand.hbm [shape: f32[1,32,128], index: 3, kind: input, shape index: {}]
  %s4 = inlined_call_operand.vmem [shape: f32[1,1,128], index: 4, kind: input, shape index: {}]
  %s5 = inlined_call_operand.hbm [shape: f32[1,16,128], index: 5, kind: output, shape index: {}]
  %s6 = sld [smem:[#allocation0]]
  $region38: #{a_call__.9} parent=0
    _
  %s8 = ssub.s32 1, %s6
  %s9 = scalar_select 0, %s8, %s6
  $region1: #{a_call__.9} parent=0
    #allocation2 [shape = 'u8[16384]{0}', space=vmem, size = 0x4000, scoped, tag = 'input window, operand 2, single buffered']
    #allocation3 [shape = 's32[1]{0}', space=sflag, size = 0x4, scoped, tag = 'scoped memory for a_call__.9']
    #allocation4 [shape = 's32[1]{0}', space=sflag, size = 0x4, scoped, tag = 'scoped memory for a_call__.9']
    #allocation5 [shape = 'u8[16384]{0}', space=vmem, size = 0x4000, scoped, tag = 'input window, operand 3, single buffered']
    #allocation6 [shape = 's32[1]{0}', space=sflag, size = 0x4, scoped, tag = 'scoped memory for a_call__.9']
    #allocation7 [shape = 'u8[8192]{0}', space=vmem, size = 0x2000, scoped, tag = 'output window, operand 0, single buffered']
    %10 = vsyncpa [#allocation3], 0
    %11 = vsyncpa [#allocation6], 0
    %12 = vsyncpa [#allocation4], 0
    // Predicated region
    $region2: #{a_call__.9} parent=1 // pred_check
      _
    $region3: #{a_call__.9} parent=1 // pred_check_branch
      %14 = sbr.rel (0) target = $region5
    $region4: #{a_call__.9} parent=1 // pred_region
      _
    $region5: #{a_call__.9} parent=1 // pred_fallthru
      _
    // Predicated region
    $region6: #{a_call__.9} parent=1 // pred_check
      _
    $region7: #{a_call__.9} parent=1 // pred_check_branch
      %16 = sbr.rel (0) target = $region9
    $region8: #{a_call__.9} parent=1 // pred_region
      _
    $region9: #{a_call__.9} parent=1 // pred_fallthru
      _
    // Predicated region
    $region10: #{a_call__.9} parent=1 // pred_check
      _
    $region11: #{a_call__.9} parent=1 // pred_check_branch
      %18 = sbr.rel (0) target = $region13
    $region12: #{a_call__.9} parent=1 // pred_region
      %20 = vsyncadd [#allocation3], 0
      %s21 = sshll.u32 %s2, 4
      %s22 = int_to_ptr.hbm [resolvable:$true] %s21
      %s23 = sshll.u32 [#allocation2], 4
      %s24 = int_to_ptr.vmem [resolvable:$true] %s23
      %29 = dma.hbm_to_vmem [thread:$0]  %s22, 512, %s24, [#allocation3], 128, 128, 8
    $region13: #{a_call__.9} parent=1 // pred_fallthru
      _
    // Predicated region
    $region14: #{a_call__.9} parent=1 // pred_check
      _
    $region15: #{a_call__.9} parent=1 // pred_check_branch
      %31 = sbr.rel (0) target = $region17
    $region16: #{a_call__.9} parent=1 // pred_region
      %33 = vsyncadd [#allocation6], 0
      %s34 = sshll.u32 %s3, 4
      %s35 = int_to_ptr.hbm [resolvable:$true] %s34
      %s36 = sshll.u32 [#allocation5], 4
      %s37 = int_to_ptr.vmem [resolvable:$true] %s36
      %42 = dma.hbm_to_vmem [thread:$0]  %s35, 512, %s37, [#allocation6], 128, 128, 8
    $region17: #{a_call__.9} parent=1 // pred_fallthru
      _
    // Predicated region
    $region18: #{a_call__.9} parent=1 // pred_check
      _
    $region19: #{a_call__.9} parent=1 // pred_check_branch
      %44 = sbr.rel (0) target = $region21
    $region20: #{a_call__.9} parent=1 // pred_region
      _
    $region21: #{a_call__.9} parent=1 // pred_fallthru
      _
    // Predicated region
    $region22: #{a_call__.9} parent=1 // pred_check
      _
    $region23: #{a_call__.9} parent=1 // pred_check_branch
      %46 = sbr.rel (0) target = $region25
    $region24: #{a_call__.9} parent=1 // pred_region
      %48 = dma.done [#allocation3], 512
    $region25: #{a_call__.9} parent=1 // pred_fallthru
      _
    // Predicated region
    $region26: #{a_call__.9} parent=1 // pred_check
      _
    $region27: #{a_call__.9} parent=1 // pred_check_branch
      %50 = sbr.rel (0) target = $region29
    $region28: #{a_call__.9} parent=1 // pred_region
      %52 = dma.done [#allocation6], 512
    $region29: #{a_call__.9} parent=1 // pred_fallthru
      _
    %v53 = vld [vmem:[%s0] sm:$0xff]
    %v54 = vld [vmem:[%s0 + $0x8] sm:$0xff]
    %v55 = vld [vmem:[#allocation2] sm:$0xff]
    %v56 = vld [vmem:[#allocation2 + $0x8] sm:$0xff]
    %v57 = vld [vmem:[#allocation2 + $0x10] sm:$0xff]
    %v58 = vld [vmem:[#allocation2 + $0x18] sm:$0xff]
    %v59 = vld [vmem:[%s1] sm:$0xff]
    %v60 = vld [vmem:[%s1 + $0x8] sm:$0xff]
    %v61 = vld [vmem:[#allocation5] sm:$0xff]
    %v62 = vld [vmem:[#allocation5 + $0x8] sm:$0xff]
    %v63 = vld [vmem:[#allocation5 + $0x10] sm:$0xff]
    %v64 = vld [vmem:[#allocation5 + $0x18] sm:$0xff]
    %vm65 = vcmask 261120
    %v67 = vsel %vm65, %v59, 0
    %v70 = vsel %vm65, %v60, 0
    %72 = vmatpush.msra.mxu0 0.0
    %73 = vmatpush.msra.mxu0 0.0
    %74 = vmatpush.msra.mxu0 0.0
    %75 = vmatpush.msra.mxu0 0.0
    %76 = vmatpush.msra.mxu0 0.0
    %77 = vmatpush.msra.mxu0 0.0
    %78 = vmatpush.msra.mxu0 0.0
    %79 = vmatpush.msra.mxu0 0.0
    %80 = vmatpush.msra.mxu0 0.0
    %81 = vmatpush.msra.mxu0 0.0
    %82 = vmatpush.msra.mxu0 0.0
    %83 = vmatpush.msra.mxu0 0.0
    %84 = vmatpush.msra.mxu0 %v64
    %85 = vmatpush.msra.mxu0 %v63
    %86 = vmatpush.msra.mxu0 %v62
    %87 = vmatpush.msra.mxu0 %v61
    %88 = vmatmul.f32.gmra.mxu0 %v67
    %v89 = vpop.f32.mrf.mxu0
    %v90 = vadd.f32 0.0, %v89
    %91 = vmatmul.f32.gmra.mxu0 %v70
    %v92 = vpop.f32.mrf.mxu0
    %v93 = vadd.f32 0.0, %v92
    %94 = vdwg.mxu0
    %v96 = vsel %vm65, %v53, 0
    %v99 = vsel %vm65, %v54, 0
    %101 = vmatpush.msra.mxu0 0.0
    %102 = vmatpush.msra.mxu0 0.0
    %103 = vmatpush.msra.mxu0 0.0
    %104 = vmatpush.msra.mxu0 0.0
    %105 = vmatpush.msra.mxu0 0.0
    %106 = vmatpush.msra.mxu0 0.0
    %107 = vmatpush.msra.mxu0 0.0
    %108 = vmatpush.msra.mxu0 0.0
    %109 = vmatpush.msra.mxu0 0.0
    %110 = vmatpush.msra.mxu0 0.0
    %111 = vmatpush.msra.mxu0 0.0
    %112 = vmatpush.msra.mxu0 0.0
    %113 = vmatpush.msra.mxu0 %v58
    %114 = vmatpush.msra.mxu0 %v57
    %115 = vmatpush.msra.mxu0 %v56
    %116 = vmatpush.msra.mxu0 %v55
    %117 = vmatmul.f32.gmra.mxu0 %v96
    %v118 = vpop.f32.mrf.mxu0
    %v119 = vadd.f32 %v90, %v118
    %120 = vmatmul.f32.gmra.mxu0 %v99
    %v121 = vpop.f32.mrf.mxu0
    %v122 = vadd.f32 %v93, %v121
    %123 = vdwg.mxu0
    %v124 = vld [vmem:[%s4] sm:$0x1]
    %v126 = vperm.slane %v124, 0
    %v128 = vadd.f32 %v119, %v126
    %v129 = vadd.f32 %v122, %v126
    %130 = vst [vmem:[#allocation7] sm:$0xff] %v128
    %131 = vst [vmem:[#allocation7 + $0x8] sm:$0xff] %v129
    // Predicated region
    $region30: #{a_call__.9} parent=1 // pred_check
      _
    $region31: #{a_call__.9} parent=1 // pred_check_branch
      %133 = sbr.rel (0) target = $region33
    $region32: #{a_call__.9} parent=1 // pred_region
      %135 = vsyncadd [#allocation4], 0
      %s136 = sshll.u32 [#allocation7], 4
      %s137 = int_to_ptr.vmem [resolvable:$true] %s136
      %s138 = sshll.u32 %s5, 4
      %s139 = int_to_ptr.hbm [resolvable:$true] %s138
      %144 = dma.vmem_to_hbm [thread:$0]  %s137, 256, %s139, [#allocation4], 128, 128, 8
    $region33: #{a_call__.9} parent=1 // pred_fallthru
      _
    // Predicated region
    $region34: #{a_call__.9} parent=1 // pred_check
      _
    $region35: #{a_call__.9} parent=1 // pred_check_branch
      %146 = sbr.rel (0) target = $region37
    $region36: #{a_call__.9} parent=1 // pred_region
      %148 = dma.done [#allocation4], 256
    $region37: #{a_call__.9} parent=1 // pred_fallthru
      _
    %149 = vsyncpa [#allocation3], 1
    %150 = vsyncpa [#allocation6], 1
    %151 = vsyncpa [#allocation4], 1

// kernel: a_call__.6
$region0: #{a_call__.6}
  #allocation0 [shape = 'u32[]', space=smem, size = 0x4, offset = 0x4, fixed_abs, tag = 'smem constant byte address 0x4 - core index']
  #allocation1 [shape = 'u32[72,128]{1,0:T(1,128)}', space=vmem, size = 0x9000, scoped, tag = 'internal scratch']
  #allocation2 [shape = 'f32[2,32]{1,0:T(2,128)}', space=vmem, size = 0x400, scoped, tag = 'scratch operand']
  #allocation3 [shape = 'f32[2,32]{1,0:T(2,128)}', space=vmem, size = 0x400, scoped, tag = 'scratch operand']
  #allocation4 [shape = 'f32[2,32]{1,0:T(2,128)}', space=vmem, size = 0x400, scoped, tag = 'scratch operand']
  #allocation5 [shape = 'f32[2,32]{1,0:T(2,128)}', space=vmem, size = 0x400, scoped, tag = 'scratch operand']
  %s0 = inlined_call_operand.vmem [shape: f32[2,8,2,128], index: 0, kind: input, shape index: {}, may-alias: {0,1}]
  %s1 = inlined_call_operand.vmem [shape: f32[2,8,2,128], index: 1, kind: input, shape index: {}, may-alias: {0,1}]
  %s2 = inlined_call_operand.hbm [shape: f32[2,32,128], index: 2, kind: input, shape index: {}]
  %s3 = inlined_call_operand.vmem [shape: f32[8,2,32], index: 3, kind: output, shape index: {0}]
  %s4 = inlined_call_operand.vmem [shape: f32[8,2,32], index: 4, kind: output, shape index: {1}]
  %5 = xla_tuple %s3, %s4
  %s6 = sld [smem:[#allocation0]]
  $region38: #{a_call__.6} parent=0
    _
  %s8 = ssub.s32 1, %s6
  %s9 = scalar_select 0, %s8, %s6
  $region1: #{a_call__.6} parent=0
    #allocation6 [shape = 'u8[32768]{0}', space=vmem, size = 0x8000, scoped, tag = 'input window, operand 2, single buffered']
    #allocation7 [shape = 's32[1]{0}', space=sflag, size = 0x4, scoped, tag = 'scoped memory for a_call__.6']
    %10 = vsyncpa [#allocation7], 0
    // Predicated region
    $region2: #{a_call__.6} parent=1 // pred_check
      _
    $region3: #{a_call__.6} parent=1 // pred_check_branch
      %12 = sbr.rel (0) target = $region5
    $region4: #{a_call__.6} parent=1 // pred_region
      _
    $region5: #{a_call__.6} parent=1 // pred_fallthru
      _
    // Predicated region
    $region6: #{a_call__.6} parent=1 // pred_check
      _
    $region7: #{a_call__.6} parent=1 // pred_check_branch
      %14 = sbr.rel (0) target = $region9
    $region8: #{a_call__.6} parent=1 // pred_region
      %s15 = ssub.s32 0, 0
      %s16 = smul.u32 8, %s15
      %p17 = scmp.lt.s32.totalorder %s16, 7
      %s18 = scalar_select %p17, %s16, 7
      %s19 = sadd.s32 %s18, 8
      %s20 = smul.addr %s19, 2
      %s21 = scalar_lea.vmem %s1, %s20
      %s22 = ssub.s32 0, 0
      %s23 = smul.u32 8, %s22
    $region9: #{a_call__.6} parent=1 // pred_fallthru
      _
    // Predicated region
    $region10: #{a_call__.6} parent=1 // pred_check
      _
    $region11: #{a_call__.6} parent=1 // pred_check_branch
      %25 = sbr.rel (0) target = $region13
    $region12: #{a_call__.6} parent=1 // pred_region
      %27 = vsyncadd [#allocation7], 0
      %s28 = sshll.u32 %s2, 4
      %s29 = int_to_ptr.hbm [resolvable:$true] %s28
      %s30 = sshll.u32 [#allocation6], 4
      %s31 = int_to_ptr.vmem [resolvable:$true] %s30
      %36 = dma.hbm_to_vmem [thread:$0]  %s29, 1024, %s31, [#allocation7], 128, 128, 8
    $region13: #{a_call__.6} parent=1 // pred_fallthru
      _
    // Predicated region
    $region14: #{a_call__.6} parent=1 // pred_check
      _
    $region15: #{a_call__.6} parent=1 // pred_check_branch
      %38 = sbr.rel (0) target = $region17
    $region16: #{a_call__.6} parent=1 // pred_region
      %40 = dma.done [#allocation7], 1024
    $region17: #{a_call__.6} parent=1 // pred_fallthru
      _
    %s41 = ssub.s32 0, 0
    %s42 = smul.u32 8, %s41
    %p43 = scmp.lt.s32.totalorder %s42, 7
    %s44 = scalar_select %p43, %s42, 7
    %s45 = sadd.s32 %s44, 8
    %s46 = smul.addr %s45, 2
    %s47 = scalar_lea.vmem %s1, %s46
    %s48 = ssub.s32 0, 0
    %s49 = smul.u32 8, %s48
    %p50 = scmp.lt.s32.totalorder %s49, 7
    %s51 = scalar_select %p50, %s49, 7
    %s52 = smul.addr %s51, 2
    %s53 = scalar_lea.vmem %s4, %s52
    %s54 = ssub.s32 0, 0
    %s55 = smul.u32 8, %s54
    %p56 = scmp.lt.s32.totalorder %s55, 7
    %s57 = scalar_select %p56, %s55, 7
    %s58 = sadd.s32 %s57, 8
    %s59 = smul.addr %s58, 2
    %s60 = scalar_lea.vmem %s1, %s59
    %s61 = ssub.s32 0, 0
    %s62 = smul.u32 8, %s61
    %s63 = ssub.s32 0, 0
    %s64 = smul.u32 8, %s63
    %p65 = scmp.lt.s32.totalorder %s64, 7
    %s66 = scalar_select %p65, %s64, 7
    %s67 = smul.addr %s66, 2
    %s68 = scalar_lea.vmem %s4, %s67
    %s69 = ssub.s32 0, 0
    %s70 = smul.u32 8, %s69
    %p71 = scmp.eq.s32.totalorder 0, 0
    // Predicated region
    $region18: #{a_call__.6} parent=1 // pred_check
      %p72 = pneg %p71
    $region19: #{a_call__.6} parent=1 // pred_check_branch
      %74 = sbr.rel (%p72) target = $region21
    $region20: #{a_call__.6} parent=1 // pred_region
      %vm75 = vcmask 254976
      %76 = vst.msk [vmem:[#allocation2] sm:$0x3] %vm75, 0.0
      %77 = vst.msk [vmem:[#allocation3] sm:$0x3] %vm75, 0.0
      %78 = vst.msk [vmem:[#allocation4] sm:$0x3] %vm75, 0.0
      %79 = vst.msk [vmem:[#allocation5] sm:$0x3] %vm75, 0.0
    $region21: #{a_call__.6} parent=1 // pred_fallthru
      _
    %v80 = vld [vmem:[#allocation6] sm:$0xff]
    %v81 = vld [vmem:[#allocation6 + $0x8] sm:$0xff]
    %v82 = vld [vmem:[#allocation6 + $0x10] sm:$0xff]
    %v83 = vld [vmem:[#allocation6 + $0x18] sm:$0xff]
    %s84 = scalar_lea.vmem [#allocation6], 32
    %v85 = vld [vmem:[%s84] sm:$0xff]
    %v86 = vld [vmem:[%s84 + $0x8] sm:$0xff]
    %v87 = vld [vmem:[%s84 + $0x10] sm:$0xff]
    %v88 = vld [vmem:[%s84 + $0x18] sm:$0xff]
    %v89 = vld [vmem:[%s0] sm:$0x3]
    %v90 = vld [vmem:[#allocation2] sm:$0x3]
    %vm91 = vcmask 261120
    %v93 = vsel %vm91, %v90, 0
    %95 = vmatpush.msra.mxu0 0.0
    %96 = vmatpush.msra.mxu0 0.0
    %97 = vmatpush.msra.mxu0 0.0
    %98 = vmatpush.msra.mxu0 0.0
    %99 = vmatpush.msra.mxu0 0.0
    %100 = vmatpush.msra.mxu0 0.0
    %101 = vmatpush.msra.mxu0 0.0
    %102 = vmatpush.msra.mxu0 0.0
    %103 = vmatpush.msra.mxu0 0.0
    %104 = vmatpush.msra.mxu0 0.0
    %105 = vmatpush.msra.mxu0 0.0
    %106 = vmatpush.msra.mxu0 0.0
    %107 = vmatpush.msra.mxu0 %v83
    %108 = vmatpush.msra.mxu0 %v82
    %109 = vmatpush.msra.mxu0 %v81
    %110 = vmatpush.msra.mxu0 %v80
    %111 = vmatmul.f32.gmra.mxu0 %v93
    %v112 = vpop.f32.mrf.mxu0
    %v113 = vadd.f32 0.0, %v112
    %114 = vdwg.mxu0
    %v115 = vadd.f32 %v89, %v113
    %s116 = scalar_lea.vmem %s60, 14
    %v117 = vld [vmem:[%s116] sm:$0x3]
    %v118 = vld [vmem:[#allocation4] sm:$0x3]
    %v120 = vsel %vm91, %v118, 0
    %122 = vmatpush.msra.mxu0 0.0
    %123 = vmatpush.msra.mxu0 0.0
    %124 = vmatpush.msra.mxu0 0.0
    %125 = vmatpush.msra.mxu0 0.0
    %126 = vmatpush.msra.mxu0 0.0
    %127 = vmatpush.msra.mxu0 0.0
    %128 = vmatpush.msra.mxu0 0.0
    %129 = vmatpush.msra.mxu0 0.0
    %130 = vmatpush.msra.mxu0 0.0
    %131 = vmatpush.msra.mxu0 0.0
    %132 = vmatpush.msra.mxu0 0.0
    %133 = vmatpush.msra.mxu0 0.0
    %134 = vmatpush.msra.mxu0 %v88
    %135 = vmatpush.msra.mxu0 %v87
    %136 = vmatpush.msra.mxu0 %v86
    %137 = vmatpush.msra.mxu0 %v85
    %138 = vmatmul.f32.gmra.mxu0 %v120
    %v139 = vpop.f32.mrf.mxu0
    %v140 = vadd.f32 0.0, %v139
    %141 = vdwg.mxu0
    %v142 = vadd.f32 %v117, %v140
    %v143 = vld [vmem:[#allocation3] sm:$0x3]
    %v144 = vxor.u32 %v115, 2147483648
    %v145 = vmul.f32 %v144, 1.442695
    %v146 = vpow.pop %v145
    %v147 = vadd.f32 %v146, 1.0
    %v148 = vrcp.pop %v147
    %v149 = vmul.f32 %v147, %v148
    %v150 = vsub.f32 1.0, %v149
    %v151 = vmul.f32 %v148, %v150
    %v152 = vadd.f32 %v148, %v151
    %vm153 = vweird.f32 %v147
    %vm154 = vweird.f32 %v148
    %vm155 = vmor %vm153, %vm154
    %v156 = vsel %vm155, %v148, %v152
    %v157 = vand.u32 2147483647, %v147
    %vm158 = vcmp.eq.f32.partialorder %v157, 8.507059e+37
    %v159 = vand.u32 %v147, 2147483648
    %v160 = vor.u32 1.1754944e-38, %v159
    %v161 = vsel %vm158, %v160, %v156
    %v162 = vmul.f32 1.0, %v161
    %v163 = vtanh.pop %v115
    %165 = vrot.lane.b32.xlu0 %v143, 32
    %v166 = vpop.permute.xlu0 %165
    %v168 = vmul.f32 %v162, %v166
    %170 = vrot.lane.b32.xlu0 %v163, 64
    %v171 = vpop.permute.xlu0 %170
    %v173 = vmul.f32 %v162, %v171
    %175 = vrot.lane.b32.xlu0 %v173, 32
    %v176 = vpop.permute.xlu0 %175
    %v178 = vadd.f32 %v168, %v176
    %v179 = vtanh.pop %v178
    %181 = vrot.lane.b32.xlu0 %v179, 64
    %v182 = vpop.permute.xlu0 %181
    %v184 = vmul.f32 %v162, %v182
    %v185 = vld [vmem:[#allocation5] sm:$0x3]
    %v186 = vxor.u32 %v142, 2147483648
    %v187 = vmul.f32 %v186, 1.442695
    %v188 = vpow.pop %v187
    %v189 = vadd.f32 %v188, 1.0
    %v190 = vrcp.pop %v189
    %v191 = vmul.f32 %v189, %v190
    %v192 = vsub.f32 1.0, %v191
    %v193 = vmul.f32 %v190, %v192
    %v194 = vadd.f32 %v190, %v193
    %vm195 = vweird.f32 %v189
    %vm196 = vweird.f32 %v190
    %vm197 = vmor %vm195, %vm196
    %v198 = vsel %vm197, %v190, %v194
    %v199 = vand.u32 2147483647, %v189
    %vm200 = vcmp.eq.f32.partialorder %v199, 8.507059e+37
    %v201 = vand.u32 %v189, 2147483648
    %v202 = vor.u32 1.1754944e-38, %v201
    %v203 = vsel %vm200, %v202, %v198
    %v204 = vmul.f32 1.0, %v203
    %v205 = vtanh.pop %v142
    %207 = vrot.lane.b32.xlu0 %v185, 32
    %v208 = vpop.permute.xlu0 %207
    %v210 = vmul.f32 %v204, %v208
    %212 = vrot.lane.b32.xlu0 %v205, 64
    %v213 = vpop.permute.xlu0 %212
    %v215 = vmul.f32 %v204, %v213
    %217 = vrot.lane.b32.xlu0 %v215, 32
    %v218 = vpop.permute.xlu0 %217
    %v220 = vadd.f32 %v210, %v218
    %v221 = vtanh.pop %v220
    %223 = vrot.lane.b32.xlu0 %v221, 64
    %v224 = vpop.permute.xlu0 %223
    %v226 = vmul.f32 %v204, %v224
    %228 = vrot.lane.b32.xlu0 %v184, 32
    %v229 = vpop.permute.xlu0 %228
    %vm231 = vcmask 254976
    %232 = vst.msk [vmem:[#allocation2] sm:$0x3] %vm231, %v229
    %234 = vrot.lane.b32.xlu0 %v178, 96
    %v235 = vpop.permute.xlu0 %234
    %237 = vst.msk [vmem:[#allocation3] sm:$0x3] %vm231, %v235
    %239 = vrot.lane.b32.xlu0 %v226, 32
    %v240 = vpop.permute.xlu0 %239
    %242 = vst.msk [vmem:[#allocation4] sm:$0x3] %vm231, %v240
    %244 = vrot.lane.b32.xlu0 %v220, 96
    %v245 = vpop.permute.xlu0 %244
    %247 = vst.msk [vmem:[#allocation5] sm:$0x3] %vm231, %v245
    %248 = vst.msk [vmem:[%s3] sm:$0x3] %vm231, %v229
    %s249 = scalar_lea.vmem %s68, 14
    %250 = vst.msk [vmem:[%s249] sm:$0x3] %vm231, %v240
    %s251 = scalar_lea.vmem %s0, 2
    %v252 = vld [vmem:[%s251] sm:$0x3]
    %v253 = vld [vmem:[#allocation2] sm:$0x3]
    %v255 = vsel %vm91, %v253, 0
    %257 = vmatpush.msra.mxu0 0.0
    %258 = vmatpush.msra.mxu0 0.0
    %259 = vmatpush.msra.mxu0 0.0
    %260 = vmatpush.msra.mxu0 0.0
    %261 = vmatpush.msra.mxu0 0.0
    %262 = vmatpush.msra.mxu0 0.0
    %263 = vmatpush.msra.mxu0 0.0
    %264 = vmatpush.msra.mxu0 0.0
    %265 = vmatpush.msra.mxu0 0.0
    %266 = vmatpush.msra.mxu0 0.0
    %267 = vmatpush.msra.mxu0 0.0
    %268 = vmatpush.msra.mxu0 0.0
    %269 = vmatpush.msra.mxu0 %v83
    %270 = vmatpush.msra.mxu0 %v82
    %271 = vmatpush.msra.mxu0 %v81
    %272 = vmatpush.msra.mxu0 %v80
    %273 = vmatmul.f32.gmra.mxu0 %v255
    %v274 = vpop.f32.mrf.mxu0
    %v275 = vadd.f32 0.0, %v274
    %276 = vdwg.mxu0
    %v277 = vadd.f32 %v252, %v275
    %s278 = scalar_lea.vmem %s60, 12
    %v279 = vld [vmem:[%s278] sm:$0x3]
    %v280 = vld [vmem:[#allocation4] sm:$0x3]
    %v282 = vsel %vm91, %v280, 0
    %284 = vmatpush.msra.mxu0 0.0
    %285 = vmatpush.msra.mxu0 0.0
    %286 = vmatpush.msra.mxu0 0.0
    %287 = vmatpush.msra.mxu0 0.0
    %288 = vmatpush.msra.mxu0 0.0
    %289 = vmatpush.msra.mxu0 0.0
    %290 = vmatpush.msra.mxu0 0.0
    %291 = vmatpush.msra.mxu0 0.0
    %292 = vmatpush.msra.mxu0 0.0
    %293 = vmatpush.msra.mxu0 0.0
    %294 = vmatpush.msra.mxu0 0.0
    %295 = vmatpush.msra.mxu0 0.0
    %296 = vmatpush.msra.mxu0 %v88
    %297 = vmatpush.msra.mxu0 %v87
    %298 = vmatpush.msra.mxu0 %v86
    %299 = vmatpush.msra.mxu0 %v85
    %300 = vmatmul.f32.gmra.mxu0 %v282
    %v301 = vpop.f32.mrf.mxu0
    %v302 = vadd.f32 0.0, %v301
    %303 = vdwg.mxu0
    %v304 = vadd.f32 %v279, %v302
    %v305 = vld [vmem:[#allocation3] sm:$0x3]
    %v306 = vxor.u32 %v277, 2147483648
    %v307 = vmul.f32 %v306, 1.442695
    %v308 = vpow.pop %v307
    %v309 = vadd.f32 %v308, 1.0
    %v310 = vrcp.pop %v309
    %v311 = vmul.f32 %v309, %v310
    %v312 = vsub.f32 1.0, %v311
    %v313 = vmul.f32 %v310, %v312
    %v314 = vadd.f32 %v310, %v313
    %vm315 = vweird.f32 %v309
    %vm316 = vweird.f32 %v310
    %vm317 = vmor %vm315, %vm316
    %v318 = vsel %vm317, %v310, %v314
    %v319 = vand.u32 2147483647, %v309
    %vm320 = vcmp.eq.f32.partialorder %v319, 8.507059e+37
    %v321 = vand.u32 %v309, 2147483648
    %v322 = vor.u32 1.1754944e-38, %v321
    %v323 = vsel %vm320, %v322, %v318
    %v324 = vmul.f32 1.0, %v323
    %v325 = vtanh.pop %v277
    %327 = vrot.lane.b32.xlu0 %v305, 32
    %v328 = vpop.permute.xlu0 %327
    %v330 = vmul.f32 %v324, %v328
    %332 = vrot.lane.b32.xlu0 %v325, 64
    %v333 = vpop.permute.xlu0 %332
    %v335 = vmul.f32 %v324, %v333
    %337 = vrot.lane.b32.xlu0 %v335, 32
    %v338 = vpop.permute.xlu0 %337
    %v340 = vadd.f32 %v330, %v338
    %v341 = vtanh.pop %v340
    %343 = vrot.lane.b32.xlu0 %v341, 64
    %v344 = vpop.permute.xlu0 %343
    %v346 = vmul.f32 %v324, %v344
    %v347 = vld [vmem:[#allocation5] sm:$0x3]
    %v348 = vxor.u32 %v304, 2147483648
    %v349 = vmul.f32 %v348, 1.442695
    %v350 = vpow.pop %v349
    %v351 = vadd.f32 %v350, 1.0
    %v352 = vrcp.pop %v351
    %v353 = vmul.f32 %v351, %v352
    %v354 = vsub.f32 1.0, %v353
    %v355 = vmul.f32 %v352, %v354
    %v356 = vadd.f32 %v352, %v355
    %vm357 = vweird.f32 %v351
    %vm358 = vweird.f32 %v352
    %vm359 = vmor %vm357, %vm358
    %v360 = vsel %vm359, %v352, %v356
    %v361 = vand.u32 2147483647, %v351
    %vm362 = vcmp.eq.f32.partialorder %v361, 8.507059e+37
    %v363 = vand.u32 %v351, 2147483648
    %v364 = vor.u32 1.1754944e-38, %v363
    %v365 = vsel %vm362, %v364, %v360
    %v366 = vmul.f32 1.0, %v365
    %v367 = vtanh.pop %v304
    %369 = vrot.lane.b32.xlu0 %v347, 32
    %v370 = vpop.permute.xlu0 %369
    %v372 = vmul.f32 %v366, %v370
    %374 = vrot.lane.b32.xlu0 %v367, 64
    %v375 = vpop.permute.xlu0 %374
    %v377 = vmul.f32 %v366, %v375
    %379 = vrot.lane.b32.xlu0 %v377, 32
    %v380 = vpop.permute.xlu0 %379
    %v382 = vadd.f32 %v372, %v380
    %v383 = vtanh.pop %v382
    %385 = vrot.lane.b32.xlu0 %v383, 64
    %v386 = vpop.permute.xlu0 %385
    %v388 = vmul.f32 %v366, %v386
    %390 = vrot.lane.b32.xlu0 %v346, 32
    %v391 = vpop.permute.xlu0 %390
    %393 = vst.msk [vmem:[#allocation2] sm:$0x3] %vm231, %v391
    %395 = vrot.lane.b32.xlu0 %v340, 96
    %v396 = vpop.permute.xlu0 %395
    %398 = vst.msk [vmem:[#allocation3] sm:$0x3] %vm231, %v396
    %400 = vrot.lane.b32.xlu0 %v388, 32
    %v401 = vpop.permute.xlu0 %400
    %403 = vst.msk [vmem:[#allocation4] sm:$0x3] %vm231, %v401
    %405 = vrot.lane.b32.xlu0 %v382, 96
    %v406 = vpop.permute.xlu0 %405
    %408 = vst.msk [vmem:[#allocation5] sm:$0x3] %vm231, %v406
    %s409 = scalar_lea.vmem %s3, 2
    %410 = vst.msk [vmem:[%s409] sm:$0x3] %vm231, %v391
    %s411 = scalar_lea.vmem %s68, 12
    %412 = vst.msk [vmem:[%s411] sm:$0x3] %vm231, %v401
    %s413 = scalar_lea.vmem %s0, 4
    %v414 = vld [vmem:[%s413] sm:$0x3]
    %v415 = vld [vmem:[#allocation2] sm:$0x3]
    %v417 = vsel %vm91, %v415, 0
    %419 = vmatpush.msra.mxu0 0.0
    %420 = vmatpush.msra.mxu0 0.0
    %421 = vmatpush.msra.mxu0 0.0
    %422 = vmatpush.msra.mxu0 0.0
    %423 = vmatpush.msra.mxu0 0.0
    %424 = vmatpush.msra.mxu0 0.0
    %425 = vmatpush.msra.mxu0 0.0
    %426 = vmatpush.msra.mxu0 0.0
    %427 = vmatpush.msra.mxu0 0.0
    %428 = vmatpush.msra.mxu0 0.0
    %429 = vmatpush.msra.mxu0 0.0
    %430 = vmatpush.msra.mxu0 0.0
    %431 = vmatpush.msra.mxu0 %v83
    %432 = vmatpush.msra.mxu0 %v82
    %433 = vmatpush.msra.mxu0 %v81
    %434 = vmatpush.msra.mxu0 %v80
    %435 = vmatmul.f32.gmra.mxu0 %v417
    %v436 = vpop.f32.mrf.mxu0
    %v437 = vadd.f32 0.0, %v436
    %438 = vdwg.mxu0
    %v439 = vadd.f32 %v414, %v437
    %s440 = scalar_lea.vmem %s60, 10
    %v441 = vld [vmem:[%s440] sm:$0x3]
    %v442 = vld [vmem:[#allocation4] sm:$0x3]
    %v444 = vsel %vm91, %v442, 0
    %446 = vmatpush.msra.mxu0 0.0
    %447 = vmatpush.msra.mxu0 0.0
    %448 = vmatpush.msra.mxu0 0.0
    %449 = vmatpush.msra.mxu0 0.0
    %450 = vmatpush.msra.mxu0 0.0
    %451 = vmatpush.msra.mxu0 0.0
    %452 = vmatpush.msra.mxu0 0.0
    %453 = vmatpush.msra.mxu0 0.0
    %454 = vmatpush.msra.mxu0 0.0
    %455 = vmatpush.msra.mxu0 0.0
    %456 = vmatpush.msra.mxu0 0.0
    %457 = vmatpush.msra.mxu0 0.0
    %458 = vmatpush.msra.mxu0 %v88
    %459 = vmatpush.msra.mxu0 %v87
    %460 = vmatpush.msra.mxu0 %v86
    %461 = vmatpush.msra.mxu0 %v85
    %462 = vmatmul.f32.gmra.mxu0 %v444
    %v463 = vpop.f32.mrf.mxu0
    %v464 = vadd.f32 0.0, %v463
    %465 = vdwg.mxu0
    %v466 = vadd.f32 %v441, %v464
    %v467 = vld [vmem:[#allocation3] sm:$0x3]
    %v468 = vxor.u32 %v439, 2147483648
    %v469 = vmul.f32 %v468, 1.442695
    %v470 = vpow.pop %v469
    %v471 = vadd.f32 %v470, 1.0
    %v472 = vrcp.pop %v471
    %v473 = vmul.f32 %v471, %v472
    %v474 = vsub.f32 1.0, %v473
    %v475 = vmul.f32 %v472, %v474
    %v476 = vadd.f32 %v472, %v475
    %vm477 = vweird.f32 %v471
    %vm478 = vweird.f32 %v472
    %vm479 = vmor %vm477, %vm478
    %v480 = vsel %vm479, %v472, %v476
    %v481 = vand.u32 2147483647, %v471
    %vm482 = vcmp.eq.f32.partialorder %v481, 8.507059e+37
    %v483 = vand.u32 %v471, 2147483648
    %v484 = vor.u32 1.1754944e-38, %v483
    %v485 = vsel %vm482, %v484, %v480
    %v486 = vmul.f32 1.0, %v485
    %v487 = vtanh.pop %v439
    %489 = vrot.lane.b32.xlu0 %v467, 32
    %v490 = vpop.permute.xlu0 %489
    %v492 = vmul.f32 %v486, %v490
    %494 = vrot.lane.b32.xlu0 %v487, 64
    %v495 = vpop.permute.xlu0 %494
    %v497 = vmul.f32 %v486, %v495
    %499 = vrot.lane.b32.xlu0 %v497, 32
    %v500 = vpop.permute.xlu0 %499
    %v502 = vadd.f32 %v492, %v500
    %v503 = vtanh.pop %v502
    %505 = vrot.lane.b32.xlu0 %v503, 64
    %v506 = vpop.permute.xlu0 %505
    %v508 = vmul.f32 %v486, %v506
    %v509 = vld [vmem:[#allocation5] sm:$0x3]
    %v510 = vxor.u32 %v466, 2147483648
    %v511 = vmul.f32 %v510, 1.442695
    %v512 = vpow.pop %v511
    %v513 = vadd.f32 %v512, 1.0
    %v514 = vrcp.pop %v513
    %v515 = vmul.f32 %v513, %v514
    %v516 = vsub.f32 1.0, %v515
    %v517 = vmul.f32 %v514, %v516
    %v518 = vadd.f32 %v514, %v517
    %vm519 = vweird.f32 %v513
    %vm520 = vweird.f32 %v514
    %vm521 = vmor %vm519, %vm520
    %v522 = vsel %vm521, %v514, %v518
    %v523 = vand.u32 2147483647, %v513
    %vm524 = vcmp.eq.f32.partialorder %v523, 8.507059e+37
    %v525 = vand.u32 %v513, 2147483648
    %v526 = vor.u32 1.1754944e-38, %v525
    %v527 = vsel %vm524, %v526, %v522
    %v528 = vmul.f32 1.0, %v527
    %v529 = vtanh.pop %v466
    %531 = vrot.lane.b32.xlu0 %v509, 32
    %v532 = vpop.permute.xlu0 %531
    %v534 = vmul.f32 %v528, %v532
    %536 = vrot.lane.b32.xlu0 %v529, 64
    %v537 = vpop.permute.xlu0 %536
    %v539 = vmul.f32 %v528, %v537
    %541 = vrot.lane.b32.xlu0 %v539, 32
    %v542 = vpop.permute.xlu0 %541
    %v544 = vadd.f32 %v534, %v542
    %v545 = vtanh.pop %v544
    %547 = vrot.lane.b32.xlu0 %v545, 64
    %v548 = vpop.permute.xlu0 %547
    %v550 = vmul.f32 %v528, %v548
    %552 = vrot.lane.b32.xlu0 %v508, 32
    %v553 = vpop.permute.xlu0 %552
    %555 = vst.msk [vmem:[#allocation2] sm:$0x3] %vm231, %v553
    %557 = vrot.lane.b32.xlu0 %v502, 96
    %v558 = vpop.permute.xlu0 %557
    %560 = vst.msk [vmem:[#allocation3] sm:$0x3] %vm231, %v558
    %562 = vrot.lane.b32.xlu0 %v550, 32
    %v563 = vpop.permute.xlu0 %562
    %565 = vst.msk [vmem:[#allocation4] sm:$0x3] %vm231, %v563
    %567 = vrot.lane.b32.xlu0 %v544, 96
    %v568 = vpop.permute.xlu0 %567
    %570 = vst.msk [vmem:[#allocation5] sm:$0x3] %vm231, %v568
    %s571 = scalar_lea.vmem %s3, 4
    %572 = vst.msk [vmem:[%s571] sm:$0x3] %vm231, %v553
    %s573 = scalar_lea.vmem %s68, 10
    %574 = vst.msk [vmem:[%s573] sm:$0x3] %vm231, %v563
    %s575 = scalar_lea.vmem %s0, 6
    %v576 = vld [vmem:[%s575] sm:$0x3]
    %v577 = vld [vmem:[#allocation2] sm:$0x3]
    %v579 = vsel %vm91, %v577, 0
    %581 = vmatpush.msra.mxu0 0.0
    %582 = vmatpush.msra.mxu0 0.0
    %583 = vmatpush.msra.mxu0 0.0
    %584 = vmatpush.msra.mxu0 0.0
    %585 = vmatpush.msra.mxu0 0.0
    %586 = vmatpush.msra.mxu0 0.0
    %587 = vmatpush.msra.mxu0 0.0
    %588 = vmatpush.msra.mxu0 0.0
    %589 = vmatpush.msra.mxu0 0.0
    %590 = vmatpush.msra.mxu0 0.0
    %591 = vmatpush.msra.mxu0 0.0
    %592 = vmatpush.msra.mxu0 0.0
    %593 = vmatpush.msra.mxu0 %v83
    %594 = vmatpush.msra.mxu0 %v82
    %595 = vmatpush.msra.mxu0 %v81
    %596 = vmatpush.msra.mxu0 %v80
    %597 = vmatmul.f32.gmra.mxu0 %v579
    %v598 = vpop.f32.mrf.mxu0
    %v599 = vadd.f32 0.0, %v598
    %600 = vdwg.mxu0
    %v601 = vadd.f32 %v576, %v599
    %s602 = scalar_lea.vmem %s60, 8
    %v603 = vld [vmem:[%s602] sm:$0x3]
    %v604 = vld [vmem:[#allocation4] sm:$0x3]
    %v606 = vsel %vm91, %v604, 0
    %608 = vmatpush.msra.mxu0 0.0
    %609 = vmatpush.msra.mxu0 0.0
    %610 = vmatpush.msra.mxu0 0.0
    %611 = vmatpush.msra.mxu0 0.0
    %612 = vmatpush.msra.mxu0 0.0
    %613 = vmatpush.msra.mxu0 0.0
    %614 = vmatpush.msra.mxu0 0.0
    %615 = vmatpush.msra.mxu0 0.0
    %616 = vmatpush.msra.mxu0 0.0
    %617 = vmatpush.msra.mxu0 0.0
    %618 = vmatpush.msra.mxu0 0.0
    %619 = vmatpush.msra.mxu0 0.0
    %620 = vmatpush.msra.mxu0 %v88
    %621 = vmatpush.msra.mxu0 %v87
    %622 = vmatpush.msra.mxu0 %v86
    %623 = vmatpush.msra.mxu0 %v85
    %624 = vmatmul.f32.gmra.mxu0 %v606
    %v625 = vpop.f32.mrf.mxu0
    %v626 = vadd.f32 0.0, %v625
    %627 = vdwg.mxu0
    %v628 = vadd.f32 %v603, %v626
    %v629 = vld [vmem:[#allocation3] sm:$0x3]
    %v630 = vxor.u32 %v601, 2147483648
    %v631 = vmul.f32 %v630, 1.442695
    %v632 = vpow.pop %v631
    %v633 = vadd.f32 %v632, 1.0
    %v634 = vrcp.pop %v633
    %v635 = vmul.f32 %v633, %v634
    %v636 = vsub.f32 1.0, %v635
    %v637 = vmul.f32 %v634, %v636
    %v638 = vadd.f32 %v634, %v637
    %vm639 = vweird.f32 %v633
    %vm640 = vweird.f32 %v634
    %vm641 = vmor %vm639, %vm640
    %v642 = vsel %vm641, %v634, %v638
    %v643 = vand.u32 2147483647, %v633
    %vm644 = vcmp.eq.f32.partialorder %v643, 8.507059e+37
    %v645 = vand.u32 %v633, 2147483648
    %v646 = vor.u32 1.1754944e-38, %v645
    %v647 = vsel %vm644, %v646, %v642
    %v648 = vmul.f32 1.0, %v647
    %v649 = vtanh.pop %v601
    %651 = vrot.lane.b32.xlu0 %v629, 32
    %v652 = vpop.permute.xlu0 %651
    %v654 = vmul.f32 %v648, %v652
    %656 = vrot.lane.b32.xlu0 %v649, 64
    %v657 = vpop.permute.xlu0 %656
    %v659 = vmul.f32 %v648, %v657
    %661 = vrot.lane.b32.xlu0 %v659, 32
    %v662 = vpop.permute.xlu0 %661
    %v664 = vadd.f32 %v654, %v662
    %v665 = vtanh.pop %v664
    %667 = vrot.lane.b32.xlu0 %v665, 64
    %v668 = vpop.permute.xlu0 %667
    %v670 = vmul.f32 %v648, %v668
    %v671 = vld [vmem:[#allocation5] sm:$0x3]
    %v672 = vxor.u32 %v628, 2147483648
    %v673 = vmul.f32 %v672, 1.442695
    %v674 = vpow.pop %v673
    %v675 = vadd.f32 %v674, 1.0
    %v676 = vrcp.pop %v675
    %v677 = vmul.f32 %v675, %v676
    %v678 = vsub.f32 1.0, %v677
    %v679 = vmul.f32 %v676, %v678
    %v680 = vadd.f32 %v676, %v679
    %vm681 = vweird.f32 %v675
    %vm682 = vweird.f32 %v676
    %vm683 = vmor %vm681, %vm682
    %v684 = vsel %vm683, %v676, %v680
    %v685 = vand.u32 2147483647, %v675
    %vm686 = vcmp.eq.f32.partialorder %v685, 8.507059e+37
    %v687 = vand.u32 %v675, 2147483648
    %v688 = vor.u32 1.1754944e-38, %v687
    %v689 = vsel %vm686, %v688, %v684
    %v690 = vmul.f32 1.0, %v689
    %v691 = vtanh.pop %v628
    %693 = vrot.lane.b32.xlu0 %v671, 32
    %v694 = vpop.permute.xlu0 %693
    %v696 = vmul.f32 %v690, %v694
    %698 = vrot.lane.b32.xlu0 %v691, 64
    %v699 = vpop.permute.xlu0 %698
    %v701 = vmul.f32 %v690, %v699
    %703 = vrot.lane.b32.xlu0 %v701, 32
    %v704 = vpop.permute.xlu0 %703
    %v706 = vadd.f32 %v696, %v704
    %v707 = vtanh.pop %v706
    %709 = vrot.lane.b32.xlu0 %v707, 64
    %v710 = vpop.permute.xlu0 %709
    %v712 = vmul.f32 %v690, %v710
    %714 = vrot.lane.b32.xlu0 %v670, 32
    %v715 = vpop.permute.xlu0 %714
    %717 = vst.msk [vmem:[#allocation2] sm:$0x3] %vm231, %v715
    %719 = vrot.lane.b32.xlu0 %v664, 96
    %v720 = vpop.permute.xlu0 %719
    %722 = vst.msk [vmem:[#allocation3] sm:$0x3] %vm231, %v720
    %724 = vrot.lane.b32.xlu0 %v712, 32
    %v725 = vpop.permute.xlu0 %724
    %727 = vst.msk [vmem:[#allocation4] sm:$0x3] %vm231, %v725
    %729 = vrot.lane.b32.xlu0 %v706, 96
    %v730 = vpop.permute.xlu0 %729
    %732 = vst.msk [vmem:[#allocation5] sm:$0x3] %vm231, %v730
    %s733 = scalar_lea.vmem %s3, 6
    %734 = vst.msk [vmem:[%s733] sm:$0x3] %vm231, %v715
    %s735 = scalar_lea.vmem %s68, 8
    %736 = vst.msk [vmem:[%s735] sm:$0x3] %vm231, %v725
    %s737 = scalar_lea.vmem %s0, 8
    %v738 = vld [vmem:[%s737] sm:$0x3]
    %v739 = vld [vmem:[#allocation2] sm:$0x3]
    %v741 = vsel %vm91, %v739, 0
    %743 = vmatpush.msra.mxu0 0.0
    %744 = vmatpush.msra.mxu0 0.0
    %745 = vmatpush.msra.mxu0 0.0
    %746 = vmatpush.msra.mxu0 0.0
    %747 = vmatpush.msra.mxu0 0.0
    %748 = vmatpush.msra.mxu0 0.0
    %749 = vmatpush.msra.mxu0 0.0
    %750 = vmatpush.msra.mxu0 0.0
    %751 = vmatpush.msra.mxu0 0.0
    %752 = vmatpush.msra.mxu0 0.0
    %753 = vmatpush.msra.mxu0 0.0
    %754 = vmatpush.msra.mxu0 0.0
    %755 = vmatpush.msra.mxu0 %v83
    %756 = vmatpush.msra.mxu0 %v82
    %757 = vmatpush.msra.mxu0 %v81
    %758 = vmatpush.msra.mxu0 %v80
    %759 = vmatmul.f32.gmra.mxu0 %v741
    %v760 = vpop.f32.mrf.mxu0
    %v761 = vadd.f32 0.0, %v760
    %762 = vdwg.mxu0
    %v763 = vadd.f32 %v738, %v761
    %s764 = scalar_lea.vmem %s60, 6
    %v765 = vld [vmem:[%s764] sm:$0x3]
    %v766 = vld [vmem:[#allocation4] sm:$0x3]
    %v768 = vsel %vm91, %v766, 0
    %770 = vmatpush.msra.mxu0 0.0
    %771 = vmatpush.msra.mxu0 0.0
    %772 = vmatpush.msra.mxu0 0.0
    %773 = vmatpush.msra.mxu0 0.0
    %774 = vmatpush.msra.mxu0 0.0
    %775 = vmatpush.msra.mxu0 0.0
    %776 = vmatpush.msra.mxu0 0.0
    %777 = vmatpush.msra.mxu0 0.0
    %778 = vmatpush.msra.mxu0 0.0
    %779 = vmatpush.msra.mxu0 0.0
    %780 = vmatpush.msra.mxu0 0.0
    %781 = vmatpush.msra.mxu0 0.0
    %782 = vmatpush.msra.mxu0 %v88
    %783 = vmatpush.msra.mxu0 %v87
    %784 = vmatpush.msra.mxu0 %v86
    %785 = vmatpush.msra.mxu0 %v85
    %786 = vmatmul.f32.gmra.mxu0 %v768
    %v787 = vpop.f32.mrf.mxu0
    %v788 = vadd.f32 0.0, %v787
    %789 = vdwg.mxu0
    %v790 = vadd.f32 %v765, %v788
    %v791 = vld [vmem:[#allocation3] sm:$0x3]
    %v792 = vxor.u32 %v763, 2147483648
    %v793 = vmul.f32 %v792, 1.442695
    %v794 = vpow.pop %v793
    %v795 = vadd.f32 %v794, 1.0
    %v796 = vrcp.pop %v795
    %v797 = vmul.f32 %v795, %v796
    %v798 = vsub.f32 1.0, %v797
    %v799 = vmul.f32 %v796, %v798
    %v800 = vadd.f32 %v796, %v799
    %vm801 = vweird.f32 %v795
    %vm802 = vweird.f32 %v796
    %vm803 = vmor %vm801, %vm802
    %v804 = vsel %vm803, %v796, %v800
    %v805 = vand.u32 2147483647, %v795
    %vm806 = vcmp.eq.f32.partialorder %v805, 8.507059e+37
    %v807 = vand.u32 %v795, 2147483648
    %v808 = vor.u32 1.1754944e-38, %v807
    %v809 = vsel %vm806, %v808, %v804
    %v810 = vmul.f32 1.0, %v809
    %v811 = vtanh.pop %v763
    %813 = vrot.lane.b32.xlu0 %v791, 32
    %v814 = vpop.permute.xlu0 %813
    %v816 = vmul.f32 %v810, %v814
    %818 = vrot.lane.b32.xlu0 %v811, 64
    %v819 = vpop.permute.xlu0 %818
    %v821 = vmul.f32 %v810, %v819
    %823 = vrot.lane.b32.xlu0 %v821, 32
    %v824 = vpop.permute.xlu0 %823
    %v826 = vadd.f32 %v816, %v824
    %v827 = vtanh.pop %v826
    %829 = vrot.lane.b32.xlu0 %v827, 64
    %v830 = vpop.permute.xlu0 %829
    %v832 = vmul.f32 %v810, %v830
    %v833 = vld [vmem:[#allocation5] sm:$0x3]
    %v834 = vxor.u32 %v790, 2147483648
    %v835 = vmul.f32 %v834, 1.442695
    %v836 = vpow.pop %v835
    %v837 = vadd.f32 %v836, 1.0
    %v838 = vrcp.pop %v837
    %v839 = vmul.f32 %v837, %v838
    %v840 = vsub.f32 1.0, %v839
    %v841 = vmul.f32 %v838, %v840
    %v842 = vadd.f32 %v838, %v841
    %vm843 = vweird.f32 %v837
    %vm844 = vweird.f32 %v838
    %vm845 = vmor %vm843, %vm844
    %v846 = vsel %vm845, %v838, %v842
    %v847 = vand.u32 2147483647, %v837
    %vm848 = vcmp.eq.f32.partialorder %v847, 8.507059e+37
    %v849 = vand.u32 %v837, 2147483648
    %v850 = vor.u32 1.1754944e-38, %v849
    %v851 = vsel %vm848, %v850, %v846
    %v852 = vmul.f32 1.0, %v851
    %v853 = vtanh.pop %v790
    %855 = vrot.lane.b32.xlu0 %v833, 32
    %v856 = vpop.permute.xlu0 %855
    %v858 = vmul.f32 %v852, %v856
    %860 = vrot.lane.b32.xlu0 %v853, 64
    %v861 = vpop.permute.xlu0 %860
    %v863 = vmul.f32 %v852, %v861
    %865 = vrot.lane.b32.xlu0 %v863, 32
    %v866 = vpop.permute.xlu0 %865
    %v868 = vadd.f32 %v858, %v866
    %v869 = vtanh.pop %v868
    %871 = vrot.lane.b32.xlu0 %v869, 64
    %v872 = vpop.permute.xlu0 %871
    %v874 = vmul.f32 %v852, %v872
    %876 = vrot.lane.b32.xlu0 %v832, 32
    %v877 = vpop.permute.xlu0 %876
    %879 = vst.msk [vmem:[#allocation2] sm:$0x3] %vm231, %v877
    %881 = vrot.lane.b32.xlu0 %v826, 96
    %v882 = vpop.permute.xlu0 %881
    %884 = vst.msk [vmem:[#allocation3] sm:$0x3] %vm231, %v882
    %886 = vrot.lane.b32.xlu0 %v874, 32
    %v887 = vpop.permute.xlu0 %886
    %889 = vst.msk [vmem:[#allocation4] sm:$0x3] %vm231, %v887
    %891 = vrot.lane.b32.xlu0 %v868, 96
    %v892 = vpop.permute.xlu0 %891
    %894 = vst.msk [vmem:[#allocation5] sm:$0x3] %vm231, %v892
    %s895 = scalar_lea.vmem %s3, 8
    %896 = vst.msk [vmem:[%s895] sm:$0x3] %vm231, %v877
    %s897 = scalar_lea.vmem %s68, 6
    %898 = vst.msk [vmem:[%s897] sm:$0x3] %vm231, %v887
    %s899 = scalar_lea.vmem %s0, 10
    %v900 = vld [vmem:[%s899] sm:$0x3]
    %v901 = vld [vmem:[#allocation2] sm:$0x3]
    %v903 = vsel %vm91, %v901, 0
    %905 = vmatpush.msra.mxu0 0.0
    %906 = vmatpush.msra.mxu0 0.0
    %907 = vmatpush.msra.mxu0 0.0
    %908 = vmatpush.msra.mxu0 0.0
    %909 = vmatpush.msra.mxu0 0.0
    %910 = vmatpush.msra.mxu0 0.0
    %911 = vmatpush.msra.mxu0 0.0
    %912 = vmatpush.msra.mxu0 0.0
    %913 = vmatpush.msra.mxu0 0.0
    %914 = vmatpush.msra.mxu0 0.0
    %915 = vmatpush.msra.mxu0 0.0
    %916 = vmatpush.msra.mxu0 0.0
    %917 = vmatpush.msra.mxu0 %v83
    %918 = vmatpush.msra.mxu0 %v82
    %919 = vmatpush.msra.mxu0 %v81
    %920 = vmatpush.msra.mxu0 %v80
    %921 = vmatmul.f32.gmra.mxu0 %v903
    %v922 = vpop.f32.mrf.mxu0
    %v923 = vadd.f32 0.0, %v922
    %924 = vdwg.mxu0
    %v925 = vadd.f32 %v900, %v923
    %s926 = scalar_lea.vmem %s60, 4
    %v927 = vld [vmem:[%s926] sm:$0x3]
    %v928 = vld [vmem:[#allocation4] sm:$0x3]
    %v930 = vsel %vm91, %v928, 0
    %932 = vmatpush.msra.mxu0 0.0
    %933 = vmatpush.msra.mxu0 0.0
    %934 = vmatpush.msra.mxu0 0.0
    %935 = vmatpush.msra.mxu0 0.0
    %936 = vmatpush.msra.mxu0 0.0
    %937 = vmatpush.msra.mxu0 0.0
    %938 = vmatpush.msra.mxu0 0.0
    %939 = vmatpush.msra.mxu0 0.0
    %940 = vmatpush.msra.mxu0 0.0
    %941 = vmatpush.msra.mxu0 0.0
    %942 = vmatpush.msra.mxu0 0.0
    %943 = vmatpush.msra.mxu0 0.0
    %944 = vmatpush.msra.mxu0 %v88
    %945 = vmatpush.msra.mxu0 %v87
    %946 = vmatpush.msra.mxu0 %v86
    %947 = vmatpush.msra.mxu0 %v85
    %948 = vmatmul.f32.gmra.mxu0 %v930
    %v949 = vpop.f32.mrf.mxu0
    %v950 = vadd.f32 0.0, %v949
    %951 = vdwg.mxu0
    %v952 = vadd.f32 %v927, %v950
    %v953 = vld [vmem:[#allocation3] sm:$0x3]
    %v954 = vxor.u32 %v925, 2147483648
    %v955 = vmul.f32 %v954, 1.442695
    %v956 = vpow.pop %v955
    %v957 = vadd.f32 %v956, 1.0
    %v958 = vrcp.pop %v957
    %v959 = vmul.f32 %v957, %v958
    %v960 = vsub.f32 1.0, %v959
    %v961 = vmul.f32 %v958, %v960
    %v962 = vadd.f32 %v958, %v961
    %vm963 = vweird.f32 %v957
    %vm964 = vweird.f32 %v958
    %vm965 = vmor %vm963, %vm964
    %v966 = vsel %vm965, %v958, %v962
    %v967 = vand.u32 2147483647, %v957
    %vm968 = vcmp.eq.f32.partialorder %v967, 8.507059e+37
    %v969 = vand.u32 %v957, 2147483648
    %v970 = vor.u32 1.1754944e-38, %v969
    %v971 = vsel %vm968, %v970, %v966
    %v972 = vmul.f32 1.0, %v971
    %v973 = vtanh.pop %v925
    %975 = vrot.lane.b32.xlu0 %v953, 32
    %v976 = vpop.permute.xlu0 %975
    %v978 = vmul.f32 %v972, %v976
    %980 = vrot.lane.b32.xlu0 %v973, 64
    %v981 = vpop.permute.xlu0 %980
    %v983 = vmul.f32 %v972, %v981
    %985 = vrot.lane.b32.xlu0 %v983, 32
    %v986 = vpop.permute.xlu0 %985
    %v988 = vadd.f32 %v978, %v986
    %v989 = vtanh.pop %v988
    %991 = vrot.lane.b32.xlu0 %v989, 64
    %v992 = vpop.permute.xlu0 %991
    %v994 = vmul.f32 %v972, %v992
    %v995 = vld [vmem:[#allocation5] sm:$0x3]
    %v996 = vxor.u32 %v952, 2147483648
    %v997 = vmul.f32 %v996, 1.442695
    %v998 = vpow.pop %v997
    %v999 = vadd.f32 %v998, 1.0
    %v1000 = vrcp.pop %v999
    %v1001 = vmul.f32 %v999, %v1000
    %v1002 = vsub.f32 1.0, %v1001
    %v1003 = vmul.f32 %v1000, %v1002
    %v1004 = vadd.f32 %v1000, %v1003
    %vm1005 = vweird.f32 %v999
    %vm1006 = vweird.f32 %v1000
    %vm1007 = vmor %vm1005, %vm1006
    %v1008 = vsel %vm1007, %v1000, %v1004
    %v1009 = vand.u32 2147483647, %v999
    %vm1010 = vcmp.eq.f32.partialorder %v1009, 8.507059e+37
    %v1011 = vand.u32 %v999, 2147483648
    %v1012 = vor.u32 1.1754944e-38, %v1011
    %v1013 = vsel %vm1010, %v1012, %v1008
    %v1014 = vmul.f32 1.0, %v1013
    %v1015 = vtanh.pop %v952
    %1017 = vrot.lane.b32.xlu0 %v995, 32
    %v1018 = vpop.permute.xlu0 %1017
    %v1020 = vmul.f32 %v1014, %v1018
    %1022 = vrot.lane.b32.xlu0 %v1015, 64
    %v1023 = vpop.permute.xlu0 %1022
    %v1025 = vmul.f32 %v1014, %v1023
    %1027 = vrot.lane.b32.xlu0 %v1025, 32
    %v1028 = vpop.permute.xlu0 %1027
    %v1030 = vadd.f32 %v1020, %v1028
    %v1031 = vtanh.pop %v1030
    %1033 = vrot.lane.b32.xlu0 %v1031, 64
    %v1034 = vpop.permute.xlu0 %1033
    %v1036 = vmul.f32 %v1014, %v1034
    %1038 = vrot.lane.b32.xlu0 %v994, 32
    %v1039 = vpop.permute.xlu0 %1038
    %1041 = vst.msk [vmem:[#allocation2] sm:$0x3] %vm231, %v1039
    %1043 = vrot.lane.b32.xlu0 %v988, 96
    %v1044 = vpop.permute.xlu0 %1043
    %1046 = vst.msk [vmem:[#allocation3] sm:$0x3] %vm231, %v1044
    %1048 = vrot.lane.b32.xlu0 %v1036, 32
    %v1049 = vpop.permute.xlu0 %1048
    %1051 = vst.msk [vmem:[#allocation4] sm:$0x3] %vm231, %v1049
    %1053 = vrot.lane.b32.xlu0 %v1030, 96
    %v1054 = vpop.permute.xlu0 %1053
    %1056 = vst.msk [vmem:[#allocation5] sm:$0x3] %vm231, %v1054
    %s1057 = scalar_lea.vmem %s3, 10
    %1058 = vst.msk [vmem:[%s1057] sm:$0x3] %vm231, %v1039
    %s1059 = scalar_lea.vmem %s68, 4
    %1060 = vst.msk [vmem:[%s1059] sm:$0x3] %vm231, %v1049
    %s1061 = scalar_lea.vmem %s0, 12
    %v1062 = vld [vmem:[%s1061] sm:$0x3]
    %v1063 = vld [vmem:[#allocation2] sm:$0x3]
    %v1065 = vsel %vm91, %v1063, 0
    %1067 = vmatpush.msra.mxu0 0.0
    %1068 = vmatpush.msra.mxu0 0.0
    %1069 = vmatpush.msra.mxu0 0.0
    %1070 = vmatpush.msra.mxu0 0.0
    %1071 = vmatpush.msra.mxu0 0.0
    %1072 = vmatpush.msra.mxu0 0.0
    %1073 = vmatpush.msra.mxu0 0.0
    %1074 = vmatpush.msra.mxu0 0.0
    %1075 = vmatpush.msra.mxu0 0.0
    %1076 = vmatpush.msra.mxu0 0.0
    %1077 = vmatpush.msra.mxu0 0.0
    %1078 = vmatpush.msra.mxu0 0.0
    %1079 = vmatpush.msra.mxu0 %v83
    %1080 = vmatpush.msra.mxu0 %v82
    %1081 = vmatpush.msra.mxu0 %v81
    %1082 = vmatpush.msra.mxu0 %v80
    %1083 = vmatmul.f32.gmra.mxu0 %v1065
    %v1084 = vpop.f32.mrf.mxu0
    %v1085 = vadd.f32 0.0, %v1084
    %1086 = vdwg.mxu0
    %v1087 = vadd.f32 %v1062, %v1085
    %s1088 = scalar_lea.vmem %s60, 2
    %v1089 = vld [vmem:[%s1088] sm:$0x3]
    %v1090 = vld [vmem:[#allocation4] sm:$0x3]
    %v1092 = vsel %vm91, %v1090, 0
    %1094 = vmatpush.msra.mxu0 0.0
    %1095 = vmatpush.msra.mxu0 0.0
    %1096 = vmatpush.msra.mxu0 0.0
    %1097 = vmatpush.msra.mxu0 0.0
    %1098 = vmatpush.msra.mxu0 0.0
    %1099 = vmatpush.msra.mxu0 0.0
    %1100 = vmatpush.msra.mxu0 0.0
    %1101 = vmatpush.msra.mxu0 0.0
    %1102 = vmatpush.msra.mxu0 0.0
    %1103 = vmatpush.msra.mxu0 0.0
    %1104 = vmatpush.msra.mxu0 0.0
    %1105 = vmatpush.msra.mxu0 0.0
    %1106 = vmatpush.msra.mxu0 %v88
    %1107 = vmatpush.msra.mxu0 %v87
    %1108 = vmatpush.msra.mxu0 %v86
    %1109 = vmatpush.msra.mxu0 %v85
    %1110 = vmatmul.f32.gmra.mxu0 %v1092
    %v1111 = vpop.f32.mrf.mxu0
    %v1112 = vadd.f32 0.0, %v1111
    %1113 = vdwg.mxu0
    %v1114 = vadd.f32 %v1089, %v1112
    %v1115 = vld [vmem:[#allocation3] sm:$0x3]
    %v1116 = vxor.u32 %v1087, 2147483648
    %v1117 = vmul.f32 %v1116, 1.442695
    %v1118 = vpow.pop %v1117
    %v1119 = vadd.f32 %v1118, 1.0
    %v1120 = vrcp.pop %v1119
    %v1121 = vmul.f32 %v1119, %v1120
    %v1122 = vsub.f32 1.0, %v1121
    %v1123 = vmul.f32 %v1120, %v1122
    %v1124 = vadd.f32 %v1120, %v1123
    %vm1125 = vweird.f32 %v1119
    %vm1126 = vweird.f32 %v1120
    %vm1127 = vmor %vm1125, %vm1126
    %v1128 = vsel %vm1127, %v1120, %v1124
    %v1129 = vand.u32 2147483647, %v1119
    %vm1130 = vcmp.eq.f32.partialorder %v1129, 8.507059e+37
    %v1131 = vand.u32 %v1119, 2147483648
    %v1132 = vor.u32 1.1754944e-38, %v1131
    %v1133 = vsel %vm1130, %v1132, %v1128
    %v1134 = vmul.f32 1.0, %v1133
    %v1135 = vtanh.pop %v1087
    %1137 = vrot.lane.b32.xlu0 %v1115, 32
    %v1138 = vpop.permute.xlu0 %1137
    %v1140 = vmul.f32 %v1134, %v1138
    %1142 = vrot.lane.b32.xlu0 %v1135, 64
    %v1143 = vpop.permute.xlu0 %1142
    %v1145 = vmul.f32 %v1134, %v1143
    %1147 = vrot.lane.b32.xlu0 %v1145, 32
    %v1148 = vpop.permute.xlu0 %1147
    %v1150 = vadd.f32 %v1140, %v1148
    %v1151 = vtanh.pop %v1150
    %1153 = vrot.lane.b32.xlu0 %v1151, 64
    %v1154 = vpop.permute.xlu0 %1153
    %v1156 = vmul.f32 %v1134, %v1154
    %v1157 = vld [vmem:[#allocation5] sm:$0x3]
    %v1158 = vxor.u32 %v1114, 2147483648
    %v1159 = vmul.f32 %v1158, 1.442695
    %v1160 = vpow.pop %v1159
    %v1161 = vadd.f32 %v1160, 1.0
    %v1162 = vrcp.pop %v1161
    %v1163 = vmul.f32 %v1161, %v1162
    %v1164 = vsub.f32 1.0, %v1163
    %v1165 = vmul.f32 %v1162, %v1164
    %v1166 = vadd.f32 %v1162, %v1165
    %vm1167 = vweird.f32 %v1161
    %vm1168 = vweird.f32 %v1162
    %vm1169 = vmor %vm1167, %vm1168
    %v1170 = vsel %vm1169, %v1162, %v1166
    %v1171 = vand.u32 2147483647, %v1161
    %vm1172 = vcmp.eq.f32.partialorder %v1171, 8.507059e+37
    %v1173 = vand.u32 %v1161, 2147483648
    %v1174 = vor.u32 1.1754944e-38, %v1173
    %v1175 = vsel %vm1172, %v1174, %v1170
    %v1176 = vmul.f32 1.0, %v1175
    %v1177 = vtanh.pop %v1114
    %1179 = vrot.lane.b32.xlu0 %v1157, 32
    %v1180 = vpop.permute.xlu0 %1179
    %v1182 = vmul.f32 %v1176, %v1180
    %1184 = vrot.lane.b32.xlu0 %v1177, 64
    %v1185 = vpop.permute.xlu0 %1184
    %v1187 = vmul.f32 %v1176, %v1185
    %1189 = vrot.lane.b32.xlu0 %v1187, 32
    %v1190 = vpop.permute.xlu0 %1189
    %v1192 = vadd.f32 %v1182, %v1190
    %v1193 = vtanh.pop %v1192
    %1195 = vrot.lane.b32.xlu0 %v1193, 64
    %v1196 = vpop.permute.xlu0 %1195
    %v1198 = vmul.f32 %v1176, %v1196
    %1200 = vrot.lane.b32.xlu0 %v1156, 32
    %v1201 = vpop.permute.xlu0 %1200
    %1203 = vst.msk [vmem:[#allocation2] sm:$0x3] %vm231, %v1201
    %1205 = vrot.lane.b32.xlu0 %v1150, 96
    %v1206 = vpop.permute.xlu0 %1205
    %1208 = vst.msk [vmem:[#allocation3] sm:$0x3] %vm231, %v1206
    %1210 = vrot.lane.b32.xlu0 %v1198, 32
    %v1211 = vpop.permute.xlu0 %1210
    %1213 = vst.msk [vmem:[#allocation4] sm:$0x3] %vm231, %v1211
    %1215 = vrot.lane.b32.xlu0 %v1192, 96
    %v1216 = vpop.permute.xlu0 %1215
    %1218 = vst.msk [vmem:[#allocation5] sm:$0x3] %vm231, %v1216
    %s1219 = scalar_lea.vmem %s3, 12
    %1220 = vst.msk [vmem:[%s1219] sm:$0x3] %vm231, %v1201
    %s1221 = scalar_lea.vmem %s68, 2
    %1222 = vst.msk [vmem:[%s1221] sm:$0x3] %vm231, %v1211
    %s1223 = scalar_lea.vmem %s0, 14
    %v1224 = vld [vmem:[%s1223] sm:$0x3]
    %v1225 = vld [vmem:[#allocation2] sm:$0x3]
    %v1227 = vsel %vm91, %v1225, 0
    %1229 = vmatpush.msra.mxu0 0.0
    %1230 = vmatpush.msra.mxu0 0.0
    %1231 = vmatpush.msra.mxu0 0.0
    %1232 = vmatpush.msra.mxu0 0.0
    %1233 = vmatpush.msra.mxu0 0.0
    %1234 = vmatpush.msra.mxu0 0.0
    %1235 = vmatpush.msra.mxu0 0.0
    %1236 = vmatpush.msra.mxu0 0.0
    %1237 = vmatpush.msra.mxu0 0.0
    %1238 = vmatpush.msra.mxu0 0.0
    %1239 = vmatpush.msra.mxu0 0.0
    %1240 = vmatpush.msra.mxu0 0.0
    %1241 = vmatpush.msra.mxu0 %v83
    %1242 = vmatpush.msra.mxu0 %v82
    %1243 = vmatpush.msra.mxu0 %v81
    %1244 = vmatpush.msra.mxu0 %v80
    %1245 = vmatmul.f32.gmra.mxu0 %v1227
    %v1246 = vpop.f32.mrf.mxu0
    %v1247 = vadd.f32 0.0, %v1246
    %1248 = vdwg.mxu0
    %v1249 = vadd.f32 %v1224, %v1247
    %v1250 = vld [vmem:[%s60] sm:$0x3]
    %v1251 = vld [vmem:[#allocation4] sm:$0x3]
    %v1253 = vsel %vm91, %v1251, 0
    %1255 = vmatpush.msra.mxu0 0.0
    %1256 = vmatpush.msra.mxu0 0.0
    %1257 = vmatpush.msra.mxu0 0.0
    %1258 = vmatpush.msra.mxu0 0.0
    %1259 = vmatpush.msra.mxu0 0.0
    %1260 = vmatpush.msra.mxu0 0.0
    %1261 = vmatpush.msra.mxu0 0.0
    %1262 = vmatpush.msra.mxu0 0.0
    %1263 = vmatpush.msra.mxu0 0.0
    %1264 = vmatpush.msra.mxu0 0.0
    %1265 = vmatpush.msra.mxu0 0.0
    %1266 = vmatpush.msra.mxu0 0.0
    %1267 = vmatpush.msra.mxu0 %v88
    %1268 = vmatpush.msra.mxu0 %v87
    %1269 = vmatpush.msra.mxu0 %v86
    %1270 = vmatpush.msra.mxu0 %v85
    %1271 = vmatmul.f32.gmra.mxu0 %v1253
    %v1272 = vpop.f32.mrf.mxu0
    %v1273 = vadd.f32 0.0, %v1272
    %1274 = vdwg.mxu0
    %v1275 = vadd.f32 %v1250, %v1273
    %v1276 = vld [vmem:[#allocation3] sm:$0x3]
    %v1277 = vxor.u32 %v1249, 2147483648
    %v1278 = vmul.f32 %v1277, 1.442695
    %v1279 = vpow.pop %v1278
    %v1280 = vadd.f32 %v1279, 1.0
    %v1281 = vrcp.pop %v1280
    %v1282 = vmul.f32 %v1280, %v1281
    %v1283 = vsub.f32 1.0, %v1282
    %v1284 = vmul.f32 %v1281, %v1283
    %v1285 = vadd.f32 %v1281, %v1284
    %vm1286 = vweird.f32 %v1280
    %vm1287 = vweird.f32 %v1281
    %vm1288 = vmor %vm1286, %vm1287
    %v1289 = vsel %vm1288, %v1281, %v1285
    %v1290 = vand.u32 2147483647, %v1280
    %vm1291 = vcmp.eq.f32.partialorder %v1290, 8.507059e+37
    %v1292 = vand.u32 %v1280, 2147483648
    %v1293 = vor.u32 1.1754944e-38, %v1292
    %v1294 = vsel %vm1291, %v1293, %v1289
    %v1295 = vmul.f32 1.0, %v1294
    %v1296 = vtanh.pop %v1249
    %1298 = vrot.lane.b32.xlu0 %v1276, 32
    %v1299 = vpop.permute.xlu0 %1298
    %v1301 = vmul.f32 %v1295, %v1299
    %1303 = vrot.lane.b32.xlu0 %v1296, 64
    %v1304 = vpop.permute.xlu0 %1303
    %v1306 = vmul.f32 %v1295, %v1304
    %1308 = vrot.lane.b32.xlu0 %v1306, 32
    %v1309 = vpop.permute.xlu0 %1308
    %v1311 = vadd.f32 %v1301, %v1309
    %v1312 = vtanh.pop %v1311
    %1314 = vrot.lane.b32.xlu0 %v1312, 64
    %v1315 = vpop.permute.xlu0 %1314
    %v1317 = vmul.f32 %v1295, %v1315
    %v1318 = vld [vmem:[#allocation5] sm:$0x3]
    %v1319 = vxor.u32 %v1275, 2147483648
    %v1320 = vmul.f32 %v1319, 1.442695
    %v1321 = vpow.pop %v1320
    %v1322 = vadd.f32 %v1321, 1.0
    %v1323 = vrcp.pop %v1322
    %v1324 = vmul.f32 %v1322, %v1323
    %v1325 = vsub.f32 1.0, %v1324
    %v1326 = vmul.f32 %v1323, %v1325
    %v1327 = vadd.f32 %v1323, %v1326
    %vm1328 = vweird.f32 %v1322
    %vm1329 = vweird.f32 %v1323
    %vm1330 = vmor %vm1328, %vm1329
    %v1331 = vsel %vm1330, %v1323, %v1327
    %v1332 = vand.u32 2147483647, %v1322
    %vm1333 = vcmp.eq.f32.partialorder %v1332, 8.507059e+37
    %v1334 = vand.u32 %v1322, 2147483648
    %v1335 = vor.u32 1.1754944e-38, %v1334
    %v1336 = vsel %vm1333, %v1335, %v1331
    %v1337 = vmul.f32 1.0, %v1336
    %v1338 = vtanh.pop %v1275
    %1340 = vrot.lane.b32.xlu0 %v1318, 32
    %v1341 = vpop.permute.xlu0 %1340
    %v1343 = vmul.f32 %v1337, %v1341
    %1345 = vrot.lane.b32.xlu0 %v1338, 64
    %v1346 = vpop.permute.xlu0 %1345
    %v1348 = vmul.f32 %v1337, %v1346
    %1350 = vrot.lane.b32.xlu0 %v1348, 32
    %v1351 = vpop.permute.xlu0 %1350
    %v1353 = vadd.f32 %v1343, %v1351
    %v1354 = vtanh.pop %v1353
    %1356 = vrot.lane.b32.xlu0 %v1354, 64
    %v1357 = vpop.permute.xlu0 %1356
    %v1359 = vmul.f32 %v1337, %v1357
    %1361 = vrot.lane.b32.xlu0 %v1317, 32
    %v1362 = vpop.permute.xlu0 %1361
    %1364 = vst.msk [vmem:[#allocation2] sm:$0x3] %vm231, %v1362
    %1366 = vrot.lane.b32.xlu0 %v1311, 96
    %v1367 = vpop.permute.xlu0 %1366
    %1369 = vst.msk [vmem:[#allocation3] sm:$0x3] %vm231, %v1367
    %1371 = vrot.lane.b32.xlu0 %v1359, 32
    %v1372 = vpop.permute.xlu0 %1371
    %1374 = vst.msk [vmem:[#allocation4] sm:$0x3] %vm231, %v1372
    %1376 = vrot.lane.b32.xlu0 %v1353, 96
    %v1377 = vpop.permute.xlu0 %1376
    %1379 = vst.msk [vmem:[#allocation5] sm:$0x3] %vm231, %v1377
    %s1380 = scalar_lea.vmem %s3, 14
    %1381 = vst.msk [vmem:[%s1380] sm:$0x3] %vm231, %v1362
    %1382 = vst.msk [vmem:[%s68] sm:$0x3] %vm231, %v1372
    %s1383 = ssub.s32 0, 0
    %s1384 = smul.u32 8, %s1383
    %p1385 = scmp.lt.s32.totalorder %s1384, 7
    %s1386 = scalar_select %p1385, %s1384, 7
    %s1387 = smul.addr %s1386, 2
    %s1388 = scalar_lea.vmem %s4, %s1387
    // Predicated region
    $region22: #{a_call__.6} parent=1 // pred_check
      _
    $region23: #{a_call__.6} parent=1 // pred_check_branch
      %1390 = sbr.rel (0) target = $region25
    $region24: #{a_call__.6} parent=1 // pred_region
      _
    $region25: #{a_call__.6} parent=1 // pred_fallthru
      _
    // Predicated region
    $region26: #{a_call__.6} parent=1 // pred_check
      _
    $region27: #{a_call__.6} parent=1 // pred_check_branch
      %1392 = sbr.rel (0) target = $region29
    $region28: #{a_call__.6} parent=1 // pred_region
      %s1393 = ssub.s32 0, 0
      %s1394 = smul.u32 8, %s1393
    $region29: #{a_call__.6} parent=1 // pred_fallthru
      _
    // Predicated region
    $region30: #{a_call__.6} parent=1 // pred_check
      _
    $region31: #{a_call__.6} parent=1 // pred_check_branch
      %1396 = sbr.rel (0) target = $region33
    $region32: #{a_call__.6} parent=1 // pred_region
      _
    $region33: #{a_call__.6} parent=1 // pred_fallthru
      _
    // Predicated region
    $region34: #{a_call__.6} parent=1 // pred_check
      _
    $region35: #{a_call__.6} parent=1 // pred_check_branch
      %1398 = sbr.rel (0) target = $region37
    $region36: #{a_call__.6} parent=1 // pred_region
      %s1399 = ssub.s32 0, 0
      %s1400 = smul.u32 8, %s1399
      %p1401 = scmp.lt.s32.totalorder %s1400, 7
      %s1402 = scalar_select %p1401, %s1400, 7
      %s1403 = smul.addr %s1402, 2
      %s1404 = scalar_lea.vmem %s4, %s1403
    $region37: #{a_call__.6} parent=1 // pred_fallthru
      _
    %1405 = vsyncpa [#allocation7], 1

</llo_original>
